<compile_context>
chip_gen: v7x
topology: tpu7x:2x2x1
jax: 0.10.0
libtpu: 0.0.40
codegen_flags: <defaults>
</compile_context>

<pallas_src>
import jax
import jax.numpy as jnp
from jax import lax
from jax.experimental import pallas as pl
from jax.experimental.pallas import tpu as pltpu


# ---------------------------------------------------------------------------
# Kernel
# ---------------------------------------------------------------------------
def _attention_kernel(feat_ref, hid_ref, w1f_ref, w1h_ref, b1_ref, w2_ref,
                      ctx_ref, attw_ref):
    feat = feat_ref[...]                                    # (TB, R, F)

    # First Linear: concat([features, hidden]) @ W1 + b1 as two matmuls.
    # dot_general keeps (TB, R) as free LHS dims -> no in-kernel reshape.
    pre_f = lax.dot_general(
        feat, w1f_ref[...],
        dimension_numbers=(((2,), (0,)), ((), ())),
        preferred_element_type=jnp.float32)                 # (TB, R, H)

    h_proj = jnp.dot(hid_ref[...], w1h_ref[...],
                     preferred_element_type=jnp.float32)    # (TB, H)
    h_proj = h_proj + b1_ref[...]                           # bias folded once

    a = jnp.tanh(pre_f + h_proj[:, None, :])                # (TB, R, H) f32 (EUP)

    # Second Linear (output width 1): VPU multiply + lane reduce. b2 dropped
    # (softmax shift invariance).
    w2_row = w2_ref[...].reshape(1, 1, -1).astype(jnp.float32)
    scores = jnp.sum(a * w2_row, axis=-1)                   # (TB, R)

    # Numerically stable softmax over regions; exact divide for parity.
    m = jnp.max(scores, axis=1, keepdims=True)
    e = jnp.exp(scores - m)
    denom = jnp.sum(e, axis=1, keepdims=True)
    weights = e / denom                                     # (TB, R)

    # Weighted sum of features -> context (f32 accumulate).
    context = jnp.sum(feat.astype(jnp.float32) * weights[:, :, None], axis=1)

    ctx_ref[...] = context.astype(ctx_ref.dtype)
    attw_ref[...] = weights.astype(attw_ref.dtype)


# ---------------------------------------------------------------------------
# Chip / block-size heuristics
# ---------------------------------------------------------------------------
def _num_tensorcores_per_chip():
    """Best-effort TensorCore count (v7x = 2, everything else = 1)."""
    try:
        info = pltpu.get_tpu_info()
        for attr in ("num_cores", "tensorcores_per_chip", "num_tensorcores"):
            n = getattr(info, attr, None)
            if isinstance(n, int) and 1 <= n <= 8:
                return n
    except Exception:
        pass
    try:
        kind = str(jax.devices()[0].device_kind).lower()
        if "v7" in kind:
            return 2
    except Exception:
        pass
    return 1


def _pick_block_b(B, R, F, itemsize, cores):
    """Batch-block size driven by HBM bandwidth, VMEM caps and layout rules."""
    row_bytes = max(1, R * F * itemsize)

    if B < 8:
        return B                       # full-dim block satisfies the layout rule

    # HBM-bandwidth target: ~4 MiB per features tile; cap per generation so the
    # double-buffered tile stays comfortably inside scoped VMEM.
    target_bytes = 4 << 20
    cap_bytes = (6 << 20) if cores >= 2 else (12 << 20)
    tb = min(B, max(8, target_bytes // row_bytes))
    tb = min(tb, max(8, cap_bytes // row_bytes))

    # Multi-TC chips (v7x): keep >= 2 grid steps per core (>= 4 total) so the
    # per-core pipeline can double-buffer. Single-TC chips keep one big block.
    if cores >= 2:
        tb = min(tb, max(8, B // (2 * cores)))

    tb = max(8, (tb // 8) * 8)         # sublane-aligned batch blocks

    # Prefer a tb that divides B exactly -> no wrapper-side pad copy.
    if B % tb != 0:
        found = None
        d = tb
        while d >= 8:
            if B % d == 0:
                found = d
                break
            d -= 8
        if found is not None:
            tb = found
        elif B * row_bytes <= cap_bytes:
            tb = B                     # full-batch block (full dim is legal)
        # else: wrapper pads B up to a multiple of tb (rare fallback)

    return max(1, min(tb, B))


def _vmem_limit_bytes(tb, R, F, H, in_itemsize, cores):
    """Explicit scoped-VMEM limit (v5e default is only 16 MiB)."""
    f32 = 4
    feat_tile = tb * R * F * in_itemsize
    hid_tile = tb * H * in_itemsize
    ctx_tile = tb * F * f32
    attw_tile = tb * R * f32
    weights = (F * H + H * H) * in_itemsize + 2 * H * f32
    interm = 3 * tb * R * max(H, F) * f32
    need = 2 * (feat_tile + hid_tile + ctx_tile + attw_tile) + 2 * weights + interm
    limit = int(need * 1.5) + (2 << 20)
    cap = (48 << 20) if cores >= 2 else (100 << 20)   # v7x: 64 MiB physical/TC
    return int(max(24 << 20, min(limit, cap)))


# ---------------------------------------------------------------------------
# Wrapper
# ---------------------------------------------------------------------------
def attention_module(features, hidden, w1, b1, w2, b2, *,
                     block_b=None, matmul_dtype=None):
    """
    features: [B, R, F], hidden: [B, H]
    w1: [F+H, H], b1: [H]   (first Linear, y = x @ w1 + b1)
    w2: [H, 1],   b2: [1]   (second Linear; b2 has no effect through softmax)
    matmul_dtype: optionally jnp.bfloat16 to halve HBM traffic on the MXU
                  operands (element-wise math stays f32). Default: keep f32.
    Returns (context [B, F], attention_weights [B, R]).
    """
    del b2                            # softmax is shift-invariant
    B, R, F = features.shape
    H = hidden.shape[1]
    out_dtype = jnp.float32

    # Split the first-layer weight across the concat boundary (exact).
    w1f = w1[:F, :]                   # (F, H)
    w1h = w1[F:, :]                   # (H, H)
    b1_2d = b1.reshape(1, H).astype(jnp.float32)
    w2_row = w2.reshape(1, H).astype(jnp.float32)

    if matmul_dtype is not None:
        features = features.astype(matmul_dtype)
        hidden = hidden.astype(matmul_dtype)
        w1f = w1f.astype(matmul_dtype)
        w1h = w1h.astype(matmul_dtype)

    itemsize = jnp.dtype(features.dtype).itemsize
    cores = _num_tensorcores_per_chip()

    tb = block_b if block_b is not None else _pick_block_b(B, R, F, itemsize, cores)
    tb = max(1, min(int(tb), B))
    n_blocks = pl.cdiv(B, tb)
    Bp = n_blocks * tb
    if Bp != B:                       # rare fallback (tb chosen to divide B above)
        pad = Bp - B
        features = jnp.pad(features, ((0, pad), (0, 0), (0, 0)))
        hidden = jnp.pad(hidden, ((0, pad), (0, 0)))

    out_shapes = (
        jax.ShapeDtypeStruct((Bp, F), out_dtype),
        jax.ShapeDtypeStruct((Bp, R), out_dtype),
    )

    ctx, attw = pl.pallas_call(
        _attention_kernel,
        out_shape=out_shapes,
        grid_spec=pltpu.PrefetchScalarGridSpec(
            num_scalar_prefetch=0,
            grid=(n_blocks,),
            in_specs=[
                pl.BlockSpec((tb, R, F), lambda i: (i, 0, 0)),   # features tile
                pl.BlockSpec((tb, H), lambda i: (i, 0)),         # hidden tile
                pl.BlockSpec((F, H), lambda i: (0, 0)),          # w1_f (VMEM resident)
                pl.BlockSpec((H, H), lambda i: (0, 0)),          # w1_h (VMEM resident)
                pl.BlockSpec((1, H), lambda i: (0, 0)),          # b1
                pl.BlockSpec((1, H), lambda i: (0, 0)),          # w2 row
            ],
            out_specs=[
                pl.BlockSpec((tb, F), lambda i: (i, 0)),         # context
                pl.BlockSpec((tb, R), lambda i: (i, 0)),         # attention weights
            ],
        ),
        compiler_params=pltpu.CompilerParams(
            dimension_semantics=("parallel",),
            vmem_limit_bytes=_vmem_limit_bytes(tb, R, F, H, itemsize, cores)),
    )(features, hidden, w1f, w1h, b1_2d, w2_row)

    if Bp != B:
        ctx = ctx[:B]
        attw = attw[:B]
    return ctx, attw


# ---------------------------------------------------------------------------
# Pure-JAX reference (mirrors the PyTorch module)
# ---------------------------------------------------------------------------
def _reference(features, hidden, w1, b1, w2, b2):
    B, R, F = features.shape
    hidden_exp = jnp.broadcast_to(hidden[:, None, :], (B, R, hidden.shape[1]))
    attn_in = jnp.concatenate([features, hidden_exp], axis=2)
    a = jnp.tanh(attn_in @ w1 + b1)
    scores = (a @ w2 + b2)[..., 0]
    weights = jax.nn.softmax(scores, axis=1)
    context = jnp.sum(features * weights[..., None], axis=1)
    return context, weights


if __name__ == "__main__":
    def _run_case(B, R, F, H, seed):
        key = jax.random.PRNGKey(seed)
        k_feat, k_hid, k_w1, k_b1, k_w2, k_b2 = jax.random.split(key, 6)
        features = jax.random.normal(k_feat, (B, R, F), dtype=jnp.float32)
        hidden = jax.random.normal(k_hid, (B, H), dtype=jnp.float32)
        w1 = 0.1 * jax.random.normal(k_w1, (F + H, H), dtype=jnp.float32)
        b1 = 0.1 * jax.random.normal(k_b1, (H,), dtype=jnp.float32)
        w2 = 0.1 * jax.random.normal(k_w2, (H, 1), dtype=jnp.float32)
        b2 = 0.1 * jax.random.normal(k_b2, (1,), dtype=jnp.float32)

        ctx, attw = attention_module(features, hidden, w1, b1, w2, b2)
        jax.block_until_ready((ctx, attw))

        ctx_ref, attw_ref = _reference(features, hidden, w1, b1, w2, b2)
        assert jnp.allclose(ctx, ctx_ref, atol=1e-3, rtol=1e-3), \
            float(jnp.max(jnp.abs(ctx - ctx_ref)))
        assert jnp.allclose(attw, attw_ref, atol=1e-3, rtol=1e-3), \
            float(jnp.max(jnp.abs(attw - attw_ref)))

    # Main case: B multiple of 8 -> single large block on 1-TC chips, >=4
    # blocks on v7x.
    _run_case(B=64, R=8, F=64, H=32, seed=0)
    # Ragged batch (B % 8 != 0): exercised via the full-batch-block path
    # (no wrapper pad, no (8,128) violation).
    _run_case(B=12, R=4, F=32, H=16, seed=1)

    print("KERNEL_OK")
</pallas_src>

<mosaic_0001>
module attributes {stable_mosaic.version = 11 : i64} {
  func.func @_attention_kernel(%arg0: i32, %arg1: memref<64x8x64xf32, #tpu.memory_space<vmem>>, %arg2: memref<64x32xf32, #tpu.memory_space<vmem>>, %arg3: memref<64x32xf32, #tpu.memory_space<vmem>>, %arg4: memref<32x32xf32, #tpu.memory_space<vmem>>, %arg5: memref<1x32xf32, #tpu.memory_space<vmem>>, %arg6: memref<1x32xf32, #tpu.memory_space<vmem>>, %arg7: memref<64x64xf32, #tpu.memory_space<vmem>>, %arg8: memref<64x8xf32, #tpu.memory_space<vmem>>) attributes {dimension_semantics = [#tpu.dimension_semantics<parallel>], iteration_bounds = array<i64: 1>, scalar_prefetch = 0 : i64, scratch_operands = 0 : i64, tpu.core_type = #tpu.core_type<tc>, window_params = [{transform_indices = @transform_0, window_bounds = array<i64: 64, 8, 64>}, {transform_indices = @transform_1, window_bounds = array<i64: 64, 32>}, {pipeline_mode = #tpu.pipeline_mode<synchronous>, transform_indices = @transform_2, window_bounds = array<i64: 64, 32>}, {pipeline_mode = #tpu.pipeline_mode<synchronous>, transform_indices = @transform_3, window_bounds = array<i64: 32, 32>}, {pipeline_mode = #tpu.pipeline_mode<synchronous>, transform_indices = @transform_4, window_bounds = array<i64: 1, 32>}, {pipeline_mode = #tpu.pipeline_mode<synchronous>, transform_indices = @transform_5, window_bounds = array<i64: 1, 32>}, {transform_indices = @transform_6, window_bounds = array<i64: 64, 64>}, {transform_indices = @transform_7, window_bounds = array<i64: 64, 8>}]} {
    %c0 = arith.constant 0 : index
    %c0_0 = arith.constant 0 : index
    %c0_1 = arith.constant 0 : index
    %0 = vector.load %arg1[%c0, %c0_0, %c0_1] : memref<64x8x64xf32, #tpu.memory_space<vmem>>, vector<64x8x64xf32>
    %c0_2 = arith.constant 0 : index
    %c0_3 = arith.constant 0 : index
    %1 = vector.load %arg3[%c0_2, %c0_3] : memref<64x32xf32, #tpu.memory_space<vmem>>, vector<64x32xf32>
    %cst = arith.constant dense<0.000000e+00> : vector<64x8x32xf32>
    %2 = tpu.matmul %0, %1, %cst {dimension_numbers = #tpu.dot_dimension_numbers<[2], [0], [0, 1], [1], [0, 0, 0, 1, 1, 1], [], []>} : vector<64x8x64xf32>, vector<64x32xf32>, vector<64x8x32xf32> -> vector<64x8x32xf32>
    %c0_4 = arith.constant 0 : index
    %c0_5 = arith.constant 0 : index
    %3 = vector.load %arg2[%c0_4, %c0_5] : memref<64x32xf32, #tpu.memory_space<vmem>>, vector<64x32xf32>
    %c0_6 = arith.constant 0 : index
    %c0_7 = arith.constant 0 : index
    %4 = vector.load %arg4[%c0_6, %c0_7] : memref<32x32xf32, #tpu.memory_space<vmem>>, vector<32x32xf32>
    %cst_8 = arith.constant dense<0.000000e+00> : vector<64x32xf32>
    %5 = tpu.matmul %3, %4, %cst_8 {dimension_numbers = #tpu.dot_dimension_numbers<[1], [0], [0], [1], [0, 0, 1, 1], [], []>} : vector<64x32xf32>, vector<32x32xf32>, vector<64x32xf32> -> vector<64x32xf32>
    %c0_9 = arith.constant 0 : index
    %c0_10 = arith.constant 0 : index
    %6 = vector.load %arg5[%c0_9, %c0_10] : memref<1x32xf32, #tpu.memory_space<vmem>>, vector<1x32xf32>
    %7 = vector.broadcast %6 : vector<1x32xf32> to vector<64x32xf32>
    %8 = arith.addf %5, %7 : vector<64x32xf32>
    %9 = vector.shape_cast %8 : vector<64x32xf32> to vector<64x1x32xf32>
    %10 = vector.broadcast %9 : vector<64x1x32xf32> to vector<64x8x32xf32>
    %11 = arith.addf %2, %10 : vector<64x8x32xf32>
    %12 = math.tanh %11 : vector<64x8x32xf32>
    %c0_11 = arith.constant 0 : index
    %c0_12 = arith.constant 0 : index
    %13 = vector.load %arg6[%c0_11, %c0_12] : memref<1x32xf32, #tpu.memory_space<vmem>>, vector<1x32xf32>
    %14 = vector.shape_cast %13 : vector<1x32xf32> to vector<1x1x32xf32>
    %15 = vector.broadcast %14 : vector<1x1x32xf32> to vector<64x8x32xf32>
    %16 = arith.mulf %12, %15 : vector<64x8x32xf32>
    %cst_13 = arith.constant dense<0.000000e+00> : vector<64x8xf32>
    %17 = vector.multi_reduction <add>, %16, %cst_13 [2] : vector<64x8x32xf32> to vector<64x8xf32>
    %cst_14 = arith.constant dense<0xFF800000> : vector<64xf32>
    %18 = vector.multi_reduction <maximumf>, %17, %cst_14 [1] : vector<64x8xf32> to vector<64xf32>
    %19 = vector.shape_cast %18 : vector<64xf32> to vector<64x1xf32>
    %20 = vector.broadcast %19 : vector<64x1xf32> to vector<64x8xf32>
    %21 = arith.subf %17, %20 : vector<64x8xf32>
    %22 = math.exp %21 : vector<64x8xf32>
    %cst_15 = arith.constant dense<0.000000e+00> : vector<64xf32>
    %23 = vector.multi_reduction <add>, %22, %cst_15 [1] : vector<64x8xf32> to vector<64xf32>
    %24 = vector.shape_cast %23 : vector<64xf32> to vector<64x1xf32>
    %25 = vector.broadcast %24 : vector<64x1xf32> to vector<64x8xf32>
    %26 = arith.divf %22, %25 : vector<64x8xf32>
    %27 = vector.shape_cast %26 : vector<64x8xf32> to vector<64x8x1xf32>
    %28 = vector.broadcast %27 : vector<64x8x1xf32> to vector<64x8x64xf32>
    %29 = arith.mulf %0, %28 : vector<64x8x64xf32>
    %cst_16 = arith.constant dense<0.000000e+00> : vector<64x64xf32>
    %30 = vector.multi_reduction <add>, %29, %cst_16 [1] : vector<64x8x64xf32> to vector<64x64xf32>
    %c0_17 = arith.constant 0 : index
    %c0_18 = arith.constant 0 : index
    %31 = vector.load %arg7[%c0_17, %c0_18] : memref<64x64xf32, #tpu.memory_space<vmem>>, vector<64x64xf32>
    tpu.vector_store %arg7[%c0_17, %c0_18], %30 {strides = array<i32>} : memref<64x64xf32, #tpu.memory_space<vmem>>, vector<64x64xf32>,
    %c0_19 = arith.constant 0 : index
    %c0_20 = arith.constant 0 : index
    %32 = vector.load %arg8[%c0_19, %c0_20] : memref<64x8xf32, #tpu.memory_space<vmem>>, vector<64x8xf32>
    tpu.vector_store %arg8[%c0_19, %c0_20], %26 {strides = array<i32>} : memref<64x8xf32, #tpu.memory_space<vmem>>, vector<64x8xf32>,
    return
  }
  func.func @transform_0(%arg0: i32) -> (i32, i32, i32) {
    %c0_i32 = arith.constant 0 : i32
    %c0_i32_0 = arith.constant 0 : i32
    %c0_i32_1 = arith.constant 0 : i32
    return %arg0, %c0_i32, %c0_i32_0 : i32, i32, i32
  }
  func.func @transform_1(%arg0: i32) -> (i32, i32) {
    %c0_i32 = arith.constant 0 : i32
    %c0_i32_0 = arith.constant 0 : i32
    return %arg0, %c0_i32 : i32, i32
  }
  func.func @transform_2(%arg0: i32) -> (i32, i32) {
    %c0_i32 = arith.constant 0 : i32
    %c0_i32_0 = arith.constant 0 : i32
    %c0_i32_1 = arith.constant 0 : i32
    return %c0_i32, %c0_i32_0 : i32, i32
  }
  func.func @transform_3(%arg0: i32) -> (i32, i32) {
    %c0_i32 = arith.constant 0 : i32
    %c0_i32_0 = arith.constant 0 : i32
    %c0_i32_1 = arith.constant 0 : i32
    return %c0_i32, %c0_i32_0 : i32, i32
  }
  func.func @transform_4(%arg0: i32) -> (i32, i32) {
    %c0_i32 = arith.constant 0 : i32
    %c0_i32_0 = arith.constant 0 : i32
    %c0_i32_1 = arith.constant 0 : i32
    return %c0_i32, %c0_i32_0 : i32, i32
  }
  func.func @transform_5(%arg0: i32) -> (i32, i32) {
    %c0_i32 = arith.constant 0 : i32
    %c0_i32_0 = arith.constant 0 : i32
    %c0_i32_1 = arith.constant 0 : i32
    return %c0_i32, %c0_i32_0 : i32, i32
  }
  func.func @transform_6(%arg0: i32) -> (i32, i32) {
    %c0_i32 = arith.constant 0 : i32
    %c0_i32_0 = arith.constant 0 : i32
    return %arg0, %c0_i32 : i32, i32
  }
  func.func @transform_7(%arg0: i32) -> (i32, i32) {
    %c0_i32 = arith.constant 0 : i32
    %c0_i32_0 = arith.constant 0 : i32
    return %arg0, %c0_i32 : i32, i32
  }
}

</mosaic_0001>

<llo_original>
// kernel: tpu_custom_call.1
$region0: #{tpu_custom_call.1}
  #allocation0 [shape = 'u32[]', space=smem, size = 0x4, offset = 0x4, fixed_abs, tag = 'smem constant byte address 0x4 - core index']
  #allocation1 [shape = 'u32[144,128]{1,0:T(1,128)}', space=vmem, size = 0x12000, scoped, tag = 'internal scratch']
  %s0 = inlined_call_operand.hbm [shape: f32[64,8,64], index: 0, kind: input, shape index: {}]
  %s1 = inlined_call_operand.vmem [shape: f32[64,32], index: 1, kind: input, shape index: {}]
  %s2 = inlined_call_operand.vmem [shape: f32[64,32], index: 2, kind: input, shape index: {}]
  %s3 = inlined_call_operand.vmem [shape: f32[32,32], index: 3, kind: input, shape index: {}]
  %s4 = inlined_call_operand.vmem [shape: f32[1,32], index: 4, kind: input, shape index: {}]
  %s5 = inlined_call_operand.vmem [shape: f32[1,32], index: 5, kind: input, shape index: {}]
  %s6 = inlined_call_operand.hbm [shape: f32[64,64], index: 6, kind: output, shape index: {0}]
  %s7 = inlined_call_operand.vmem [shape: f32[64,8], index: 7, kind: output, shape index: {1}]
  %8 = xla_tuple %s6, %s7
  %s9 = sld [smem:[#allocation0]]
  $region46: #{tpu_custom_call.1} parent=0
    _
  %s11 = ssub.s32 1, %s9
  %s12 = scalar_select 0, %s11, %s9
  $region1: #{tpu_custom_call.1} parent=0
    #allocation2 [shape = 'u8[262144]{0}', space=vmem, size = 0x40000, scoped, tag = 'input window, operand 0, single buffered']
    #allocation3 [shape = 's32[1]{0}', space=sflag, size = 0x4, scoped, tag = 'scoped memory for tpu_custom_call.1']
    #allocation4 [shape = 's32[1]{0}', space=sflag, size = 0x4, scoped, tag = 'scoped memory for tpu_custom_call.1']
    #allocation5 [shape = 'u8[32768]{0}', space=vmem, size = 0x8000, scoped, tag = 'output window, operand 0, single buffered']
    %13 = vsyncpa [#allocation3], 0
    %14 = vsyncpa [#allocation4], 0
    // Predicated region
    $region2: #{tpu_custom_call.1} parent=1 // pred_check
      _
    $region3: #{tpu_custom_call.1} parent=1 // pred_check_branch
      %16 = sbr.rel (0) target = $region5
    $region4: #{tpu_custom_call.1} parent=1 // pred_region
      %s18 = ssub.s32 8192, 8192
      %19 = vsyncadd [#allocation3], %s18
      %s20 = sshll.u32 [#allocation2], 4
      %s21 = int_to_ptr.vmem [resolvable:$true] %s20
      %26 = dma.hbm_to_vmem [thread:$0]  %s0, 8192, %s21, [#allocation3], 128, 128, 8
    $region5: #{tpu_custom_call.1} parent=1 // pred_fallthru
      _
    // Predicated region
    $region6: #{tpu_custom_call.1} parent=1 // pred_check
      _
    $region7: #{tpu_custom_call.1} parent=1 // pred_check_branch
      %28 = sbr.rel (0) target = $region9
    $region8: #{tpu_custom_call.1} parent=1 // pred_region
      _
    $region9: #{tpu_custom_call.1} parent=1 // pred_fallthru
      _
    // Predicated region
    $region10: #{tpu_custom_call.1} parent=1 // pred_check
      _
    $region11: #{tpu_custom_call.1} parent=1 // pred_check_branch
      %30 = sbr.rel (0) target = $region13
    $region12: #{tpu_custom_call.1} parent=1 // pred_region
      _
    $region13: #{tpu_custom_call.1} parent=1 // pred_fallthru
      _
    // Predicated region
    $region14: #{tpu_custom_call.1} parent=1 // pred_check
      _
    $region15: #{tpu_custom_call.1} parent=1 // pred_check_branch
      %32 = sbr.rel (0) target = $region17
    $region16: #{tpu_custom_call.1} parent=1 // pred_region
      _
    $region17: #{tpu_custom_call.1} parent=1 // pred_fallthru
      _
    // Predicated region
    $region18: #{tpu_custom_call.1} parent=1 // pred_check
      _
    $region19: #{tpu_custom_call.1} parent=1 // pred_check_branch
      %34 = sbr.rel (0) target = $region21
    $region20: #{tpu_custom_call.1} parent=1 // pred_region
      _
    $region21: #{tpu_custom_call.1} parent=1 // pred_fallthru
      _
    // Predicated region
    $region22: #{tpu_custom_call.1} parent=1 // pred_check
      _
    $region23: #{tpu_custom_call.1} parent=1 // pred_check_branch
      %36 = sbr.rel (0) target = $region25
    $region24: #{tpu_custom_call.1} parent=1 // pred_region
      _
    $region25: #{tpu_custom_call.1} parent=1 // pred_fallthru
      _
    // Predicated region
    $region26: #{tpu_custom_call.1} parent=1 // pred_check
      _
    $region27: #{tpu_custom_call.1} parent=1 // pred_check_branch
      %38 = sbr.rel (0) target = $region29
    $region28: #{tpu_custom_call.1} parent=1 // pred_region
      %39 = dma.done [#allocation3], 8192
    $region29: #{tpu_custom_call.1} parent=1 // pred_fallthru
      _
    %v40 = vld [vmem:[#allocation2] sm:$0xff]
    %v41 = vld [vmem:[#allocation2 + $0x8] sm:$0xff]
    %v42 = vld [vmem:[#allocation2 + $0x10] sm:$0xff]
    %v43 = vld [vmem:[#allocation2 + $0x18] sm:$0xff]
    %v44 = vld [vmem:[#allocation2 + $0x20] sm:$0xff]
    %v45 = vld [vmem:[#allocation2 + $0x28] sm:$0xff]
    %v46 = vld [vmem:[#allocation2 + $0x30] sm:$0xff]
    %v47 = vld [vmem:[#allocation2 + $0x38] sm:$0xff]
    %v48 = vld [vmem:[#allocation2 + $0x40] sm:$0xff]
    %v49 = vld [vmem:[#allocation2 + $0x48] sm:$0xff]
    %v50 = vld [vmem:[#allocation2 + $0x50] sm:$0xff]
    %v51 = vld [vmem:[#allocation2 + $0x58] sm:$0xff]
    %v52 = vld [vmem:[#allocation2 + $0x60] sm:$0xff]
    %v53 = vld [vmem:[#allocation2 + $0x68] sm:$0xff]
    %v54 = vld [vmem:[#allocation2 + $0x70] sm:$0xff]
    %v55 = vld [vmem:[#allocation2 + $0x78] sm:$0xff]
    %v56 = vld [vmem:[#allocation2 + $0x80] sm:$0xff]
    %v57 = vld [vmem:[#allocation2 + $0x88] sm:$0xff]
    %v58 = vld [vmem:[#allocation2 + $0x90] sm:$0xff]
    %v59 = vld [vmem:[#allocation2 + $0x98] sm:$0xff]
    %v60 = vld [vmem:[#allocation2 + $0xa0] sm:$0xff]
    %v61 = vld [vmem:[#allocation2 + $0xa8] sm:$0xff]
    %v62 = vld [vmem:[#allocation2 + $0xb0] sm:$0xff]
    %v63 = vld [vmem:[#allocation2 + $0xb8] sm:$0xff]
    %v64 = vld [vmem:[#allocation2 + $0xc0] sm:$0xff]
    %v65 = vld [vmem:[#allocation2 + $0xc8] sm:$0xff]
    %v66 = vld [vmem:[#allocation2 + $0xd0] sm:$0xff]
    %v67 = vld [vmem:[#allocation2 + $0xd8] sm:$0xff]
    %v68 = vld [vmem:[#allocation2 + $0xe0] sm:$0xff]
    %v69 = vld [vmem:[#allocation2 + $0xe8] sm:$0xff]
    %v70 = vld [vmem:[#allocation2 + $0xf0] sm:$0xff]
    %v71 = vld [vmem:[#allocation2 + $0xf8] sm:$0xff]
    %v72 = vld [vmem:[#allocation2 + $0x100] sm:$0xff]
    %v73 = vld [vmem:[#allocation2 + $0x108] sm:$0xff]
    %v74 = vld [vmem:[#allocation2 + $0x110] sm:$0xff]
    %v75 = vld [vmem:[#allocation2 + $0x118] sm:$0xff]
    %v76 = vld [vmem:[#allocation2 + $0x120] sm:$0xff]
    %v77 = vld [vmem:[#allocation2 + $0x128] sm:$0xff]
    %v78 = vld [vmem:[#allocation2 + $0x130] sm:$0xff]
    %v79 = vld [vmem:[#allocation2 + $0x138] sm:$0xff]
    %v80 = vld [vmem:[#allocation2 + $0x140] sm:$0xff]
    %v81 = vld [vmem:[#allocation2 + $0x148] sm:$0xff]
    %v82 = vld [vmem:[#allocation2 + $0x150] sm:$0xff]
    %v83 = vld [vmem:[#allocation2 + $0x158] sm:$0xff]
    %v84 = vld [vmem:[#allocation2 + $0x160] sm:$0xff]
    %v85 = vld [vmem:[#allocation2 + $0x168] sm:$0xff]
    %v86 = vld [vmem:[#allocation2 + $0x170] sm:$0xff]
    %v87 = vld [vmem:[#allocation2 + $0x178] sm:$0xff]
    %v88 = vld [vmem:[#allocation2 + $0x180] sm:$0xff]
    %v89 = vld [vmem:[#allocation2 + $0x188] sm:$0xff]
    %v90 = vld [vmem:[#allocation2 + $0x190] sm:$0xff]
    %v91 = vld [vmem:[#allocation2 + $0x198] sm:$0xff]
    %v92 = vld [vmem:[#allocation2 + $0x1a0] sm:$0xff]
    %v93 = vld [vmem:[#allocation2 + $0x1a8] sm:$0xff]
    %v94 = vld [vmem:[#allocation2 + $0x1b0] sm:$0xff]
    %v95 = vld [vmem:[#allocation2 + $0x1b8] sm:$0xff]
    %v96 = vld [vmem:[#allocation2 + $0x1c0] sm:$0xff]
    %v97 = vld [vmem:[#allocation2 + $0x1c8] sm:$0xff]
    %v98 = vld [vmem:[#allocation2 + $0x1d0] sm:$0xff]
    %v99 = vld [vmem:[#allocation2 + $0x1d8] sm:$0xff]
    %v100 = vld [vmem:[#allocation2 + $0x1e0] sm:$0xff]
    %v101 = vld [vmem:[#allocation2 + $0x1e8] sm:$0xff]
    %v102 = vld [vmem:[#allocation2 + $0x1f0] sm:$0xff]
    %v103 = vld [vmem:[#allocation2 + $0x1f8] sm:$0xff]
    %v104 = vld [vmem:[%s2] sm:$0xff]
    %v105 = vld [vmem:[%s2 + $0x8] sm:$0xff]
    %v106 = vld [vmem:[%s2 + $0x10] sm:$0xff]
    %v107 = vld [vmem:[%s2 + $0x18] sm:$0xff]
    %v108 = vld [vmem:[%s2 + $0x20] sm:$0xff]
    %v109 = vld [vmem:[%s2 + $0x28] sm:$0xff]
    %v110 = vld [vmem:[%s2 + $0x30] sm:$0xff]
    %v111 = vld [vmem:[%s2 + $0x38] sm:$0xff]
    %v112 = vld [vmem:[%s1] sm:$0xff]
    %v113 = vld [vmem:[%s1 + $0x8] sm:$0xff]
    %v114 = vld [vmem:[%s1 + $0x10] sm:$0xff]
    %v115 = vld [vmem:[%s1 + $0x18] sm:$0xff]
    %v116 = vld [vmem:[%s1 + $0x20] sm:$0xff]
    %v117 = vld [vmem:[%s1 + $0x28] sm:$0xff]
    %v118 = vld [vmem:[%s1 + $0x30] sm:$0xff]
    %v119 = vld [vmem:[%s1 + $0x38] sm:$0xff]
    %v120 = vld [vmem:[%s3] sm:$0xff]
    %v121 = vld [vmem:[%s3 + $0x8] sm:$0xff]
    %v122 = vld [vmem:[%s3 + $0x10] sm:$0xff]
    %v123 = vld [vmem:[%s3 + $0x18] sm:$0xff]
    %v124 = vld [vmem:[%s4] sm:$0x1]
    %v126 = vlaneseq
    %v127 = vshrl.u32 %v126, 7
    %v128 = vsub.s32 0, %v127
    %v129 = vrot.slane %v124, %v128
    %vm131 = vcmask 261120
    %v133 = vsel %vm131, %v112, 0
    %v136 = vsel %vm131, %v113, 0
    %v139 = vsel %vm131, %v114, 0
    %v142 = vsel %vm131, %v115, 0
    %v145 = vsel %vm131, %v116, 0
    %v148 = vsel %vm131, %v117, 0
    %v151 = vsel %vm131, %v118, 0
    %v154 = vsel %vm131, %v119, 0
    %156 = vmatprep.subr.mxu0 0.0
    %157 = vmatpush1.msra.mxu0 %v120
    %158 = vmatprep.subr.mxu0 0.0
    %159 = vmatpush1.msra.mxu0 %v121
    %160 = vmatprep.subr.mxu0 0.0
    %161 = vmatpush1.msra.mxu0 %v122
    %162 = vmatprep.subr.mxu0 0.0
    %163 = vmatpush1.msra.mxu0 %v123
    %164 = vmatprep.subr.mxu0 0.0
    %165 = vmatpush1.msra.mxu0 0.0
    %166 = vmatprep.subr.mxu0 0.0
    %167 = vmatpush1.msra.mxu0 0.0
    %168 = vmatprep.subr.mxu0 0.0
    %169 = vmatpush1.msra.mxu0 0.0
    %170 = vmatprep.subr.mxu0 0.0
    %171 = vmatpush1.msra.mxu0 0.0
    %172 = vmatprep.subr.mxu0 0.0
    %173 = vmatpush1.msra.mxu0 0.0
    %174 = vmatprep.subr.mxu0 0.0
    %175 = vmatpush1.msra.mxu0 0.0
    %176 = vmatprep.subr.mxu0 0.0
    %177 = vmatpush1.msra.mxu0 0.0
    %178 = vmatprep.subr.mxu0 0.0
    %179 = vmatpush1.msra.mxu0 0.0
    %180 = vmatprep.subr.mxu0 0.0
    %181 = vmatpush1.msra.mxu0 0.0
    %182 = vmatprep.subr.mxu0 0.0
    %183 = vmatpush1.msra.mxu0 0.0
    %184 = vmatprep.subr.mxu0 0.0
    %185 = vmatpush1.msra.mxu0 0.0
    %186 = vmatprep.subr.mxu0 0.0
    %187 = vmatpush1.msra.mxu0 0.0
    %188 = vmatprep.subr.mxu0 0.0
    %189 = vmatpush1.msra.mxu0 0.0
    %190 = vmatprep.subr.mxu0 0.0
    %191 = vmatpush1.msra.mxu0 0.0
    %192 = vmatprep.subr.mxu0 0.0
    %193 = vmatpush1.msra.mxu0 0.0
    %194 = vmatprep.subr.mxu0 0.0
    %195 = vmatpush1.msra.mxu0 0.0
    %196 = vmatprep.subr.mxu0 0.0
    %197 = vmatpush1.msra.mxu0 0.0
    %198 = vmatprep.subr.mxu0 0.0
    %199 = vmatpush1.msra.mxu0 0.0
    %200 = vmatprep.subr.mxu0 0.0
    %201 = vmatpush1.msra.mxu0 0.0
    %202 = vmatprep.subr.mxu0 0.0
    %203 = vmatpush1.msra.mxu0 0.0
    %204 = vmatprep.subr.mxu0 0.0
    %205 = vmatpush1.msra.mxu0 0.0
    %206 = vmatprep.subr.mxu0 0.0
    %207 = vmatpush1.msra.mxu0 0.0
    %208 = vmatprep.subr.mxu0 0.0
    %209 = vmatpush1.msra.mxu0 0.0
    %210 = vmatprep.subr.mxu0 0.0
    %211 = vmatpush1.msra.mxu0 0.0
    %212 = vmatprep.subr.mxu0 0.0
    %213 = vmatpush1.msra.mxu0 0.0
    %214 = vmatprep.subr.mxu0 0.0
    %215 = vmatpush1.msra.mxu0 0.0
    %216 = vmatprep.subr.mxu0 0.0
    %217 = vmatpush1.msra.mxu0 0.0
    %218 = vmatprep.subr.mxu0 0.0
    %219 = vmatpush1.msra.mxu0 0.0
    %220 = vmatprep.mubr.f32.mxu0 0.0
    %221 = vmatmul.mubr.f32.gmra.mrb[0].mxu0 %v133
    %v222 = vpop.f32.mrb[0].mxu0
    %v223 = vadd.f32 %v129, %v222
    %v224 = vpop.f32.mrb[0].mxu0
    %225 = vmatprep.mubr.f32.mxu0 0.0
    %226 = vmatmul.mubr.f32.gmra.mrb[0].mxu0 %v136
    %v227 = vpop.f32.mrb[0].mxu0
    %v228 = vadd.f32 %v129, %v227
    %v229 = vpop.f32.mrb[0].mxu0
    %230 = vmatprep.mubr.f32.mxu0 0.0
    %231 = vmatmul.mubr.f32.gmra.mrb[0].mxu0 %v139
    %v232 = vpop.f32.mrb[0].mxu0
    %v233 = vadd.f32 %v129, %v232
    %v234 = vpop.f32.mrb[0].mxu0
    %235 = vmatprep.mubr.f32.mxu0 0.0
    %236 = vmatmul.mubr.f32.gmra.mrb[0].mxu0 %v142
    %v237 = vpop.f32.mrb[0].mxu0
    %v238 = vadd.f32 %v129, %v237
    %v239 = vpop.f32.mrb[0].mxu0
    %240 = vmatprep.mubr.f32.mxu0 0.0
    %241 = vmatmul.mubr.f32.gmra.mrb[0].mxu0 %v145
    %v242 = vpop.f32.mrb[0].mxu0
    %v243 = vadd.f32 %v129, %v242
    %v244 = vpop.f32.mrb[0].mxu0
    %245 = vmatprep.mubr.f32.mxu0 0.0
    %246 = vmatmul.mubr.f32.gmra.mrb[0].mxu0 %v148
    %v247 = vpop.f32.mrb[0].mxu0
    %v248 = vadd.f32 %v129, %v247
    %v249 = vpop.f32.mrb[0].mxu0
    %250 = vmatprep.mubr.f32.mxu0 0.0
    %251 = vmatmul.mubr.f32.gmra.mrb[0].mxu0 %v151
    %v252 = vpop.f32.mrb[0].mxu0
    %v253 = vadd.f32 %v129, %v252
    %v254 = vpop.f32.mrb[0].mxu0
    %255 = vmatprep.mubr.f32.mxu0 0.0
    %256 = vmatmul.mubr.f32.gmra.mrb[0].mxu0 %v154
    %v257 = vpop.f32.mrb[0].mxu0
    %v258 = vadd.f32 %v129, %v257
    %v259 = vpop.f32.mrb[0].mxu0
    %260 = vdwg.mxu0
    %v269 = vcombine.high %v223, %v223
    %v271 = vunpack.c.l.s4 1966171168
    %v272 = vunpack.c.0.s8 %v271
    %v273 = vlaneseq
    %v274 = vshrl.u32 %v273, 7
    %v275 = vsub.s32 %v272, %v274
    %v276 = vrot.slane %v223, %v275
    %v278 = vunpack.c.l.s4 1966171168
    %v279 = vunpack.c.0.s8 %v278
    %v280 = vlaneseq
    %v281 = vshrl.u32 %v280, 7
    %v282 = vsub.s32 %v279, %v281
    %v283 = vrot.slane %v269, %v282
    %v284 = vcombine.high %v276, %v276
    %v285 = vcombine.high %v283, %v283
    %v287 = vunpack.c.l.s4 1966171168
    %v288 = vunpack.c.0.s8 %v287
    %v289 = vlaneseq
    %v290 = vshrl.u32 %v289, 7
    %v291 = vsub.s32 %v288, %v290
    %v292 = vrot.slane %v276, %v291
    %v294 = vunpack.c.l.s4 1966171168
    %v295 = vunpack.c.0.s8 %v294
    %v296 = vlaneseq
    %v297 = vshrl.u32 %v296, 7
    %v298 = vsub.s32 %v295, %v297
    %v299 = vrot.slane %v283, %v298
    %v301 = vunpack.c.l.s4 1966171168
    %v302 = vunpack.c.0.s8 %v301
    %v303 = vlaneseq
    %v304 = vshrl.u32 %v303, 7
    %v305 = vsub.s32 %v302, %v304
    %v306 = vrot.slane %v284, %v305
    %v308 = vunpack.c.l.s4 1966171168
    %v309 = vunpack.c.0.s8 %v308
    %v310 = vlaneseq
    %v311 = vshrl.u32 %v310, 7
    %v312 = vsub.s32 %v309, %v311
    %v313 = vrot.slane %v285, %v312
    %v314 = vcombine.high %v292, %v292
    %v315 = vcombine.high %v299, %v299
    %v316 = vcombine.high %v306, %v306
    %v317 = vcombine.high %v313, %v313
    %v318 = vcombine.high %v228, %v228
    %v320 = vunpack.c.l.s4 1966171168
    %v321 = vunpack.c.0.s8 %v320
    %v322 = vlaneseq
    %v323 = vshrl.u32 %v322, 7
    %v324 = vsub.s32 %v321, %v323
    %v325 = vrot.slane %v228, %v324
    %v327 = vunpack.c.l.s4 1966171168
    %v328 = vunpack.c.0.s8 %v327
    %v329 = vlaneseq
    %v330 = vshrl.u32 %v329, 7
    %v331 = vsub.s32 %v328, %v330
    %v332 = vrot.slane %v318, %v331
    %v333 = vcombine.high %v325, %v325
    %v334 = vcombine.high %v332, %v332
    %v336 = vunpack.c.l.s4 1966171168
    %v337 = vunpack.c.0.s8 %v336
    %v338 = vlaneseq
    %v339 = vshrl.u32 %v338, 7
    %v340 = vsub.s32 %v337, %v339
    %v341 = vrot.slane %v325, %v340
    %v343 = vunpack.c.l.s4 1966171168
    %v344 = vunpack.c.0.s8 %v343
    %v345 = vlaneseq
    %v346 = vshrl.u32 %v345, 7
    %v347 = vsub.s32 %v344, %v346
    %v348 = vrot.slane %v332, %v347
    %v350 = vunpack.c.l.s4 1966171168
    %v351 = vunpack.c.0.s8 %v350
    %v352 = vlaneseq
    %v353 = vshrl.u32 %v352, 7
    %v354 = vsub.s32 %v351, %v353
    %v355 = vrot.slane %v333, %v354
    %v357 = vunpack.c.l.s4 1966171168
    %v358 = vunpack.c.0.s8 %v357
    %v359 = vlaneseq
    %v360 = vshrl.u32 %v359, 7
    %v361 = vsub.s32 %v358, %v360
    %v362 = vrot.slane %v334, %v361
    %v363 = vcombine.high %v341, %v341
    %v364 = vcombine.high %v348, %v348
    %v365 = vcombine.high %v355, %v355
    %v366 = vcombine.high %v362, %v362
    %v367 = vcombine.high %v233, %v233
    %v369 = vunpack.c.l.s4 1966171168
    %v370 = vunpack.c.0.s8 %v369
    %v371 = vlaneseq
    %v372 = vshrl.u32 %v371, 7
    %v373 = vsub.s32 %v370, %v372
    %v374 = vrot.slane %v233, %v373
    %v376 = vunpack.c.l.s4 1966171168
    %v377 = vunpack.c.0.s8 %v376
    %v378 = vlaneseq
    %v379 = vshrl.u32 %v378, 7
    %v380 = vsub.s32 %v377, %v379
    %v381 = vrot.slane %v367, %v380
    %v382 = vcombine.high %v374, %v374
    %v383 = vcombine.high %v381, %v381
    %v385 = vunpack.c.l.s4 1966171168
    %v386 = vunpack.c.0.s8 %v385
    %v387 = vlaneseq
    %v388 = vshrl.u32 %v387, 7
    %v389 = vsub.s32 %v386, %v388
    %v390 = vrot.slane %v374, %v389
    %v392 = vunpack.c.l.s4 1966171168
    %v393 = vunpack.c.0.s8 %v392
    %v394 = vlaneseq
    %v395 = vshrl.u32 %v394, 7
    %v396 = vsub.s32 %v393, %v395
    %v397 = vrot.slane %v381, %v396
    %v399 = vunpack.c.l.s4 1966171168
    %v400 = vunpack.c.0.s8 %v399
    %v401 = vlaneseq
    %v402 = vshrl.u32 %v401, 7
    %v403 = vsub.s32 %v400, %v402
    %v404 = vrot.slane %v382, %v403
    %v406 = vunpack.c.l.s4 1966171168
    %v407 = vunpack.c.0.s8 %v406
    %v408 = vlaneseq
    %v409 = vshrl.u32 %v408, 7
    %v410 = vsub.s32 %v407, %v409
    %v411 = vrot.slane %v383, %v410
    %v412 = vcombine.high %v390, %v390
    %v413 = vcombine.high %v397, %v397
    %v414 = vcombine.high %v404, %v404
    %v415 = vcombine.high %v411, %v411
    %v416 = vcombine.high %v238, %v238
    %v418 = vunpack.c.l.s4 1966171168
    %v419 = vunpack.c.0.s8 %v418
    %v420 = vlaneseq
    %v421 = vshrl.u32 %v420, 7
    %v422 = vsub.s32 %v419, %v421
    %v423 = vrot.slane %v238, %v422
    %v425 = vunpack.c.l.s4 1966171168
    %v426 = vunpack.c.0.s8 %v425
    %v427 = vlaneseq
    %v428 = vshrl.u32 %v427, 7
    %v429 = vsub.s32 %v426, %v428
    %v430 = vrot.slane %v416, %v429
    %v431 = vcombine.high %v423, %v423
    %v432 = vcombine.high %v430, %v430
    %v434 = vunpack.c.l.s4 1966171168
    %v435 = vunpack.c.0.s8 %v434
    %v436 = vlaneseq
    %v437 = vshrl.u32 %v436, 7
    %v438 = vsub.s32 %v435, %v437
    %v439 = vrot.slane %v423, %v438
    %v441 = vunpack.c.l.s4 1966171168
    %v442 = vunpack.c.0.s8 %v441
    %v443 = vlaneseq
    %v444 = vshrl.u32 %v443, 7
    %v445 = vsub.s32 %v442, %v444
    %v446 = vrot.slane %v430, %v445
    %v448 = vunpack.c.l.s4 1966171168
    %v449 = vunpack.c.0.s8 %v448
    %v450 = vlaneseq
    %v451 = vshrl.u32 %v450, 7
    %v452 = vsub.s32 %v449, %v451
    %v453 = vrot.slane %v431, %v452
    %v455 = vunpack.c.l.s4 1966171168
    %v456 = vunpack.c.0.s8 %v455
    %v457 = vlaneseq
    %v458 = vshrl.u32 %v457, 7
    %v459 = vsub.s32 %v456, %v458
    %v460 = vrot.slane %v432, %v459
    %v461 = vcombine.high %v439, %v439
    %v462 = vcombine.high %v446, %v446
    %v463 = vcombine.high %v453, %v453
    %v464 = vcombine.high %v460, %v460
    %v465 = vcombine.high %v243, %v243
    %v467 = vunpack.c.l.s4 1966171168
    %v468 = vunpack.c.0.s8 %v467
    %v469 = vlaneseq
    %v470 = vshrl.u32 %v469, 7
    %v471 = vsub.s32 %v468, %v470
    %v472 = vrot.slane %v243, %v471
    %v474 = vunpack.c.l.s4 1966171168
    %v475 = vunpack.c.0.s8 %v474
    %v476 = vlaneseq
    %v477 = vshrl.u32 %v476, 7
    %v478 = vsub.s32 %v475, %v477
    %v479 = vrot.slane %v465, %v478
    %v480 = vcombine.high %v472, %v472
    %v481 = vcombine.high %v479, %v479
    %v483 = vunpack.c.l.s4 1966171168
    %v484 = vunpack.c.0.s8 %v483
    %v485 = vlaneseq
    %v486 = vshrl.u32 %v485, 7
    %v487 = vsub.s32 %v484, %v486
    %v488 = vrot.slane %v472, %v487
    %v490 = vunpack.c.l.s4 1966171168
    %v491 = vunpack.c.0.s8 %v490
    %v492 = vlaneseq
    %v493 = vshrl.u32 %v492, 7
    %v494 = vsub.s32 %v491, %v493
    %v495 = vrot.slane %v479, %v494
    %v497 = vunpack.c.l.s4 1966171168
    %v498 = vunpack.c.0.s8 %v497
    %v499 = vlaneseq
    %v500 = vshrl.u32 %v499, 7
    %v501 = vsub.s32 %v498, %v500
    %v502 = vrot.slane %v480, %v501
    %v504 = vunpack.c.l.s4 1966171168
    %v505 = vunpack.c.0.s8 %v504
    %v506 = vlaneseq
    %v507 = vshrl.u32 %v506, 7
    %v508 = vsub.s32 %v505, %v507
    %v509 = vrot.slane %v481, %v508
    %v510 = vcombine.high %v488, %v488
    %v511 = vcombine.high %v495, %v495
    %v512 = vcombine.high %v502, %v502
    %v513 = vcombine.high %v509, %v509
    %v514 = vcombine.high %v248, %v248
    %v516 = vunpack.c.l.s4 1966171168
    %v517 = vunpack.c.0.s8 %v516
    %v518 = vlaneseq
    %v519 = vshrl.u32 %v518, 7
    %v520 = vsub.s32 %v517, %v519
    %v521 = vrot.slane %v248, %v520
    %v523 = vunpack.c.l.s4 1966171168
    %v524 = vunpack.c.0.s8 %v523
    %v525 = vlaneseq
    %v526 = vshrl.u32 %v525, 7
    %v527 = vsub.s32 %v524, %v526
    %v528 = vrot.slane %v514, %v527
    %v529 = vcombine.high %v521, %v521
    %v530 = vcombine.high %v528, %v528
    %v532 = vunpack.c.l.s4 1966171168
    %v533 = vunpack.c.0.s8 %v532
    %v534 = vlaneseq
    %v535 = vshrl.u32 %v534, 7
    %v536 = vsub.s32 %v533, %v535
    %v537 = vrot.slane %v521, %v536
    %v539 = vunpack.c.l.s4 1966171168
    %v540 = vunpack.c.0.s8 %v539
    %v541 = vlaneseq
    %v542 = vshrl.u32 %v541, 7
    %v543 = vsub.s32 %v540, %v542
    %v544 = vrot.slane %v528, %v543
    %v546 = vunpack.c.l.s4 1966171168
    %v547 = vunpack.c.0.s8 %v546
    %v548 = vlaneseq
    %v549 = vshrl.u32 %v548, 7
    %v550 = vsub.s32 %v547, %v549
    %v551 = vrot.slane %v529, %v550
    %v553 = vunpack.c.l.s4 1966171168
    %v554 = vunpack.c.0.s8 %v553
    %v555 = vlaneseq
    %v556 = vshrl.u32 %v555, 7
    %v557 = vsub.s32 %v554, %v556
    %v558 = vrot.slane %v530, %v557
    %v559 = vcombine.high %v537, %v537
    %v560 = vcombine.high %v544, %v544
    %v561 = vcombine.high %v551, %v551
    %v562 = vcombine.high %v558, %v558
    %v563 = vcombine.high %v253, %v253
    %v565 = vunpack.c.l.s4 1966171168
    %v566 = vunpack.c.0.s8 %v565
    %v567 = vlaneseq
    %v568 = vshrl.u32 %v567, 7
    %v569 = vsub.s32 %v566, %v568
    %v570 = vrot.slane %v253, %v569
    %v572 = vunpack.c.l.s4 1966171168
    %v573 = vunpack.c.0.s8 %v572
    %v574 = vlaneseq
    %v575 = vshrl.u32 %v574, 7
    %v576 = vsub.s32 %v573, %v575
    %v577 = vrot.slane %v563, %v576
    %v578 = vcombine.high %v570, %v570
    %v579 = vcombine.high %v577, %v577
    %v581 = vunpack.c.l.s4 1966171168
    %v582 = vunpack.c.0.s8 %v581
    %v583 = vlaneseq
    %v584 = vshrl.u32 %v583, 7
    %v585 = vsub.s32 %v582, %v584
    %v586 = vrot.slane %v570, %v585
    %v588 = vunpack.c.l.s4 1966171168
    %v589 = vunpack.c.0.s8 %v588
    %v590 = vlaneseq
    %v591 = vshrl.u32 %v590, 7
    %v592 = vsub.s32 %v589, %v591
    %v593 = vrot.slane %v577, %v592
    %v595 = vunpack.c.l.s4 1966171168
    %v596 = vunpack.c.0.s8 %v595
    %v597 = vlaneseq
    %v598 = vshrl.u32 %v597, 7
    %v599 = vsub.s32 %v596, %v598
    %v600 = vrot.slane %v578, %v599
    %v602 = vunpack.c.l.s4 1966171168
    %v603 = vunpack.c.0.s8 %v602
    %v604 = vlaneseq
    %v605 = vshrl.u32 %v604, 7
    %v606 = vsub.s32 %v603, %v605
    %v607 = vrot.slane %v579, %v606
    %v608 = vcombine.high %v586, %v586
    %v609 = vcombine.high %v593, %v593
    %v610 = vcombine.high %v600, %v600
    %v611 = vcombine.high %v607, %v607
    %v612 = vcombine.high %v258, %v258
    %v614 = vunpack.c.l.s4 1966171168
    %v615 = vunpack.c.0.s8 %v614
    %v616 = vlaneseq
    %v617 = vshrl.u32 %v616, 7
    %v618 = vsub.s32 %v615, %v617
    %v619 = vrot.slane %v258, %v618
    %v621 = vunpack.c.l.s4 1966171168
    %v622 = vunpack.c.0.s8 %v621
    %v623 = vlaneseq
    %v624 = vshrl.u32 %v623, 7
    %v625 = vsub.s32 %v622, %v624
    %v626 = vrot.slane %v612, %v625
    %v627 = vcombine.high %v619, %v619
    %v628 = vcombine.high %v626, %v626
    %v630 = vunpack.c.l.s4 1966171168
    %v631 = vunpack.c.0.s8 %v630
    %v632 = vlaneseq
    %v633 = vshrl.u32 %v632, 7
    %v634 = vsub.s32 %v631, %v633
    %v635 = vrot.slane %v619, %v634
    %v637 = vunpack.c.l.s4 1966171168
    %v638 = vunpack.c.0.s8 %v637
    %v639 = vlaneseq
    %v640 = vshrl.u32 %v639, 7
    %v641 = vsub.s32 %v638, %v640
    %v642 = vrot.slane %v626, %v641
    %v644 = vunpack.c.l.s4 1966171168
    %v645 = vunpack.c.0.s8 %v644
    %v646 = vlaneseq
    %v647 = vshrl.u32 %v646, 7
    %v648 = vsub.s32 %v645, %v647
    %v649 = vrot.slane %v627, %v648
    %v651 = vunpack.c.l.s4 1966171168
    %v652 = vunpack.c.0.s8 %v651
    %v653 = vlaneseq
    %v654 = vshrl.u32 %v653, 7
    %v655 = vsub.s32 %v652, %v654
    %v656 = vrot.slane %v628, %v655
    %v657 = vcombine.high %v635, %v635
    %v658 = vcombine.high %v642, %v642
    %v659 = vcombine.high %v649, %v649
    %v660 = vcombine.high %v656, %v656
    %v661 = vlaneseq
    %v662 = vshrl.u32 %v661, 7
    %v663 = vsub.s32 0, %v662
    %v664 = vrot.slane %v292, %v663
    %v665 = vlaneseq
    %v666 = vshrl.u32 %v665, 7
    %v667 = vsub.s32 0, %v666
    %v668 = vrot.slane %v306, %v667
    %v669 = vlaneseq
    %v670 = vshrl.u32 %v669, 7
    %v671 = vsub.s32 0, %v670
    %v672 = vrot.slane %v314, %v671
    %v673 = vlaneseq
    %v674 = vshrl.u32 %v673, 7
    %v675 = vsub.s32 0, %v674
    %v676 = vrot.slane %v316, %v675
    %v677 = vlaneseq
    %v678 = vshrl.u32 %v677, 7
    %v679 = vsub.s32 0, %v678
    %v680 = vrot.slane %v299, %v679
    %v681 = vlaneseq
    %v682 = vshrl.u32 %v681, 7
    %v683 = vsub.s32 0, %v682
    %v684 = vrot.slane %v313, %v683
    %v685 = vlaneseq
    %v686 = vshrl.u32 %v685, 7
    %v687 = vsub.s32 0, %v686
    %v688 = vrot.slane %v315, %v687
    %v689 = vlaneseq
    %v690 = vshrl.u32 %v689, 7
    %v691 = vsub.s32 0, %v690
    %v692 = vrot.slane %v317, %v691
    %v693 = vlaneseq
    %v694 = vshrl.u32 %v693, 7
    %v695 = vsub.s32 0, %v694
    %v696 = vrot.slane %v341, %v695
    %v697 = vlaneseq
    %v698 = vshrl.u32 %v697, 7
    %v699 = vsub.s32 0, %v698
    %v700 = vrot.slane %v355, %v699
    %v701 = vlaneseq
    %v702 = vshrl.u32 %v701, 7
    %v703 = vsub.s32 0, %v702
    %v704 = vrot.slane %v363, %v703
    %v705 = vlaneseq
    %v706 = vshrl.u32 %v705, 7
    %v707 = vsub.s32 0, %v706
    %v708 = vrot.slane %v365, %v707
    %v709 = vlaneseq
    %v710 = vshrl.u32 %v709, 7
    %v711 = vsub.s32 0, %v710
    %v712 = vrot.slane %v348, %v711
    %v713 = vlaneseq
    %v714 = vshrl.u32 %v713, 7
    %v715 = vsub.s32 0, %v714
    %v716 = vrot.slane %v362, %v715
    %v717 = vlaneseq
    %v718 = vshrl.u32 %v717, 7
    %v719 = vsub.s32 0, %v718
    %v720 = vrot.slane %v364, %v719
    %v721 = vlaneseq
    %v722 = vshrl.u32 %v721, 7
    %v723 = vsub.s32 0, %v722
    %v724 = vrot.slane %v366, %v723
    %v725 = vlaneseq
    %v726 = vshrl.u32 %v725, 7
    %v727 = vsub.s32 0, %v726
    %v728 = vrot.slane %v390, %v727
    %v729 = vlaneseq
    %v730 = vshrl.u32 %v729, 7
    %v731 = vsub.s32 0, %v730
    %v732 = vrot.slane %v404, %v731
    %v733 = vlaneseq
    %v734 = vshrl.u32 %v733, 7
    %v735 = vsub.s32 0, %v734
    %v736 = vrot.slane %v412, %v735
    %v737 = vlaneseq
    %v738 = vshrl.u32 %v737, 7
    %v739 = vsub.s32 0, %v738
    %v740 = vrot.slane %v414, %v739
    %v741 = vlaneseq
    %v742 = vshrl.u32 %v741, 7
    %v743 = vsub.s32 0, %v742
    %v744 = vrot.slane %v397, %v743
    %v745 = vlaneseq
    %v746 = vshrl.u32 %v745, 7
    %v747 = vsub.s32 0, %v746
    %v748 = vrot.slane %v411, %v747
    %v749 = vlaneseq
    %v750 = vshrl.u32 %v749, 7
    %v751 = vsub.s32 0, %v750
    %v752 = vrot.slane %v413, %v751
    %v753 = vlaneseq
    %v754 = vshrl.u32 %v753, 7
    %v755 = vsub.s32 0, %v754
    %v756 = vrot.slane %v415, %v755
    %v757 = vlaneseq
    %v758 = vshrl.u32 %v757, 7
    %v759 = vsub.s32 0, %v758
    %v760 = vrot.slane %v439, %v759
    %v761 = vlaneseq
    %v762 = vshrl.u32 %v761, 7
    %v763 = vsub.s32 0, %v762
    %v764 = vrot.slane %v453, %v763
    %v765 = vlaneseq
    %v766 = vshrl.u32 %v765, 7
    %v767 = vsub.s32 0, %v766
    %v768 = vrot.slane %v461, %v767
    %v769 = vlaneseq
    %v770 = vshrl.u32 %v769, 7
    %v771 = vsub.s32 0, %v770
    %v772 = vrot.slane %v463, %v771
    %v773 = vlaneseq
    %v774 = vshrl.u32 %v773, 7
    %v775 = vsub.s32 0, %v774
    %v776 = vrot.slane %v446, %v775
    %v777 = vlaneseq
    %v778 = vshrl.u32 %v777, 7
    %v779 = vsub.s32 0, %v778
    %v780 = vrot.slane %v460, %v779
    %v781 = vlaneseq
    %v782 = vshrl.u32 %v781, 7
    %v783 = vsub.s32 0, %v782
    %v784 = vrot.slane %v462, %v783
    %v785 = vlaneseq
    %v786 = vshrl.u32 %v785, 7
    %v787 = vsub.s32 0, %v786
    %v788 = vrot.slane %v464, %v787
    %v789 = vlaneseq
    %v790 = vshrl.u32 %v789, 7
    %v791 = vsub.s32 0, %v790
    %v792 = vrot.slane %v488, %v791
    %v793 = vlaneseq
    %v794 = vshrl.u32 %v793, 7
    %v795 = vsub.s32 0, %v794
    %v796 = vrot.slane %v502, %v795
    %v797 = vlaneseq
    %v798 = vshrl.u32 %v797, 7
    %v799 = vsub.s32 0, %v798
    %v800 = vrot.slane %v510, %v799
    %v801 = vlaneseq
    %v802 = vshrl.u32 %v801, 7
    %v803 = vsub.s32 0, %v802
    %v804 = vrot.slane %v512, %v803
    %v805 = vlaneseq
    %v806 = vshrl.u32 %v805, 7
    %v807 = vsub.s32 0, %v806
    %v808 = vrot.slane %v495, %v807
    %v809 = vlaneseq
    %v810 = vshrl.u32 %v809, 7
    %v811 = vsub.s32 0, %v810
    %v812 = vrot.slane %v509, %v811
    %v813 = vlaneseq
    %v814 = vshrl.u32 %v813, 7
    %v815 = vsub.s32 0, %v814
    %v816 = vrot.slane %v511, %v815
    %v817 = vlaneseq
    %v818 = vshrl.u32 %v817, 7
    %v819 = vsub.s32 0, %v818
    %v820 = vrot.slane %v513, %v819
    %v821 = vlaneseq
    %v822 = vshrl.u32 %v821, 7
    %v823 = vsub.s32 0, %v822
    %v824 = vrot.slane %v537, %v823
    %v825 = vlaneseq
    %v826 = vshrl.u32 %v825, 7
    %v827 = vsub.s32 0, %v826
    %v828 = vrot.slane %v551, %v827
    %v829 = vlaneseq
    %v830 = vshrl.u32 %v829, 7
    %v831 = vsub.s32 0, %v830
    %v832 = vrot.slane %v559, %v831
    %v833 = vlaneseq
    %v834 = vshrl.u32 %v833, 7
    %v835 = vsub.s32 0, %v834
    %v836 = vrot.slane %v561, %v835
    %v837 = vlaneseq
    %v838 = vshrl.u32 %v837, 7
    %v839 = vsub.s32 0, %v838
    %v840 = vrot.slane %v544, %v839
    %v841 = vlaneseq
    %v842 = vshrl.u32 %v841, 7
    %v843 = vsub.s32 0, %v842
    %v844 = vrot.slane %v558, %v843
    %v845 = vlaneseq
    %v846 = vshrl.u32 %v845, 7
    %v847 = vsub.s32 0, %v846
    %v848 = vrot.slane %v560, %v847
    %v849 = vlaneseq
    %v850 = vshrl.u32 %v849, 7
    %v851 = vsub.s32 0, %v850
    %v852 = vrot.slane %v562, %v851
    %v853 = vlaneseq
    %v854 = vshrl.u32 %v853, 7
    %v855 = vsub.s32 0, %v854
    %v856 = vrot.slane %v586, %v855
    %v857 = vlaneseq
    %v858 = vshrl.u32 %v857, 7
    %v859 = vsub.s32 0, %v858
    %v860 = vrot.slane %v600, %v859
    %v861 = vlaneseq
    %v862 = vshrl.u32 %v861, 7
    %v863 = vsub.s32 0, %v862
    %v864 = vrot.slane %v608, %v863
    %v865 = vlaneseq
    %v866 = vshrl.u32 %v865, 7
    %v867 = vsub.s32 0, %v866
    %v868 = vrot.slane %v610, %v867
    %v869 = vlaneseq
    %v870 = vshrl.u32 %v869, 7
    %v871 = vsub.s32 0, %v870
    %v872 = vrot.slane %v593, %v871
    %v873 = vlaneseq
    %v874 = vshrl.u32 %v873, 7
    %v875 = vsub.s32 0, %v874
    %v876 = vrot.slane %v607, %v875
    %v877 = vlaneseq
    %v878 = vshrl.u32 %v877, 7
    %v879 = vsub.s32 0, %v878
    %v880 = vrot.slane %v609, %v879
    %v881 = vlaneseq
    %v882 = vshrl.u32 %v881, 7
    %v883 = vsub.s32 0, %v882
    %v884 = vrot.slane %v611, %v883
    %v885 = vlaneseq
    %v886 = vshrl.u32 %v885, 7
    %v887 = vsub.s32 0, %v886
    %v888 = vrot.slane %v635, %v887
    %v889 = vlaneseq
    %v890 = vshrl.u32 %v889, 7
    %v891 = vsub.s32 0, %v890
    %v892 = vrot.slane %v649, %v891
    %v893 = vlaneseq
    %v894 = vshrl.u32 %v893, 7
    %v895 = vsub.s32 0, %v894
    %v896 = vrot.slane %v657, %v895
    %v897 = vlaneseq
    %v898 = vshrl.u32 %v897, 7
    %v899 = vsub.s32 0, %v898
    %v900 = vrot.slane %v659, %v899
    %v901 = vlaneseq
    %v902 = vshrl.u32 %v901, 7
    %v903 = vsub.s32 0, %v902
    %v904 = vrot.slane %v642, %v903
    %v905 = vlaneseq
    %v906 = vshrl.u32 %v905, 7
    %v907 = vsub.s32 0, %v906
    %v908 = vrot.slane %v656, %v907
    %v909 = vlaneseq
    %v910 = vshrl.u32 %v909, 7
    %v911 = vsub.s32 0, %v910
    %v912 = vrot.slane %v658, %v911
    %v913 = vlaneseq
    %v914 = vshrl.u32 %v913, 7
    %v915 = vsub.s32 0, %v914
    %v916 = vrot.slane %v660, %v915
    %vm981 = vcmask 523264
    %v983 = vsel %vm981, %v40, 0
    %v986 = vsel %vm981, %v41, 0
    %v989 = vsel %vm981, %v42, 0
    %v992 = vsel %vm981, %v43, 0
    %v995 = vsel %vm981, %v44, 0
    %v998 = vsel %vm981, %v45, 0
    %v1001 = vsel %vm981, %v46, 0
    %v1004 = vsel %vm981, %v47, 0
    %v1007 = vsel %vm981, %v48, 0
    %v1010 = vsel %vm981, %v49, 0
    %v1013 = vsel %vm981, %v50, 0
    %v1016 = vsel %vm981, %v51, 0
    %v1019 = vsel %vm981, %v52, 0
    %v1022 = vsel %vm981, %v53, 0
    %v1025 = vsel %vm981, %v54, 0
    %v1028 = vsel %vm981, %v55, 0
    %v1031 = vsel %vm981, %v56, 0
    %v1034 = vsel %vm981, %v57, 0
    %v1037 = vsel %vm981, %v58, 0
    %v1040 = vsel %vm981, %v59, 0
    %v1043 = vsel %vm981, %v60, 0
    %v1046 = vsel %vm981, %v61, 0
    %v1049 = vsel %vm981, %v62, 0
    %v1052 = vsel %vm981, %v63, 0
    %v1055 = vsel %vm981, %v64, 0
    %v1058 = vsel %vm981, %v65, 0
    %v1061 = vsel %vm981, %v66, 0
    %v1064 = vsel %vm981, %v67, 0
    %v1067 = vsel %vm981, %v68, 0
    %v1070 = vsel %vm981, %v69, 0
    %v1073 = vsel %vm981, %v70, 0
    %v1076 = vsel %vm981, %v71, 0
    %v1079 = vsel %vm981, %v72, 0
    %v1082 = vsel %vm981, %v73, 0
    %v1085 = vsel %vm981, %v74, 0
    %v1088 = vsel %vm981, %v75, 0
    %v1091 = vsel %vm981, %v76, 0
    %v1094 = vsel %vm981, %v77, 0
    %v1097 = vsel %vm981, %v78, 0
    %v1100 = vsel %vm981, %v79, 0
    %v1103 = vsel %vm981, %v80, 0
    %v1106 = vsel %vm981, %v81, 0
    %v1109 = vsel %vm981, %v82, 0
    %v1112 = vsel %vm981, %v83, 0
    %v1115 = vsel %vm981, %v84, 0
    %v1118 = vsel %vm981, %v85, 0
    %v1121 = vsel %vm981, %v86, 0
    %v1124 = vsel %vm981, %v87, 0
    %v1127 = vsel %vm981, %v88, 0
    %v1130 = vsel %vm981, %v89, 0
    %v1133 = vsel %vm981, %v90, 0
    %v1136 = vsel %vm981, %v91, 0
    %v1139 = vsel %vm981, %v92, 0
    %v1142 = vsel %vm981, %v93, 0
    %v1145 = vsel %vm981, %v94, 0
    %v1148 = vsel %vm981, %v95, 0
    %v1151 = vsel %vm981, %v96, 0
    %v1154 = vsel %vm981, %v97, 0
    %v1157 = vsel %vm981, %v98, 0
    %v1160 = vsel %vm981, %v99, 0
    %v1163 = vsel %vm981, %v100, 0
    %v1166 = vsel %vm981, %v101, 0
    %v1169 = vsel %vm981, %v102, 0
    %v1172 = vsel %vm981, %v103, 0
    %1174 = vmatprep.subr.mxu0 0.0
    %1175 = vmatpush1.msra.mxu0 %v104
    %1176 = vmatprep.subr.mxu0 0.0
    %1177 = vmatpush1.msra.mxu0 %v105
    %1178 = vmatprep.subr.mxu0 0.0
    %1179 = vmatpush1.msra.mxu0 %v106
    %1180 = vmatprep.subr.mxu0 0.0
    %1181 = vmatpush1.msra.mxu0 %v107
    %1182 = vmatprep.subr.mxu0 0.0
    %1183 = vmatpush1.msra.mxu0 %v108
    %1184 = vmatprep.subr.mxu0 0.0
    %1185 = vmatpush1.msra.mxu0 %v109
    %1186 = vmatprep.subr.mxu0 0.0
    %1187 = vmatpush1.msra.mxu0 %v110
    %1188 = vmatprep.subr.mxu0 0.0
    %1189 = vmatpush1.msra.mxu0 %v111
    %1190 = vmatprep.subr.mxu0 0.0
    %1191 = vmatpush1.msra.mxu0 0.0
    %1192 = vmatprep.subr.mxu0 0.0
    %1193 = vmatpush1.msra.mxu0 0.0
    %1194 = vmatprep.subr.mxu0 0.0
    %1195 = vmatpush1.msra.mxu0 0.0
    %1196 = vmatprep.subr.mxu0 0.0
    %1197 = vmatpush1.msra.mxu0 0.0
    %1198 = vmatprep.subr.mxu0 0.0
    %1199 = vmatpush1.msra.mxu0 0.0
    %1200 = vmatprep.subr.mxu0 0.0
    %1201 = vmatpush1.msra.mxu0 0.0
    %1202 = vmatprep.subr.mxu0 0.0
    %1203 = vmatpush1.msra.mxu0 0.0
    %1204 = vmatprep.subr.mxu0 0.0
    %1205 = vmatpush1.msra.mxu0 0.0
    %1206 = vmatprep.subr.mxu0 0.0
    %1207 = vmatpush1.msra.mxu0 0.0
    %1208 = vmatprep.subr.mxu0 0.0
    %1209 = vmatpush1.msra.mxu0 0.0
    %1210 = vmatprep.subr.mxu0 0.0
    %1211 = vmatpush1.msra.mxu0 0.0
    %1212 = vmatprep.subr.mxu0 0.0
    %1213 = vmatpush1.msra.mxu0 0.0
    %1214 = vmatprep.subr.mxu0 0.0
    %1215 = vmatpush1.msra.mxu0 0.0
    %1216 = vmatprep.subr.mxu0 0.0
    %1217 = vmatpush1.msra.mxu0 0.0
    %1218 = vmatprep.subr.mxu0 0.0
    %1219 = vmatpush1.msra.mxu0 0.0
    %1220 = vmatprep.subr.mxu0 0.0
    %1221 = vmatpush1.msra.mxu0 0.0
    %1222 = vmatprep.subr.mxu0 0.0
    %1223 = vmatpush1.msra.mxu0 0.0
    %1224 = vmatprep.subr.mxu0 0.0
    %1225 = vmatpush1.msra.mxu0 0.0
    %1226 = vmatprep.subr.mxu0 0.0
    %1227 = vmatpush1.msra.mxu0 0.0
    %1228 = vmatprep.subr.mxu0 0.0
    %1229 = vmatpush1.msra.mxu0 0.0
    %1230 = vmatprep.subr.mxu0 0.0
    %1231 = vmatpush1.msra.mxu0 0.0
    %1232 = vmatprep.subr.mxu0 0.0
    %1233 = vmatpush1.msra.mxu0 0.0
    %1234 = vmatprep.subr.mxu0 0.0
    %1235 = vmatpush1.msra.mxu0 0.0
    %1236 = vmatprep.subr.mxu0 0.0
    %1237 = vmatpush1.msra.mxu0 0.0
    %1238 = vmatprep.mubr.f32.mxu0 0.0
    %1239 = vmatmul.mubr.f32.gmra.mrb[0].mxu0 %v983
    %v1240 = vpop.f32.mrb[0].mxu0
    %v1241 = vadd.f32 %v664, %v1240
    %v1242 = vpop.f32.mrb[0].mxu0
    %1243 = vmatprep.mubr.f32.mxu0 0.0
    %1244 = vmatmul.mubr.f32.gmra.mrb[0].mxu0 %v986
    %v1245 = vpop.f32.mrb[0].mxu0
    %v1246 = vadd.f32 %v668, %v1245
    %v1247 = vpop.f32.mrb[0].mxu0
    %1248 = vmatprep.mubr.f32.mxu0 0.0
    %1249 = vmatmul.mubr.f32.gmra.mrb[0].mxu0 %v989
    %v1250 = vpop.f32.mrb[0].mxu0
    %v1251 = vadd.f32 %v672, %v1250
    %v1252 = vpop.f32.mrb[0].mxu0
    %1253 = vmatprep.mubr.f32.mxu0 0.0
    %1254 = vmatmul.mubr.f32.gmra.mrb[0].mxu0 %v992
    %v1255 = vpop.f32.mrb[0].mxu0
    %v1256 = vadd.f32 %v676, %v1255
    %v1257 = vpop.f32.mrb[0].mxu0
    %1258 = vmatprep.mubr.f32.mxu0 0.0
    %1259 = vmatmul.mubr.f32.gmra.mrb[0].mxu0 %v995
    %v1260 = vpop.f32.mrb[0].mxu0
    %v1261 = vadd.f32 %v680, %v1260
    %v1262 = vpop.f32.mrb[0].mxu0
    %1263 = vmatprep.mubr.f32.mxu0 0.0
    %1264 = vmatmul.mubr.f32.gmra.mrb[0].mxu0 %v998
    %v1265 = vpop.f32.mrb[0].mxu0
    %v1266 = vadd.f32 %v684, %v1265
    %v1267 = vpop.f32.mrb[0].mxu0
    %1268 = vmatprep.mubr.f32.mxu0 0.0
    %1269 = vmatmul.mubr.f32.gmra.mrb[0].mxu0 %v1001
    %v1270 = vpop.f32.mrb[0].mxu0
    %v1271 = vadd.f32 %v688, %v1270
    %v1272 = vpop.f32.mrb[0].mxu0
    %1273 = vmatprep.mubr.f32.mxu0 0.0
    %1274 = vmatmul.mubr.f32.gmra.mrb[0].mxu0 %v1004
    %v1275 = vpop.f32.mrb[0].mxu0
    %v1276 = vadd.f32 %v692, %v1275
    %v1277 = vpop.f32.mrb[0].mxu0
    %1278 = vmatprep.mubr.f32.mxu0 0.0
    %1279 = vmatmul.mubr.f32.gmra.mrb[0].mxu0 %v1007
    %v1280 = vpop.f32.mrb[0].mxu0
    %v1281 = vadd.f32 %v696, %v1280
    %v1282 = vpop.f32.mrb[0].mxu0
    %1283 = vmatprep.mubr.f32.mxu0 0.0
    %1284 = vmatmul.mubr.f32.gmra.mrb[0].mxu0 %v1010
    %v1285 = vpop.f32.mrb[0].mxu0
    %v1286 = vadd.f32 %v700, %v1285
    %v1287 = vpop.f32.mrb[0].mxu0
    %1288 = vmatprep.mubr.f32.mxu0 0.0
    %1289 = vmatmul.mubr.f32.gmra.mrb[0].mxu0 %v1013
    %v1290 = vpop.f32.mrb[0].mxu0
    %v1291 = vadd.f32 %v704, %v1290
    %v1292 = vpop.f32.mrb[0].mxu0
    %1293 = vmatprep.mubr.f32.mxu0 0.0
    %1294 = vmatmul.mubr.f32.gmra.mrb[0].mxu0 %v1016
    %v1295 = vpop.f32.mrb[0].mxu0
    %v1296 = vadd.f32 %v708, %v1295
    %v1297 = vpop.f32.mrb[0].mxu0
    %1298 = vmatprep.mubr.f32.mxu0 0.0
    %1299 = vmatmul.mubr.f32.gmra.mrb[0].mxu0 %v1019
    %v1300 = vpop.f32.mrb[0].mxu0
    %v1301 = vadd.f32 %v712, %v1300
    %v1302 = vpop.f32.mrb[0].mxu0
    %1303 = vmatprep.mubr.f32.mxu0 0.0
    %1304 = vmatmul.mubr.f32.gmra.mrb[0].mxu0 %v1022
    %v1305 = vpop.f32.mrb[0].mxu0
    %v1306 = vadd.f32 %v716, %v1305
    %v1307 = vpop.f32.mrb[0].mxu0
    %1308 = vmatprep.mubr.f32.mxu0 0.0
    %1309 = vmatmul.mubr.f32.gmra.mrb[0].mxu0 %v1025
    %v1310 = vpop.f32.mrb[0].mxu0
    %v1311 = vadd.f32 %v720, %v1310
    %v1312 = vpop.f32.mrb[0].mxu0
    %1313 = vmatprep.mubr.f32.mxu0 0.0
    %1314 = vmatmul.mubr.f32.gmra.mrb[0].mxu0 %v1028
    %v1315 = vpop.f32.mrb[0].mxu0
    %v1316 = vadd.f32 %v724, %v1315
    %v1317 = vpop.f32.mrb[0].mxu0
    %1318 = vmatprep.mubr.f32.mxu0 0.0
    %1319 = vmatmul.mubr.f32.gmra.mrb[0].mxu0 %v1031
    %v1320 = vpop.f32.mrb[0].mxu0
    %v1321 = vadd.f32 %v728, %v1320
    %v1322 = vpop.f32.mrb[0].mxu0
    %1323 = vmatprep.mubr.f32.mxu0 0.0
    %1324 = vmatmul.mubr.f32.gmra.mrb[0].mxu0 %v1034
    %v1325 = vpop.f32.mrb[0].mxu0
    %v1326 = vadd.f32 %v732, %v1325
    %v1327 = vpop.f32.mrb[0].mxu0
    %1328 = vmatprep.mubr.f32.mxu0 0.0
    %1329 = vmatmul.mubr.f32.gmra.mrb[0].mxu0 %v1037
    %v1330 = vpop.f32.mrb[0].mxu0
    %v1331 = vadd.f32 %v736, %v1330
    %v1332 = vpop.f32.mrb[0].mxu0
    %1333 = vmatprep.mubr.f32.mxu0 0.0
    %1334 = vmatmul.mubr.f32.gmra.mrb[0].mxu0 %v1040
    %v1335 = vpop.f32.mrb[0].mxu0
    %v1336 = vadd.f32 %v740, %v1335
    %v1337 = vpop.f32.mrb[0].mxu0
    %1338 = vmatprep.mubr.f32.mxu0 0.0
    %1339 = vmatmul.mubr.f32.gmra.mrb[0].mxu0 %v1043
    %v1340 = vpop.f32.mrb[0].mxu0
    %v1341 = vadd.f32 %v744, %v1340
    %v1342 = vpop.f32.mrb[0].mxu0
    %1343 = vmatprep.mubr.f32.mxu0 0.0
    %1344 = vmatmul.mubr.f32.gmra.mrb[0].mxu0 %v1046
    %v1345 = vpop.f32.mrb[0].mxu0
    %v1346 = vadd.f32 %v748, %v1345
    %v1347 = vpop.f32.mrb[0].mxu0
    %1348 = vmatprep.mubr.f32.mxu0 0.0
    %1349 = vmatmul.mubr.f32.gmra.mrb[0].mxu0 %v1049
    %v1350 = vpop.f32.mrb[0].mxu0
    %v1351 = vadd.f32 %v752, %v1350
    %v1352 = vpop.f32.mrb[0].mxu0
    %1353 = vmatprep.mubr.f32.mxu0 0.0
    %1354 = vmatmul.mubr.f32.gmra.mrb[0].mxu0 %v1052
    %v1355 = vpop.f32.mrb[0].mxu0
    %v1356 = vadd.f32 %v756, %v1355
    %v1357 = vpop.f32.mrb[0].mxu0
    %1358 = vmatprep.mubr.f32.mxu0 0.0
    %1359 = vmatmul.mubr.f32.gmra.mrb[0].mxu0 %v1055
    %v1360 = vpop.f32.mrb[0].mxu0
    %v1361 = vadd.f32 %v760, %v1360
    %v1362 = vpop.f32.mrb[0].mxu0
    %1363 = vmatprep.mubr.f32.mxu0 0.0
    %1364 = vmatmul.mubr.f32.gmra.mrb[0].mxu0 %v1058
    %v1365 = vpop.f32.mrb[0].mxu0
    %v1366 = vadd.f32 %v764, %v1365
    %v1367 = vpop.f32.mrb[0].mxu0
    %1368 = vmatprep.mubr.f32.mxu0 0.0
    %1369 = vmatmul.mubr.f32.gmra.mrb[0].mxu0 %v1061
    %v1370 = vpop.f32.mrb[0].mxu0
    %v1371 = vadd.f32 %v768, %v1370
    %v1372 = vpop.f32.mrb[0].mxu0
    %1373 = vmatprep.mubr.f32.mxu0 0.0
    %1374 = vmatmul.mubr.f32.gmra.mrb[0].mxu0 %v1064
    %v1375 = vpop.f32.mrb[0].mxu0
    %v1376 = vadd.f32 %v772, %v1375
    %v1377 = vpop.f32.mrb[0].mxu0
    %1378 = vmatprep.mubr.f32.mxu0 0.0
    %1379 = vmatmul.mubr.f32.gmra.mrb[0].mxu0 %v1067
    %v1380 = vpop.f32.mrb[0].mxu0
    %v1381 = vadd.f32 %v776, %v1380
    %v1382 = vpop.f32.mrb[0].mxu0
    %1383 = vmatprep.mubr.f32.mxu0 0.0
    %1384 = vmatmul.mubr.f32.gmra.mrb[0].mxu0 %v1070
    %v1385 = vpop.f32.mrb[0].mxu0
    %v1386 = vadd.f32 %v780, %v1385
    %v1387 = vpop.f32.mrb[0].mxu0
    %1388 = vmatprep.mubr.f32.mxu0 0.0
    %1389 = vmatmul.mubr.f32.gmra.mrb[0].mxu0 %v1073
    %v1390 = vpop.f32.mrb[0].mxu0
    %v1391 = vadd.f32 %v784, %v1390
    %v1392 = vpop.f32.mrb[0].mxu0
    %1393 = vmatprep.mubr.f32.mxu0 0.0
    %1394 = vmatmul.mubr.f32.gmra.mrb[0].mxu0 %v1076
    %v1395 = vpop.f32.mrb[0].mxu0
    %v1396 = vadd.f32 %v788, %v1395
    %v1397 = vpop.f32.mrb[0].mxu0
    %1398 = vmatprep.mubr.f32.mxu0 0.0
    %1399 = vmatmul.mubr.f32.gmra.mrb[0].mxu0 %v1079
    %v1400 = vpop.f32.mrb[0].mxu0
    %v1401 = vadd.f32 %v792, %v1400
    %v1402 = vpop.f32.mrb[0].mxu0
    %1403 = vmatprep.mubr.f32.mxu0 0.0
    %1404 = vmatmul.mubr.f32.gmra.mrb[0].mxu0 %v1082
    %v1405 = vpop.f32.mrb[0].mxu0
    %v1406 = vadd.f32 %v796, %v1405
    %v1407 = vpop.f32.mrb[0].mxu0
    %1408 = vmatprep.mubr.f32.mxu0 0.0
    %1409 = vmatmul.mubr.f32.gmra.mrb[0].mxu0 %v1085
    %v1410 = vpop.f32.mrb[0].mxu0
    %v1411 = vadd.f32 %v800, %v1410
    %v1412 = vpop.f32.mrb[0].mxu0
    %1413 = vmatprep.mubr.f32.mxu0 0.0
    %1414 = vmatmul.mubr.f32.gmra.mrb[0].mxu0 %v1088
    %v1415 = vpop.f32.mrb[0].mxu0
    %v1416 = vadd.f32 %v804, %v1415
    %v1417 = vpop.f32.mrb[0].mxu0
    %1418 = vmatprep.mubr.f32.mxu0 0.0
    %1419 = vmatmul.mubr.f32.gmra.mrb[0].mxu0 %v1091
    %v1420 = vpop.f32.mrb[0].mxu0
    %v1421 = vadd.f32 %v808, %v1420
    %v1422 = vpop.f32.mrb[0].mxu0
    %1423 = vmatprep.mubr.f32.mxu0 0.0
    %1424 = vmatmul.mubr.f32.gmra.mrb[0].mxu0 %v1094
    %v1425 = vpop.f32.mrb[0].mxu0
    %v1426 = vadd.f32 %v812, %v1425
    %v1427 = vpop.f32.mrb[0].mxu0
    %1428 = vmatprep.mubr.f32.mxu0 0.0
    %1429 = vmatmul.mubr.f32.gmra.mrb[0].mxu0 %v1097
    %v1430 = vpop.f32.mrb[0].mxu0
    %v1431 = vadd.f32 %v816, %v1430
    %v1432 = vpop.f32.mrb[0].mxu0
    %1433 = vmatprep.mubr.f32.mxu0 0.0
    %1434 = vmatmul.mubr.f32.gmra.mrb[0].mxu0 %v1100
    %v1435 = vpop.f32.mrb[0].mxu0
    %v1436 = vadd.f32 %v820, %v1435
    %v1437 = vpop.f32.mrb[0].mxu0
    %1438 = vmatprep.mubr.f32.mxu0 0.0
    %1439 = vmatmul.mubr.f32.gmra.mrb[0].mxu0 %v1103
    %v1440 = vpop.f32.mrb[0].mxu0
    %v1441 = vadd.f32 %v824, %v1440
    %v1442 = vpop.f32.mrb[0].mxu0
    %1443 = vmatprep.mubr.f32.mxu0 0.0
    %1444 = vmatmul.mubr.f32.gmra.mrb[0].mxu0 %v1106
    %v1445 = vpop.f32.mrb[0].mxu0
    %v1446 = vadd.f32 %v828, %v1445
    %v1447 = vpop.f32.mrb[0].mxu0
    %1448 = vmatprep.mubr.f32.mxu0 0.0
    %1449 = vmatmul.mubr.f32.gmra.mrb[0].mxu0 %v1109
    %v1450 = vpop.f32.mrb[0].mxu0
    %v1451 = vadd.f32 %v832, %v1450
    %v1452 = vpop.f32.mrb[0].mxu0
    %1453 = vmatprep.mubr.f32.mxu0 0.0
    %1454 = vmatmul.mubr.f32.gmra.mrb[0].mxu0 %v1112
    %v1455 = vpop.f32.mrb[0].mxu0
    %v1456 = vadd.f32 %v836, %v1455
    %v1457 = vpop.f32.mrb[0].mxu0
    %1458 = vmatprep.mubr.f32.mxu0 0.0
    %1459 = vmatmul.mubr.f32.gmra.mrb[0].mxu0 %v1115
    %v1460 = vpop.f32.mrb[0].mxu0
    %v1461 = vadd.f32 %v840, %v1460
    %v1462 = vpop.f32.mrb[0].mxu0
    %1463 = vmatprep.mubr.f32.mxu0 0.0
    %1464 = vmatmul.mubr.f32.gmra.mrb[0].mxu0 %v1118
    %v1465 = vpop.f32.mrb[0].mxu0
    %v1466 = vadd.f32 %v844, %v1465
    %v1467 = vpop.f32.mrb[0].mxu0
    %1468 = vmatprep.mubr.f32.mxu0 0.0
    %1469 = vmatmul.mubr.f32.gmra.mrb[0].mxu0 %v1121
    %v1470 = vpop.f32.mrb[0].mxu0
    %v1471 = vadd.f32 %v848, %v1470
    %v1472 = vpop.f32.mrb[0].mxu0
    %1473 = vmatprep.mubr.f32.mxu0 0.0
    %1474 = vmatmul.mubr.f32.gmra.mrb[0].mxu0 %v1124
    %v1475 = vpop.f32.mrb[0].mxu0
    %v1476 = vadd.f32 %v852, %v1475
    %v1477 = vpop.f32.mrb[0].mxu0
    %1478 = vmatprep.mubr.f32.mxu0 0.0
    %1479 = vmatmul.mubr.f32.gmra.mrb[0].mxu0 %v1127
    %v1480 = vpop.f32.mrb[0].mxu0
    %v1481 = vadd.f32 %v856, %v1480
    %v1482 = vpop.f32.mrb[0].mxu0
    %1483 = vmatprep.mubr.f32.mxu0 0.0
    %1484 = vmatmul.mubr.f32.gmra.mrb[0].mxu0 %v1130
    %v1485 = vpop.f32.mrb[0].mxu0
    %v1486 = vadd.f32 %v860, %v1485
    %v1487 = vpop.f32.mrb[0].mxu0
    %1488 = vmatprep.mubr.f32.mxu0 0.0
    %1489 = vmatmul.mubr.f32.gmra.mrb[0].mxu0 %v1133
    %v1490 = vpop.f32.mrb[0].mxu0
    %v1491 = vadd.f32 %v864, %v1490
    %v1492 = vpop.f32.mrb[0].mxu0
    %1493 = vmatprep.mubr.f32.mxu0 0.0
    %1494 = vmatmul.mubr.f32.gmra.mrb[0].mxu0 %v1136
    %v1495 = vpop.f32.mrb[0].mxu0
    %v1496 = vadd.f32 %v868, %v1495
    %v1497 = vpop.f32.mrb[0].mxu0
    %1498 = vmatprep.mubr.f32.mxu0 0.0
    %1499 = vmatmul.mubr.f32.gmra.mrb[0].mxu0 %v1139
    %v1500 = vpop.f32.mrb[0].mxu0
    %v1501 = vadd.f32 %v872, %v1500
    %v1502 = vpop.f32.mrb[0].mxu0
    %1503 = vmatprep.mubr.f32.mxu0 0.0
    %1504 = vmatmul.mubr.f32.gmra.mrb[0].mxu0 %v1142
    %v1505 = vpop.f32.mrb[0].mxu0
    %v1506 = vadd.f32 %v876, %v1505
    %v1507 = vpop.f32.mrb[0].mxu0
    %1508 = vmatprep.mubr.f32.mxu0 0.0
    %1509 = vmatmul.mubr.f32.gmra.mrb[0].mxu0 %v1145
    %v1510 = vpop.f32.mrb[0].mxu0
    %v1511 = vadd.f32 %v880, %v1510
    %v1512 = vpop.f32.mrb[0].mxu0
    %1513 = vmatprep.mubr.f32.mxu0 0.0
    %1514 = vmatmul.mubr.f32.gmra.mrb[0].mxu0 %v1148
    %v1515 = vpop.f32.mrb[0].mxu0
    %v1516 = vadd.f32 %v884, %v1515
    %v1517 = vpop.f32.mrb[0].mxu0
    %1518 = vmatprep.mubr.f32.mxu0 0.0
    %1519 = vmatmul.mubr.f32.gmra.mrb[0].mxu0 %v1151
    %v1520 = vpop.f32.mrb[0].mxu0
    %v1521 = vadd.f32 %v888, %v1520
    %v1522 = vpop.f32.mrb[0].mxu0
    %1523 = vmatprep.mubr.f32.mxu0 0.0
    %1524 = vmatmul.mubr.f32.gmra.mrb[0].mxu0 %v1154
    %v1525 = vpop.f32.mrb[0].mxu0
    %v1526 = vadd.f32 %v892, %v1525
    %v1527 = vpop.f32.mrb[0].mxu0
    %1528 = vmatprep.mubr.f32.mxu0 0.0
    %1529 = vmatmul.mubr.f32.gmra.mrb[0].mxu0 %v1157
    %v1530 = vpop.f32.mrb[0].mxu0
    %v1531 = vadd.f32 %v896, %v1530
    %v1532 = vpop.f32.mrb[0].mxu0
    %1533 = vmatprep.mubr.f32.mxu0 0.0
    %1534 = vmatmul.mubr.f32.gmra.mrb[0].mxu0 %v1160
    %v1535 = vpop.f32.mrb[0].mxu0
    %v1536 = vadd.f32 %v900, %v1535
    %v1537 = vpop.f32.mrb[0].mxu0
    %1538 = vmatprep.mubr.f32.mxu0 0.0
    %1539 = vmatmul.mubr.f32.gmra.mrb[0].mxu0 %v1163
    %v1540 = vpop.f32.mrb[0].mxu0
    %v1541 = vadd.f32 %v904, %v1540
    %v1542 = vpop.f32.mrb[0].mxu0
    %1543 = vmatprep.mubr.f32.mxu0 0.0
    %1544 = vmatmul.mubr.f32.gmra.mrb[0].mxu0 %v1166
    %v1545 = vpop.f32.mrb[0].mxu0
    %v1546 = vadd.f32 %v908, %v1545
    %v1547 = vpop.f32.mrb[0].mxu0
    %1548 = vmatprep.mubr.f32.mxu0 0.0
    %1549 = vmatmul.mubr.f32.gmra.mrb[0].mxu0 %v1169
    %v1550 = vpop.f32.mrb[0].mxu0
    %v1551 = vadd.f32 %v912, %v1550
    %v1552 = vpop.f32.mrb[0].mxu0
    %1553 = vmatprep.mubr.f32.mxu0 0.0
    %1554 = vmatmul.mubr.f32.gmra.mrb[0].mxu0 %v1172
    %v1555 = vpop.f32.mrb[0].mxu0
    %v1556 = vadd.f32 %v916, %v1555
    %v1557 = vpop.f32.mrb[0].mxu0
    %1558 = vdwg.mxu0
    %v1559 = vtanh.pop %v1241
    %v1560 = vtanh.pop %v1246
    %v1561 = vtanh.pop %v1251
    %v1562 = vtanh.pop %v1256
    %v1563 = vtanh.pop %v1261
    %v1564 = vtanh.pop %v1266
    %v1565 = vtanh.pop %v1271
    %v1566 = vtanh.pop %v1276
    %v1567 = vtanh.pop %v1281
    %v1568 = vtanh.pop %v1286
    %v1569 = vtanh.pop %v1291
    %v1570 = vtanh.pop %v1296
    %v1571 = vtanh.pop %v1301
    %v1572 = vtanh.pop %v1306
    %v1573 = vtanh.pop %v1311
    %v1574 = vtanh.pop %v1316
    %v1575 = vtanh.pop %v1321
    %v1576 = vtanh.pop %v1326
    %v1577 = vtanh.pop %v1331
    %v1578 = vtanh.pop %v1336
    %v1579 = vtanh.pop %v1341
    %v1580 = vtanh.pop %v1346
    %v1581 = vtanh.pop %v1351
    %v1582 = vtanh.pop %v1356
    %v1583 = vtanh.pop %v1361
    %v1584 = vtanh.pop %v1366
    %v1585 = vtanh.pop %v1371
    %v1586 = vtanh.pop %v1376
    %v1587 = vtanh.pop %v1381
    %v1588 = vtanh.pop %v1386
    %v1589 = vtanh.pop %v1391
    %v1590 = vtanh.pop %v1396
    %v1591 = vtanh.pop %v1401
    %v1592 = vtanh.pop %v1406
    %v1593 = vtanh.pop %v1411
    %v1594 = vtanh.pop %v1416
    %v1595 = vtanh.pop %v1421
    %v1596 = vtanh.pop %v1426
    %v1597 = vtanh.pop %v1431
    %v1598 = vtanh.pop %v1436
    %v1599 = vtanh.pop %v1441
    %v1600 = vtanh.pop %v1446
    %v1601 = vtanh.pop %v1451
    %v1602 = vtanh.pop %v1456
    %v1603 = vtanh.pop %v1461
    %v1604 = vtanh.pop %v1466
    %v1605 = vtanh.pop %v1471
    %v1606 = vtanh.pop %v1476
    %v1607 = vtanh.pop %v1481
    %v1608 = vtanh.pop %v1486
    %v1609 = vtanh.pop %v1491
    %v1610 = vtanh.pop %v1496
    %v1611 = vtanh.pop %v1501
    %v1612 = vtanh.pop %v1506
    %v1613 = vtanh.pop %v1511
    %v1614 = vtanh.pop %v1516
    %v1615 = vtanh.pop %v1521
    %v1616 = vtanh.pop %v1526
    %v1617 = vtanh.pop %v1531
    %v1618 = vtanh.pop %v1536
    %v1619 = vtanh.pop %v1541
    %v1620 = vtanh.pop %v1546
    %v1621 = vtanh.pop %v1551
    %v1622 = vtanh.pop %v1556
    %v1623 = vld [vmem:[%s5] sm:$0x1]
    %v1625 = vlaneseq
    %v1626 = vshrl.u32 %v1625, 7
    %v1627 = vsub.s32 0, %v1626
    %v1628 = vrot.slane %v1623, %v1627
    %v1630 = vmul.f32 %v1559, %v1628
    %v1631 = vmul.f32 %v1560, %v1628
    %v1632 = vmul.f32 %v1561, %v1628
    %v1633 = vmul.f32 %v1562, %v1628
    %v1634 = vmul.f32 %v1563, %v1628
    %v1635 = vmul.f32 %v1564, %v1628
    %v1636 = vmul.f32 %v1565, %v1628
    %v1637 = vmul.f32 %v1566, %v1628
    %v1638 = vmul.f32 %v1567, %v1628
    %v1639 = vmul.f32 %v1568, %v1628
    %v1640 = vmul.f32 %v1569, %v1628
    %v1641 = vmul.f32 %v1570, %v1628
    %v1642 = vmul.f32 %v1571, %v1628
    %v1643 = vmul.f32 %v1572, %v1628
    %v1644 = vmul.f32 %v1573, %v1628
    %v1645 = vmul.f32 %v1574, %v1628
    %v1646 = vmul.f32 %v1575, %v1628
    %v1647 = vmul.f32 %v1576, %v1628
    %v1648 = vmul.f32 %v1577, %v1628
    %v1649 = vmul.f32 %v1578, %v1628
    %v1650 = vmul.f32 %v1579, %v1628
    %v1651 = vmul.f32 %v1580, %v1628
    %v1652 = vmul.f32 %v1581, %v1628
    %v1653 = vmul.f32 %v1582, %v1628
    %v1654 = vmul.f32 %v1583, %v1628
    %v1655 = vmul.f32 %v1584, %v1628
    %v1656 = vmul.f32 %v1585, %v1628
    %v1657 = vmul.f32 %v1586, %v1628
    %v1658 = vmul.f32 %v1587, %v1628
    %v1659 = vmul.f32 %v1588, %v1628
    %v1660 = vmul.f32 %v1589, %v1628
    %v1661 = vmul.f32 %v1590, %v1628
    %v1662 = vmul.f32 %v1591, %v1628
    %v1663 = vmul.f32 %v1592, %v1628
    %v1664 = vmul.f32 %v1593, %v1628
    %v1665 = vmul.f32 %v1594, %v1628
    %v1666 = vmul.f32 %v1595, %v1628
    %v1667 = vmul.f32 %v1596, %v1628
    %v1668 = vmul.f32 %v1597, %v1628
    %v1669 = vmul.f32 %v1598, %v1628
    %v1670 = vmul.f32 %v1599, %v1628
    %v1671 = vmul.f32 %v1600, %v1628
    %v1672 = vmul.f32 %v1601, %v1628
    %v1673 = vmul.f32 %v1602, %v1628
    %v1674 = vmul.f32 %v1603, %v1628
    %v1675 = vmul.f32 %v1604, %v1628
    %v1676 = vmul.f32 %v1605, %v1628
    %v1677 = vmul.f32 %v1606, %v1628
    %v1678 = vmul.f32 %v1607, %v1628
    %v1679 = vmul.f32 %v1608, %v1628
    %v1680 = vmul.f32 %v1609, %v1628
    %v1681 = vmul.f32 %v1610, %v1628
    %v1682 = vmul.f32 %v1611, %v1628
    %v1683 = vmul.f32 %v1612, %v1628
    %v1684 = vmul.f32 %v1613, %v1628
    %v1685 = vmul.f32 %v1614, %v1628
    %v1686 = vmul.f32 %v1615, %v1628
    %v1687 = vmul.f32 %v1616, %v1628
    %v1688 = vmul.f32 %v1617, %v1628
    %v1689 = vmul.f32 %v1618, %v1628
    %v1690 = vmul.f32 %v1619, %v1628
    %v1691 = vmul.f32 %v1620, %v1628
    %v1692 = vmul.f32 %v1621, %v1628
    %v1693 = vmul.f32 %v1622, %v1628
    %v1694 = vsel %vm131, %v1630, 0.0
    %1695 = vadd.xlane.f32.xlu0 %v1694
    %v1696 = vpop.xlane.xlu0 %1695
    %v1697 = vsel %vm131, %v1631, 0.0
    %1698 = vadd.xlane.f32.xlu0 %v1697
    %v1699 = vpop.xlane.xlu0 %1698
    %v1700 = vsel %vm131, %v1632, 0.0
    %1701 = vadd.xlane.f32.xlu0 %v1700
    %v1702 = vpop.xlane.xlu0 %1701
    %v1703 = vsel %vm131, %v1633, 0.0
    %1704 = vadd.xlane.f32.xlu0 %v1703
    %v1705 = vpop.xlane.xlu0 %1704
    %v1706 = vsel %vm131, %v1634, 0.0
    %1707 = vadd.xlane.f32.xlu0 %v1706
    %v1708 = vpop.xlane.xlu0 %1707
    %v1709 = vsel %vm131, %v1635, 0.0
    %1710 = vadd.xlane.f32.xlu0 %v1709
    %v1711 = vpop.xlane.xlu0 %1710
    %v1712 = vsel %vm131, %v1636, 0.0
    %1713 = vadd.xlane.f32.xlu0 %v1712
    %v1714 = vpop.xlane.xlu0 %1713
    %v1715 = vsel %vm131, %v1637, 0.0
    %1716 = vadd.xlane.f32.xlu0 %v1715
    %v1717 = vpop.xlane.xlu0 %1716
    %v1718 = vsel %vm131, %v1638, 0.0
    %1719 = vadd.xlane.f32.xlu0 %v1718
    %v1720 = vpop.xlane.xlu0 %1719
    %v1721 = vsel %vm131, %v1639, 0.0
    %1722 = vadd.xlane.f32.xlu0 %v1721
    %v1723 = vpop.xlane.xlu0 %1722
    %v1724 = vsel %vm131, %v1640, 0.0
    %1725 = vadd.xlane.f32.xlu0 %v1724
    %v1726 = vpop.xlane.xlu0 %1725
    %v1727 = vsel %vm131, %v1641, 0.0
    %1728 = vadd.xlane.f32.xlu0 %v1727
    %v1729 = vpop.xlane.xlu0 %1728
    %v1730 = vsel %vm131, %v1642, 0.0
    %1731 = vadd.xlane.f32.xlu0 %v1730
    %v1732 = vpop.xlane.xlu0 %1731
    %v1733 = vsel %vm131, %v1643, 0.0
    %1734 = vadd.xlane.f32.xlu0 %v1733
    %v1735 = vpop.xlane.xlu0 %1734
    %v1736 = vsel %vm131, %v1644, 0.0
    %1737 = vadd.xlane.f32.xlu0 %v1736
    %v1738 = vpop.xlane.xlu0 %1737
    %v1739 = vsel %vm131, %v1645, 0.0
    %1740 = vadd.xlane.f32.xlu0 %v1739
    %v1741 = vpop.xlane.xlu0 %1740
    %v1742 = vsel %vm131, %v1646, 0.0
    %1743 = vadd.xlane.f32.xlu0 %v1742
    %v1744 = vpop.xlane.xlu0 %1743
    %v1745 = vsel %vm131, %v1647, 0.0
    %1746 = vadd.xlane.f32.xlu0 %v1745
    %v1747 = vpop.xlane.xlu0 %1746
    %v1748 = vsel %vm131, %v1648, 0.0
    %1749 = vadd.xlane.f32.xlu0 %v1748
    %v1750 = vpop.xlane.xlu0 %1749
    %v1751 = vsel %vm131, %v1649, 0.0
    %1752 = vadd.xlane.f32.xlu0 %v1751
    %v1753 = vpop.xlane.xlu0 %1752
    %v1754 = vsel %vm131, %v1650, 0.0
    %1755 = vadd.xlane.f32.xlu0 %v1754
    %v1756 = vpop.xlane.xlu0 %1755
    %v1757 = vsel %vm131, %v1651, 0.0
    %1758 = vadd.xlane.f32.xlu0 %v1757
    %v1759 = vpop.xlane.xlu0 %1758
    %v1760 = vsel %vm131, %v1652, 0.0
    %1761 = vadd.xlane.f32.xlu0 %v1760
    %v1762 = vpop.xlane.xlu0 %1761
    %v1763 = vsel %vm131, %v1653, 0.0
    %1764 = vadd.xlane.f32.xlu0 %v1763
    %v1765 = vpop.xlane.xlu0 %1764
    %v1766 = vsel %vm131, %v1654, 0.0
    %1767 = vadd.xlane.f32.xlu0 %v1766
    %v1768 = vpop.xlane.xlu0 %1767
    %v1769 = vsel %vm131, %v1655, 0.0
    %1770 = vadd.xlane.f32.xlu0 %v1769
    %v1771 = vpop.xlane.xlu0 %1770
    %v1772 = vsel %vm131, %v1656, 0.0
    %1773 = vadd.xlane.f32.xlu0 %v1772
    %v1774 = vpop.xlane.xlu0 %1773
    %v1775 = vsel %vm131, %v1657, 0.0
    %1776 = vadd.xlane.f32.xlu0 %v1775
    %v1777 = vpop.xlane.xlu0 %1776
    %v1778 = vsel %vm131, %v1658, 0.0
    %1779 = vadd.xlane.f32.xlu0 %v1778
    %v1780 = vpop.xlane.xlu0 %1779
    %v1781 = vsel %vm131, %v1659, 0.0
    %1782 = vadd.xlane.f32.xlu0 %v1781
    %v1783 = vpop.xlane.xlu0 %1782
    %v1784 = vsel %vm131, %v1660, 0.0
    %1785 = vadd.xlane.f32.xlu0 %v1784
    %v1786 = vpop.xlane.xlu0 %1785
    %v1787 = vsel %vm131, %v1661, 0.0
    %1788 = vadd.xlane.f32.xlu0 %v1787
    %v1789 = vpop.xlane.xlu0 %1788
    %v1790 = vsel %vm131, %v1662, 0.0
    %1791 = vadd.xlane.f32.xlu0 %v1790
    %v1792 = vpop.xlane.xlu0 %1791
    %v1793 = vsel %vm131, %v1663, 0.0
    %1794 = vadd.xlane.f32.xlu0 %v1793
    %v1795 = vpop.xlane.xlu0 %1794
    %v1796 = vsel %vm131, %v1664, 0.0
    %1797 = vadd.xlane.f32.xlu0 %v1796
    %v1798 = vpop.xlane.xlu0 %1797
    %v1799 = vsel %vm131, %v1665, 0.0
    %1800 = vadd.xlane.f32.xlu0 %v1799
    %v1801 = vpop.xlane.xlu0 %1800
    %v1802 = vsel %vm131, %v1666, 0.0
    %1803 = vadd.xlane.f32.xlu0 %v1802
    %v1804 = vpop.xlane.xlu0 %1803
    %v1805 = vsel %vm131, %v1667, 0.0
    %1806 = vadd.xlane.f32.xlu0 %v1805
    %v1807 = vpop.xlane.xlu0 %1806
    %v1808 = vsel %vm131, %v1668, 0.0
    %1809 = vadd.xlane.f32.xlu0 %v1808
    %v1810 = vpop.xlane.xlu0 %1809
    %v1811 = vsel %vm131, %v1669, 0.0
    %1812 = vadd.xlane.f32.xlu0 %v1811
    %v1813 = vpop.xlane.xlu0 %1812
    %v1814 = vsel %vm131, %v1670, 0.0
    %1815 = vadd.xlane.f32.xlu0 %v1814
    %v1816 = vpop.xlane.xlu0 %1815
    %v1817 = vsel %vm131, %v1671, 0.0
    %1818 = vadd.xlane.f32.xlu0 %v1817
    %v1819 = vpop.xlane.xlu0 %1818
    %v1820 = vsel %vm131, %v1672, 0.0
    %1821 = vadd.xlane.f32.xlu0 %v1820
    %v1822 = vpop.xlane.xlu0 %1821
    %v1823 = vsel %vm131, %v1673, 0.0
    %1824 = vadd.xlane.f32.xlu0 %v1823
    %v1825 = vpop.xlane.xlu0 %1824
    %v1826 = vsel %vm131, %v1674, 0.0
    %1827 = vadd.xlane.f32.xlu0 %v1826
    %v1828 = vpop.xlane.xlu0 %1827
    %v1829 = vsel %vm131, %v1675, 0.0
    %1830 = vadd.xlane.f32.xlu0 %v1829
    %v1831 = vpop.xlane.xlu0 %1830
    %v1832 = vsel %vm131, %v1676, 0.0
    %1833 = vadd.xlane.f32.xlu0 %v1832
    %v1834 = vpop.xlane.xlu0 %1833
    %v1835 = vsel %vm131, %v1677, 0.0
    %1836 = vadd.xlane.f32.xlu0 %v1835
    %v1837 = vpop.xlane.xlu0 %1836
    %v1838 = vsel %vm131, %v1678, 0.0
    %1839 = vadd.xlane.f32.xlu0 %v1838
    %v1840 = vpop.xlane.xlu0 %1839
    %v1841 = vsel %vm131, %v1679, 0.0
    %1842 = vadd.xlane.f32.xlu0 %v1841
    %v1843 = vpop.xlane.xlu0 %1842
    %v1844 = vsel %vm131, %v1680, 0.0
    %1845 = vadd.xlane.f32.xlu0 %v1844
    %v1846 = vpop.xlane.xlu0 %1845
    %v1847 = vsel %vm131, %v1681, 0.0
    %1848 = vadd.xlane.f32.xlu0 %v1847
    %v1849 = vpop.xlane.xlu0 %1848
    %v1850 = vsel %vm131, %v1682, 0.0
    %1851 = vadd.xlane.f32.xlu0 %v1850
    %v1852 = vpop.xlane.xlu0 %1851
    %v1853 = vsel %vm131, %v1683, 0.0
    %1854 = vadd.xlane.f32.xlu0 %v1853
    %v1855 = vpop.xlane.xlu0 %1854
    %v1856 = vsel %vm131, %v1684, 0.0
    %1857 = vadd.xlane.f32.xlu0 %v1856
    %v1858 = vpop.xlane.xlu0 %1857
    %v1859 = vsel %vm131, %v1685, 0.0
    %1860 = vadd.xlane.f32.xlu0 %v1859
    %v1861 = vpop.xlane.xlu0 %1860
    %v1862 = vsel %vm131, %v1686, 0.0
    %1863 = vadd.xlane.f32.xlu0 %v1862
    %v1864 = vpop.xlane.xlu0 %1863
    %v1865 = vsel %vm131, %v1687, 0.0
    %1866 = vadd.xlane.f32.xlu0 %v1865
    %v1867 = vpop.xlane.xlu0 %1866
    %v1868 = vsel %vm131, %v1688, 0.0
    %1869 = vadd.xlane.f32.xlu0 %v1868
    %v1870 = vpop.xlane.xlu0 %1869
    %v1871 = vsel %vm131, %v1689, 0.0
    %1872 = vadd.xlane.f32.xlu0 %v1871
    %v1873 = vpop.xlane.xlu0 %1872
    %v1874 = vsel %vm131, %v1690, 0.0
    %1875 = vadd.xlane.f32.xlu0 %v1874
    %v1876 = vpop.xlane.xlu0 %1875
    %v1877 = vsel %vm131, %v1691, 0.0
    %1878 = vadd.xlane.f32.xlu0 %v1877
    %v1879 = vpop.xlane.xlu0 %1878
    %v1880 = vsel %vm131, %v1692, 0.0
    %1881 = vadd.xlane.f32.xlu0 %v1880
    %v1882 = vpop.xlane.xlu0 %1881
    %v1883 = vsel %vm131, %v1693, 0.0
    %1884 = vadd.xlane.f32.xlu0 %v1883
    %v1885 = vpop.xlane.xlu0 %1884
    %v1950 = vlaneseq
    %v1951 = vand.u32 %v1950, 127
    %v1952 = vlaneseq
    %v1953 = vshrl.u32 %v1952, 7
    %v1954 = vsub.s32 %v1951, %v1953
    %v1955 = vrot.slane %v1696, %v1954
    %v1956 = vlaneseq
    %v1957 = vshrl.u32 %v1956, 7
    %v1958 = vsub.s32 %v1951, %v1957
    %v1959 = vrot.slane %v1699, %v1958
    %v1960 = vlaneseq
    %v1961 = vshrl.u32 %v1960, 7
    %v1962 = vsub.s32 %v1951, %v1961
    %v1963 = vrot.slane %v1702, %v1962
    %v1964 = vlaneseq
    %v1965 = vshrl.u32 %v1964, 7
    %v1966 = vsub.s32 %v1951, %v1965
    %v1967 = vrot.slane %v1705, %v1966
    %v1968 = vlaneseq
    %v1969 = vshrl.u32 %v1968, 7
    %v1970 = vsub.s32 %v1951, %v1969
    %v1971 = vrot.slane %v1708, %v1970
    %v1972 = vlaneseq
    %v1973 = vshrl.u32 %v1972, 7
    %v1974 = vsub.s32 %v1951, %v1973
    %v1975 = vrot.slane %v1711, %v1974
    %v1976 = vlaneseq
    %v1977 = vshrl.u32 %v1976, 7
    %v1978 = vsub.s32 %v1951, %v1977
    %v1979 = vrot.slane %v1714, %v1978
    %v1980 = vlaneseq
    %v1981 = vshrl.u32 %v1980, 7
    %v1982 = vsub.s32 %v1951, %v1981
    %v1983 = vrot.slane %v1717, %v1982
    %v1984 = vlaneseq
    %v1985 = vshrl.u32 %v1984, 7
    %v1986 = vsub.s32 %v1951, %v1985
    %v1987 = vrot.slane %v1720, %v1986
    %v1988 = vlaneseq
    %v1989 = vshrl.u32 %v1988, 7
    %v1990 = vsub.s32 %v1951, %v1989
    %v1991 = vrot.slane %v1723, %v1990
    %v1992 = vlaneseq
    %v1993 = vshrl.u32 %v1992, 7
    %v1994 = vsub.s32 %v1951, %v1993
    %v1995 = vrot.slane %v1726, %v1994
    %v1996 = vlaneseq
    %v1997 = vshrl.u32 %v1996, 7
    %v1998 = vsub.s32 %v1951, %v1997
    %v1999 = vrot.slane %v1729, %v1998
    %v2000 = vlaneseq
    %v2001 = vshrl.u32 %v2000, 7
    %v2002 = vsub.s32 %v1951, %v2001
    %v2003 = vrot.slane %v1732, %v2002
    %v2004 = vlaneseq
    %v2005 = vshrl.u32 %v2004, 7
    %v2006 = vsub.s32 %v1951, %v2005
    %v2007 = vrot.slane %v1735, %v2006
    %v2008 = vlaneseq
    %v2009 = vshrl.u32 %v2008, 7
    %v2010 = vsub.s32 %v1951, %v2009
    %v2011 = vrot.slane %v1738, %v2010
    %v2012 = vlaneseq
    %v2013 = vshrl.u32 %v2012, 7
    %v2014 = vsub.s32 %v1951, %v2013
    %v2015 = vrot.slane %v1741, %v2014
    %v2016 = vlaneseq
    %v2017 = vshrl.u32 %v2016, 7
    %v2018 = vsub.s32 %v1951, %v2017
    %v2019 = vrot.slane %v1744, %v2018
    %v2020 = vlaneseq
    %v2021 = vshrl.u32 %v2020, 7
    %v2022 = vsub.s32 %v1951, %v2021
    %v2023 = vrot.slane %v1747, %v2022
    %v2024 = vlaneseq
    %v2025 = vshrl.u32 %v2024, 7
    %v2026 = vsub.s32 %v1951, %v2025
    %v2027 = vrot.slane %v1750, %v2026
    %v2028 = vlaneseq
    %v2029 = vshrl.u32 %v2028, 7
    %v2030 = vsub.s32 %v1951, %v2029
    %v2031 = vrot.slane %v1753, %v2030
    %v2032 = vlaneseq
    %v2033 = vshrl.u32 %v2032, 7
    %v2034 = vsub.s32 %v1951, %v2033
    %v2035 = vrot.slane %v1756, %v2034
    %v2036 = vlaneseq
    %v2037 = vshrl.u32 %v2036, 7
    %v2038 = vsub.s32 %v1951, %v2037
    %v2039 = vrot.slane %v1759, %v2038
    %v2040 = vlaneseq
    %v2041 = vshrl.u32 %v2040, 7
    %v2042 = vsub.s32 %v1951, %v2041
    %v2043 = vrot.slane %v1762, %v2042
    %v2044 = vlaneseq
    %v2045 = vshrl.u32 %v2044, 7
    %v2046 = vsub.s32 %v1951, %v2045
    %v2047 = vrot.slane %v1765, %v2046
    %v2048 = vlaneseq
    %v2049 = vshrl.u32 %v2048, 7
    %v2050 = vsub.s32 %v1951, %v2049
    %v2051 = vrot.slane %v1768, %v2050
    %v2052 = vlaneseq
    %v2053 = vshrl.u32 %v2052, 7
    %v2054 = vsub.s32 %v1951, %v2053
    %v2055 = vrot.slane %v1771, %v2054
    %v2056 = vlaneseq
    %v2057 = vshrl.u32 %v2056, 7
    %v2058 = vsub.s32 %v1951, %v2057
    %v2059 = vrot.slane %v1774, %v2058
    %v2060 = vlaneseq
    %v2061 = vshrl.u32 %v2060, 7
    %v2062 = vsub.s32 %v1951, %v2061
    %v2063 = vrot.slane %v1777, %v2062
    %v2064 = vlaneseq
    %v2065 = vshrl.u32 %v2064, 7
    %v2066 = vsub.s32 %v1951, %v2065
    %v2067 = vrot.slane %v1780, %v2066
    %v2068 = vlaneseq
    %v2069 = vshrl.u32 %v2068, 7
    %v2070 = vsub.s32 %v1951, %v2069
    %v2071 = vrot.slane %v1783, %v2070
    %v2072 = vlaneseq
    %v2073 = vshrl.u32 %v2072, 7
    %v2074 = vsub.s32 %v1951, %v2073
    %v2075 = vrot.slane %v1786, %v2074
    %v2076 = vlaneseq
    %v2077 = vshrl.u32 %v2076, 7
    %v2078 = vsub.s32 %v1951, %v2077
    %v2079 = vrot.slane %v1789, %v2078
    %v2080 = vlaneseq
    %v2081 = vshrl.u32 %v2080, 7
    %v2082 = vsub.s32 %v1951, %v2081
    %v2083 = vrot.slane %v1792, %v2082
    %v2084 = vlaneseq
    %v2085 = vshrl.u32 %v2084, 7
    %v2086 = vsub.s32 %v1951, %v2085
    %v2087 = vrot.slane %v1795, %v2086
    %v2088 = vlaneseq
    %v2089 = vshrl.u32 %v2088, 7
    %v2090 = vsub.s32 %v1951, %v2089
    %v2091 = vrot.slane %v1798, %v2090
    %v2092 = vlaneseq
    %v2093 = vshrl.u32 %v2092, 7
    %v2094 = vsub.s32 %v1951, %v2093
    %v2095 = vrot.slane %v1801, %v2094
    %v2096 = vlaneseq
    %v2097 = vshrl.u32 %v2096, 7
    %v2098 = vsub.s32 %v1951, %v2097
    %v2099 = vrot.slane %v1804, %v2098
    %v2100 = vlaneseq
    %v2101 = vshrl.u32 %v2100, 7
    %v2102 = vsub.s32 %v1951, %v2101
    %v2103 = vrot.slane %v1807, %v2102
    %v2104 = vlaneseq
    %v2105 = vshrl.u32 %v2104, 7
    %v2106 = vsub.s32 %v1951, %v2105
    %v2107 = vrot.slane %v1810, %v2106
    %v2108 = vlaneseq
    %v2109 = vshrl.u32 %v2108, 7
    %v2110 = vsub.s32 %v1951, %v2109
    %v2111 = vrot.slane %v1813, %v2110
    %v2112 = vlaneseq
    %v2113 = vshrl.u32 %v2112, 7
    %v2114 = vsub.s32 %v1951, %v2113
    %v2115 = vrot.slane %v1816, %v2114
    %v2116 = vlaneseq
    %v2117 = vshrl.u32 %v2116, 7
    %v2118 = vsub.s32 %v1951, %v2117
    %v2119 = vrot.slane %v1819, %v2118
    %v2120 = vlaneseq
    %v2121 = vshrl.u32 %v2120, 7
    %v2122 = vsub.s32 %v1951, %v2121
    %v2123 = vrot.slane %v1822, %v2122
    %v2124 = vlaneseq
    %v2125 = vshrl.u32 %v2124, 7
    %v2126 = vsub.s32 %v1951, %v2125
    %v2127 = vrot.slane %v1825, %v2126
    %v2128 = vlaneseq
    %v2129 = vshrl.u32 %v2128, 7
    %v2130 = vsub.s32 %v1951, %v2129
    %v2131 = vrot.slane %v1828, %v2130
    %v2132 = vlaneseq
    %v2133 = vshrl.u32 %v2132, 7
    %v2134 = vsub.s32 %v1951, %v2133
    %v2135 = vrot.slane %v1831, %v2134
    %v2136 = vlaneseq
    %v2137 = vshrl.u32 %v2136, 7
    %v2138 = vsub.s32 %v1951, %v2137
    %v2139 = vrot.slane %v1834, %v2138
    %v2140 = vlaneseq
    %v2141 = vshrl.u32 %v2140, 7
    %v2142 = vsub.s32 %v1951, %v2141
    %v2143 = vrot.slane %v1837, %v2142
    %v2144 = vlaneseq
    %v2145 = vshrl.u32 %v2144, 7
    %v2146 = vsub.s32 %v1951, %v2145
    %v2147 = vrot.slane %v1840, %v2146
    %v2148 = vlaneseq
    %v2149 = vshrl.u32 %v2148, 7
    %v2150 = vsub.s32 %v1951, %v2149
    %v2151 = vrot.slane %v1843, %v2150
    %v2152 = vlaneseq
    %v2153 = vshrl.u32 %v2152, 7
    %v2154 = vsub.s32 %v1951, %v2153
    %v2155 = vrot.slane %v1846, %v2154
    %v2156 = vlaneseq
    %v2157 = vshrl.u32 %v2156, 7
    %v2158 = vsub.s32 %v1951, %v2157
    %v2159 = vrot.slane %v1849, %v2158
    %v2160 = vlaneseq
    %v2161 = vshrl.u32 %v2160, 7
    %v2162 = vsub.s32 %v1951, %v2161
    %v2163 = vrot.slane %v1852, %v2162
    %v2164 = vlaneseq
    %v2165 = vshrl.u32 %v2164, 7
    %v2166 = vsub.s32 %v1951, %v2165
    %v2167 = vrot.slane %v1855, %v2166
    %v2168 = vlaneseq
    %v2169 = vshrl.u32 %v2168, 7
    %v2170 = vsub.s32 %v1951, %v2169
    %v2171 = vrot.slane %v1858, %v2170
    %v2172 = vlaneseq
    %v2173 = vshrl.u32 %v2172, 7
    %v2174 = vsub.s32 %v1951, %v2173
    %v2175 = vrot.slane %v1861, %v2174
    %v2176 = vlaneseq
    %v2177 = vshrl.u32 %v2176, 7
    %v2178 = vsub.s32 %v1951, %v2177
    %v2179 = vrot.slane %v1864, %v2178
    %v2180 = vlaneseq
    %v2181 = vshrl.u32 %v2180, 7
    %v2182 = vsub.s32 %v1951, %v2181
    %v2183 = vrot.slane %v1867, %v2182
    %v2184 = vlaneseq
    %v2185 = vshrl.u32 %v2184, 7
    %v2186 = vsub.s32 %v1951, %v2185
    %v2187 = vrot.slane %v1870, %v2186
    %v2188 = vlaneseq
    %v2189 = vshrl.u32 %v2188, 7
    %v2190 = vsub.s32 %v1951, %v2189
    %v2191 = vrot.slane %v1873, %v2190
    %v2192 = vlaneseq
    %v2193 = vshrl.u32 %v2192, 7
    %v2194 = vsub.s32 %v1951, %v2193
    %v2195 = vrot.slane %v1876, %v2194
    %v2196 = vlaneseq
    %v2197 = vshrl.u32 %v2196, 7
    %v2198 = vsub.s32 %v1951, %v2197
    %v2199 = vrot.slane %v1879, %v2198
    %v2200 = vlaneseq
    %v2201 = vshrl.u32 %v2200, 7
    %v2202 = vsub.s32 %v1951, %v2201
    %v2203 = vrot.slane %v1882, %v2202
    %v2204 = vlaneseq
    %v2205 = vshrl.u32 %v2204, 7
    %v2206 = vsub.s32 %v1951, %v2205
    %v2207 = vrot.slane %v1885, %v2206
    %vm2208 = vcmask 1041409
    %v2209 = vsel %vm2208, %v1959, %v1955
    %vm2210 = vcmask 1042434
    %v2211 = vsel %vm2210, %v1963, %v2209
    %vm2212 = vcmask 1043459
    %v2213 = vsel %vm2212, %v1967, %v2211
    %vm2214 = vcmask 1044484
    %v2215 = vsel %vm2214, %v1971, %v2213
    %vm2216 = vcmask 1045509
    %v2217 = vsel %vm2216, %v1975, %v2215
    %vm2218 = vcmask 1046534
    %v2219 = vsel %vm2218, %v1979, %v2217
    %vm2220 = vcmask 1047559
    %v2221 = vsel %vm2220, %v1983, %v2219
    %v2222 = vsel %vm2208, %v1991, %v1987
    %v2223 = vsel %vm2210, %v1995, %v2222
    %v2224 = vsel %vm2212, %v1999, %v2223
    %v2225 = vsel %vm2214, %v2003, %v2224
    %v2226 = vsel %vm2216, %v2007, %v2225
    %v2227 = vsel %vm2218, %v2011, %v2226
    %v2228 = vsel %vm2220, %v2015, %v2227
    %v2229 = vsel %vm2208, %v2023, %v2019
    %v2230 = vsel %vm2210, %v2027, %v2229
    %v2231 = vsel %vm2212, %v2031, %v2230
    %v2232 = vsel %vm2214, %v2035, %v2231
    %v2233 = vsel %vm2216, %v2039, %v2232
    %v2234 = vsel %vm2218, %v2043, %v2233
    %v2235 = vsel %vm2220, %v2047, %v2234
    %v2236 = vsel %vm2208, %v2055, %v2051
    %v2237 = vsel %vm2210, %v2059, %v2236
    %v2238 = vsel %vm2212, %v2063, %v2237
    %v2239 = vsel %vm2214, %v2067, %v2238
    %v2240 = vsel %vm2216, %v2071, %v2239
    %v2241 = vsel %vm2218, %v2075, %v2240
    %v2242 = vsel %vm2220, %v2079, %v2241
    %v2243 = vsel %vm2208, %v2087, %v2083
    %v2244 = vsel %vm2210, %v2091, %v2243
    %v2245 = vsel %vm2212, %v2095, %v2244
    %v2246 = vsel %vm2214, %v2099, %v2245
    %v2247 = vsel %vm2216, %v2103, %v2246
    %v2248 = vsel %vm2218, %v2107, %v2247
    %v2249 = vsel %vm2220, %v2111, %v2248
    %v2250 = vsel %vm2208, %v2119, %v2115
    %v2251 = vsel %vm2210, %v2123, %v2250
    %v2252 = vsel %vm2212, %v2127, %v2251
    %v2253 = vsel %vm2214, %v2131, %v2252
    %v2254 = vsel %vm2216, %v2135, %v2253
    %v2255 = vsel %vm2218, %v2139, %v2254
    %v2256 = vsel %vm2220, %v2143, %v2255
    %v2257 = vsel %vm2208, %v2151, %v2147
    %v2258 = vsel %vm2210, %v2155, %v2257
    %v2259 = vsel %vm2212, %v2159, %v2258
    %v2260 = vsel %vm2214, %v2163, %v2259
    %v2261 = vsel %vm2216, %v2167, %v2260
    %v2262 = vsel %vm2218, %v2171, %v2261
    %v2263 = vsel %vm2220, %v2175, %v2262
    %v2264 = vsel %vm2208, %v2183, %v2179
    %v2265 = vsel %vm2210, %v2187, %v2264
    %v2266 = vsel %vm2212, %v2191, %v2265
    %v2267 = vsel %vm2214, %v2195, %v2266
    %v2268 = vsel %vm2216, %v2199, %v2267
    %v2269 = vsel %vm2218, %v2203, %v2268
    %v2270 = vsel %vm2220, %v2207, %v2269
    %vm2279 = vcmask 64512
    %v2280 = vsel %vm2279, %v2221, -inf
    %2281 = vmax.xlane.f32.xlu0 %v2280
    %v2282 = vpop.xlane.xlu0 %2281
    %v2283 = vsel %vm2279, %v2228, -inf
    %2284 = vmax.xlane.f32.xlu0 %v2283
    %v2285 = vpop.xlane.xlu0 %2284
    %v2286 = vsel %vm2279, %v2235, -inf
    %2287 = vmax.xlane.f32.xlu0 %v2286
    %v2288 = vpop.xlane.xlu0 %2287
    %v2289 = vsel %vm2279, %v2242, -inf
    %2290 = vmax.xlane.f32.xlu0 %v2289
    %v2291 = vpop.xlane.xlu0 %2290
    %v2292 = vsel %vm2279, %v2249, -inf
    %2293 = vmax.xlane.f32.xlu0 %v2292
    %v2294 = vpop.xlane.xlu0 %2293
    %v2295 = vsel %vm2279, %v2256, -inf
    %2296 = vmax.xlane.f32.xlu0 %v2295
    %v2297 = vpop.xlane.xlu0 %2296
    %v2298 = vsel %vm2279, %v2263, -inf
    %2299 = vmax.xlane.f32.xlu0 %v2298
    %v2300 = vpop.xlane.xlu0 %2299
    %v2301 = vsel %vm2279, %v2270, -inf
    %2302 = vmax.xlane.f32.xlu0 %v2301
    %v2303 = vpop.xlane.xlu0 %2302
    %v2312 = vlaneseq
    %v2313 = vshrl.u32 %v2312, 7
    %v2314 = vsub.s32 0, %v2313
    %v2315 = vrot.slane %v2282, %v2314
    %v2316 = vlaneseq
    %v2317 = vshrl.u32 %v2316, 7
    %v2318 = vsub.s32 1, %v2317
    %v2319 = vrot.slane %v2282, %v2318
    %v2320 = vlaneseq
    %v2321 = vshrl.u32 %v2320, 7
    %v2322 = vsub.s32 2, %v2321
    %v2323 = vrot.slane %v2282, %v2322
    %v2324 = vlaneseq
    %v2325 = vshrl.u32 %v2324, 7
    %v2326 = vsub.s32 3, %v2325
    %v2327 = vrot.slane %v2282, %v2326
    %v2328 = vlaneseq
    %v2329 = vshrl.u32 %v2328, 7
    %v2330 = vsub.s32 4, %v2329
    %v2331 = vrot.slane %v2282, %v2330
    %v2332 = vlaneseq
    %v2333 = vshrl.u32 %v2332, 7
    %v2334 = vsub.s32 5, %v2333
    %v2335 = vrot.slane %v2282, %v2334
    %v2336 = vlaneseq
    %v2337 = vshrl.u32 %v2336, 7
    %v2338 = vsub.s32 6, %v2337
    %v2339 = vrot.slane %v2282, %v2338
    %v2340 = vlaneseq
    %v2341 = vshrl.u32 %v2340, 7
    %v2342 = vsub.s32 7, %v2341
    %v2343 = vrot.slane %v2282, %v2342
    %v2344 = vlaneseq
    %v2345 = vshrl.u32 %v2344, 7
    %v2346 = vsub.s32 0, %v2345
    %v2347 = vrot.slane %v2285, %v2346
    %v2348 = vlaneseq
    %v2349 = vshrl.u32 %v2348, 7
    %v2350 = vsub.s32 1, %v2349
    %v2351 = vrot.slane %v2285, %v2350
    %v2352 = vlaneseq
    %v2353 = vshrl.u32 %v2352, 7
    %v2354 = vsub.s32 2, %v2353
    %v2355 = vrot.slane %v2285, %v2354
    %v2356 = vlaneseq
    %v2357 = vshrl.u32 %v2356, 7
    %v2358 = vsub.s32 3, %v2357
    %v2359 = vrot.slane %v2285, %v2358
    %v2360 = vlaneseq
    %v2361 = vshrl.u32 %v2360, 7
    %v2362 = vsub.s32 4, %v2361
    %v2363 = vrot.slane %v2285, %v2362
    %v2364 = vlaneseq
    %v2365 = vshrl.u32 %v2364, 7
    %v2366 = vsub.s32 5, %v2365
    %v2367 = vrot.slane %v2285, %v2366
    %v2368 = vlaneseq
    %v2369 = vshrl.u32 %v2368, 7
    %v2370 = vsub.s32 6, %v2369
    %v2371 = vrot.slane %v2285, %v2370
    %v2372 = vlaneseq
    %v2373 = vshrl.u32 %v2372, 7
    %v2374 = vsub.s32 7, %v2373
    %v2375 = vrot.slane %v2285, %v2374
    %v2376 = vlaneseq
    %v2377 = vshrl.u32 %v2376, 7
    %v2378 = vsub.s32 0, %v2377
    %v2379 = vrot.slane %v2288, %v2378
    %v2380 = vlaneseq
    %v2381 = vshrl.u32 %v2380, 7
    %v2382 = vsub.s32 1, %v2381
    %v2383 = vrot.slane %v2288, %v2382
    %v2384 = vlaneseq
    %v2385 = vshrl.u32 %v2384, 7
    %v2386 = vsub.s32 2, %v2385
    %v2387 = vrot.slane %v2288, %v2386
    %v2388 = vlaneseq
    %v2389 = vshrl.u32 %v2388, 7
    %v2390 = vsub.s32 3, %v2389
    %v2391 = vrot.slane %v2288, %v2390
    %v2392 = vlaneseq
    %v2393 = vshrl.u32 %v2392, 7
    %v2394 = vsub.s32 4, %v2393
    %v2395 = vrot.slane %v2288, %v2394
    %v2396 = vlaneseq
    %v2397 = vshrl.u32 %v2396, 7
    %v2398 = vsub.s32 5, %v2397
    %v2399 = vrot.slane %v2288, %v2398
    %v2400 = vlaneseq
    %v2401 = vshrl.u32 %v2400, 7
    %v2402 = vsub.s32 6, %v2401
    %v2403 = vrot.slane %v2288, %v2402
    %v2404 = vlaneseq
    %v2405 = vshrl.u32 %v2404, 7
    %v2406 = vsub.s32 7, %v2405
    %v2407 = vrot.slane %v2288, %v2406
    %v2408 = vlaneseq
    %v2409 = vshrl.u32 %v2408, 7
    %v2410 = vsub.s32 0, %v2409
    %v2411 = vrot.slane %v2291, %v2410
    %v2412 = vlaneseq
    %v2413 = vshrl.u32 %v2412, 7
    %v2414 = vsub.s32 1, %v2413
    %v2415 = vrot.slane %v2291, %v2414
    %v2416 = vlaneseq
    %v2417 = vshrl.u32 %v2416, 7
    %v2418 = vsub.s32 2, %v2417
    %v2419 = vrot.slane %v2291, %v2418
    %v2420 = vlaneseq
    %v2421 = vshrl.u32 %v2420, 7
    %v2422 = vsub.s32 3, %v2421
    %v2423 = vrot.slane %v2291, %v2422
    %v2424 = vlaneseq
    %v2425 = vshrl.u32 %v2424, 7
    %v2426 = vsub.s32 4, %v2425
    %v2427 = vrot.slane %v2291, %v2426
    %v2428 = vlaneseq
    %v2429 = vshrl.u32 %v2428, 7
    %v2430 = vsub.s32 5, %v2429
    %v2431 = vrot.slane %v2291, %v2430
    %v2432 = vlaneseq
    %v2433 = vshrl.u32 %v2432, 7
    %v2434 = vsub.s32 6, %v2433
    %v2435 = vrot.slane %v2291, %v2434
    %v2436 = vlaneseq
    %v2437 = vshrl.u32 %v2436, 7
    %v2438 = vsub.s32 7, %v2437
    %v2439 = vrot.slane %v2291, %v2438
    %v2440 = vlaneseq
    %v2441 = vshrl.u32 %v2440, 7
    %v2442 = vsub.s32 0, %v2441
    %v2443 = vrot.slane %v2294, %v2442
    %v2444 = vlaneseq
    %v2445 = vshrl.u32 %v2444, 7
    %v2446 = vsub.s32 1, %v2445
    %v2447 = vrot.slane %v2294, %v2446
    %v2448 = vlaneseq
    %v2449 = vshrl.u32 %v2448, 7
    %v2450 = vsub.s32 2, %v2449
    %v2451 = vrot.slane %v2294, %v2450
    %v2452 = vlaneseq
    %v2453 = vshrl.u32 %v2452, 7
    %v2454 = vsub.s32 3, %v2453
    %v2455 = vrot.slane %v2294, %v2454
    %v2456 = vlaneseq
    %v2457 = vshrl.u32 %v2456, 7
    %v2458 = vsub.s32 4, %v2457
    %v2459 = vrot.slane %v2294, %v2458
    %v2460 = vlaneseq
    %v2461 = vshrl.u32 %v2460, 7
    %v2462 = vsub.s32 5, %v2461
    %v2463 = vrot.slane %v2294, %v2462
    %v2464 = vlaneseq
    %v2465 = vshrl.u32 %v2464, 7
    %v2466 = vsub.s32 6, %v2465
    %v2467 = vrot.slane %v2294, %v2466
    %v2468 = vlaneseq
    %v2469 = vshrl.u32 %v2468, 7
    %v2470 = vsub.s32 7, %v2469
    %v2471 = vrot.slane %v2294, %v2470
    %v2472 = vlaneseq
    %v2473 = vshrl.u32 %v2472, 7
    %v2474 = vsub.s32 0, %v2473
    %v2475 = vrot.slane %v2297, %v2474
    %v2476 = vlaneseq
    %v2477 = vshrl.u32 %v2476, 7
    %v2478 = vsub.s32 1, %v2477
    %v2479 = vrot.slane %v2297, %v2478
    %v2480 = vlaneseq
    %v2481 = vshrl.u32 %v2480, 7
    %v2482 = vsub.s32 2, %v2481
    %v2483 = vrot.slane %v2297, %v2482
    %v2484 = vlaneseq
    %v2485 = vshrl.u32 %v2484, 7
    %v2486 = vsub.s32 3, %v2485
    %v2487 = vrot.slane %v2297, %v2486
    %v2488 = vlaneseq
    %v2489 = vshrl.u32 %v2488, 7
    %v2490 = vsub.s32 4, %v2489
    %v2491 = vrot.slane %v2297, %v2490
    %v2492 = vlaneseq
    %v2493 = vshrl.u32 %v2492, 7
    %v2494 = vsub.s32 5, %v2493
    %v2495 = vrot.slane %v2297, %v2494
    %v2496 = vlaneseq
    %v2497 = vshrl.u32 %v2496, 7
    %v2498 = vsub.s32 6, %v2497
    %v2499 = vrot.slane %v2297, %v2498
    %v2500 = vlaneseq
    %v2501 = vshrl.u32 %v2500, 7
    %v2502 = vsub.s32 7, %v2501
    %v2503 = vrot.slane %v2297, %v2502
    %v2504 = vlaneseq
    %v2505 = vshrl.u32 %v2504, 7
    %v2506 = vsub.s32 0, %v2505
    %v2507 = vrot.slane %v2300, %v2506
    %v2508 = vlaneseq
    %v2509 = vshrl.u32 %v2508, 7
    %v2510 = vsub.s32 1, %v2509
    %v2511 = vrot.slane %v2300, %v2510
    %v2512 = vlaneseq
    %v2513 = vshrl.u32 %v2512, 7
    %v2514 = vsub.s32 2, %v2513
    %v2515 = vrot.slane %v2300, %v2514
    %v2516 = vlaneseq
    %v2517 = vshrl.u32 %v2516, 7
    %v2518 = vsub.s32 3, %v2517
    %v2519 = vrot.slane %v2300, %v2518
    %v2520 = vlaneseq
    %v2521 = vshrl.u32 %v2520, 7
    %v2522 = vsub.s32 4, %v2521
    %v2523 = vrot.slane %v2300, %v2522
    %v2524 = vlaneseq
    %v2525 = vshrl.u32 %v2524, 7
    %v2526 = vsub.s32 5, %v2525
    %v2527 = vrot.slane %v2300, %v2526
    %v2528 = vlaneseq
    %v2529 = vshrl.u32 %v2528, 7
    %v2530 = vsub.s32 6, %v2529
    %v2531 = vrot.slane %v2300, %v2530
    %v2532 = vlaneseq
    %v2533 = vshrl.u32 %v2532, 7
    %v2534 = vsub.s32 7, %v2533
    %v2535 = vrot.slane %v2300, %v2534
    %v2536 = vlaneseq
    %v2537 = vshrl.u32 %v2536, 7
    %v2538 = vsub.s32 0, %v2537
    %v2539 = vrot.slane %v2303, %v2538
    %v2540 = vlaneseq
    %v2541 = vshrl.u32 %v2540, 7
    %v2542 = vsub.s32 1, %v2541
    %v2543 = vrot.slane %v2303, %v2542
    %v2544 = vlaneseq
    %v2545 = vshrl.u32 %v2544, 7
    %v2546 = vsub.s32 2, %v2545
    %v2547 = vrot.slane %v2303, %v2546
    %v2548 = vlaneseq
    %v2549 = vshrl.u32 %v2548, 7
    %v2550 = vsub.s32 3, %v2549
    %v2551 = vrot.slane %v2303, %v2550
    %v2552 = vlaneseq
    %v2553 = vshrl.u32 %v2552, 7
    %v2554 = vsub.s32 4, %v2553
    %v2555 = vrot.slane %v2303, %v2554
    %v2556 = vlaneseq
    %v2557 = vshrl.u32 %v2556, 7
    %v2558 = vsub.s32 5, %v2557
    %v2559 = vrot.slane %v2303, %v2558
    %v2560 = vlaneseq
    %v2561 = vshrl.u32 %v2560, 7
    %v2562 = vsub.s32 6, %v2561
    %v2563 = vrot.slane %v2303, %v2562
    %v2564 = vlaneseq
    %v2565 = vshrl.u32 %v2564, 7
    %v2566 = vsub.s32 7, %v2565
    %v2567 = vrot.slane %v2303, %v2566
    %v2632 = vsub.f32 %v1696, %v2315
    %v2633 = vsub.f32 %v1699, %v2319
    %v2634 = vsub.f32 %v1702, %v2323
    %v2635 = vsub.f32 %v1705, %v2327
    %v2636 = vsub.f32 %v1708, %v2331
    %v2637 = vsub.f32 %v1711, %v2335
    %v2638 = vsub.f32 %v1714, %v2339
    %v2639 = vsub.f32 %v1717, %v2343
    %v2640 = vsub.f32 %v1720, %v2347
    %v2641 = vsub.f32 %v1723, %v2351
    %v2642 = vsub.f32 %v1726, %v2355
    %v2643 = vsub.f32 %v1729, %v2359
    %v2644 = vsub.f32 %v1732, %v2363
    %v2645 = vsub.f32 %v1735, %v2367
    %v2646 = vsub.f32 %v1738, %v2371
    %v2647 = vsub.f32 %v1741, %v2375
    %v2648 = vsub.f32 %v1744, %v2379
    %v2649 = vsub.f32 %v1747, %v2383
    %v2650 = vsub.f32 %v1750, %v2387
    %v2651 = vsub.f32 %v1753, %v2391
    %v2652 = vsub.f32 %v1756, %v2395
    %v2653 = vsub.f32 %v1759, %v2399
    %v2654 = vsub.f32 %v1762, %v2403
    %v2655 = vsub.f32 %v1765, %v2407
    %v2656 = vsub.f32 %v1768, %v2411
    %v2657 = vsub.f32 %v1771, %v2415
    %v2658 = vsub.f32 %v1774, %v2419
    %v2659 = vsub.f32 %v1777, %v2423
    %v2660 = vsub.f32 %v1780, %v2427
    %v2661 = vsub.f32 %v1783, %v2431
    %v2662 = vsub.f32 %v1786, %v2435
    %v2663 = vsub.f32 %v1789, %v2439
    %v2664 = vsub.f32 %v1792, %v2443
    %v2665 = vsub.f32 %v1795, %v2447
    %v2666 = vsub.f32 %v1798, %v2451
    %v2667 = vsub.f32 %v1801, %v2455
    %v2668 = vsub.f32 %v1804, %v2459
    %v2669 = vsub.f32 %v1807, %v2463
    %v2670 = vsub.f32 %v1810, %v2467
    %v2671 = vsub.f32 %v1813, %v2471
    %v2672 = vsub.f32 %v1816, %v2475
    %v2673 = vsub.f32 %v1819, %v2479
    %v2674 = vsub.f32 %v1822, %v2483
    %v2675 = vsub.f32 %v1825, %v2487
    %v2676 = vsub.f32 %v1828, %v2491
    %v2677 = vsub.f32 %v1831, %v2495
    %v2678 = vsub.f32 %v1834, %v2499
    %v2679 = vsub.f32 %v1837, %v2503
    %v2680 = vsub.f32 %v1840, %v2507
    %v2681 = vsub.f32 %v1843, %v2511
    %v2682 = vsub.f32 %v1846, %v2515
    %v2683 = vsub.f32 %v1849, %v2519
    %v2684 = vsub.f32 %v1852, %v2523
    %v2685 = vsub.f32 %v1855, %v2527
    %v2686 = vsub.f32 %v1858, %v2531
    %v2687 = vsub.f32 %v1861, %v2535
    %v2688 = vsub.f32 %v1864, %v2539
    %v2689 = vsub.f32 %v1867, %v2543
    %v2690 = vsub.f32 %v1870, %v2547
    %v2691 = vsub.f32 %v1873, %v2551
    %v2692 = vsub.f32 %v1876, %v2555
    %v2693 = vsub.f32 %v1879, %v2559
    %v2694 = vsub.f32 %v1882, %v2563
    %v2695 = vsub.f32 %v1885, %v2567
    %v2696 = vmul.f32 %v2632, 1.442695
    %v2697 = vpow.pop %v2696
    %v2698 = vmul.f32 %v2633, 1.442695
    %v2699 = vpow.pop %v2698
    %v2700 = vmul.f32 %v2634, 1.442695
    %v2701 = vpow.pop %v2700
    %v2702 = vmul.f32 %v2635, 1.442695
    %v2703 = vpow.pop %v2702
    %v2704 = vmul.f32 %v2636, 1.442695
    %v2705 = vpow.pop %v2704
    %v2706 = vmul.f32 %v2637, 1.442695
    %v2707 = vpow.pop %v2706
    %v2708 = vmul.f32 %v2638, 1.442695
    %v2709 = vpow.pop %v2708
    %v2710 = vmul.f32 %v2639, 1.442695
    %v2711 = vpow.pop %v2710
    %v2712 = vmul.f32 %v2640, 1.442695
    %v2713 = vpow.pop %v2712
    %v2714 = vmul.f32 %v2641, 1.442695
    %v2715 = vpow.pop %v2714
    %v2716 = vmul.f32 %v2642, 1.442695
    %v2717 = vpow.pop %v2716
    %v2718 = vmul.f32 %v2643, 1.442695
    %v2719 = vpow.pop %v2718
    %v2720 = vmul.f32 %v2644, 1.442695
    %v2721 = vpow.pop %v2720
    %v2722 = vmul.f32 %v2645, 1.442695
    %v2723 = vpow.pop %v2722
    %v2724 = vmul.f32 %v2646, 1.442695
    %v2725 = vpow.pop %v2724
    %v2726 = vmul.f32 %v2647, 1.442695
    %v2727 = vpow.pop %v2726
    %v2728 = vmul.f32 %v2648, 1.442695
    %v2729 = vpow.pop %v2728
    %v2730 = vmul.f32 %v2649, 1.442695
    %v2731 = vpow.pop %v2730
    %v2732 = vmul.f32 %v2650, 1.442695
    %v2733 = vpow.pop %v2732
    %v2734 = vmul.f32 %v2651, 1.442695
    %v2735 = vpow.pop %v2734
    %v2736 = vmul.f32 %v2652, 1.442695
    %v2737 = vpow.pop %v2736
    %v2738 = vmul.f32 %v2653, 1.442695
    %v2739 = vpow.pop %v2738
    %v2740 = vmul.f32 %v2654, 1.442695
    %v2741 = vpow.pop %v2740
    %v2742 = vmul.f32 %v2655, 1.442695
    %v2743 = vpow.pop %v2742
    %v2744 = vmul.f32 %v2656, 1.442695
    %v2745 = vpow.pop %v2744
    %v2746 = vmul.f32 %v2657, 1.442695
    %v2747 = vpow.pop %v2746
    %v2748 = vmul.f32 %v2658, 1.442695
    %v2749 = vpow.pop %v2748
    %v2750 = vmul.f32 %v2659, 1.442695
    %v2751 = vpow.pop %v2750
    %v2752 = vmul.f32 %v2660, 1.442695
    %v2753 = vpow.pop %v2752
    %v2754 = vmul.f32 %v2661, 1.442695
    %v2755 = vpow.pop %v2754
    %v2756 = vmul.f32 %v2662, 1.442695
    %v2757 = vpow.pop %v2756
    %v2758 = vmul.f32 %v2663, 1.442695
    %v2759 = vpow.pop %v2758
    %v2760 = vmul.f32 %v2664, 1.442695
    %v2761 = vpow.pop %v2760
    %v2762 = vmul.f32 %v2665, 1.442695
    %v2763 = vpow.pop %v2762
    %v2764 = vmul.f32 %v2666, 1.442695
    %v2765 = vpow.pop %v2764
    %v2766 = vmul.f32 %v2667, 1.442695
    %v2767 = vpow.pop %v2766
    %v2768 = vmul.f32 %v2668, 1.442695
    %v2769 = vpow.pop %v2768
    %v2770 = vmul.f32 %v2669, 1.442695
    %v2771 = vpow.pop %v2770
    %v2772 = vmul.f32 %v2670, 1.442695
    %v2773 = vpow.pop %v2772
    %v2774 = vmul.f32 %v2671, 1.442695
    %v2775 = vpow.pop %v2774
    %v2776 = vmul.f32 %v2672, 1.442695
    %v2777 = vpow.pop %v2776
    %v2778 = vmul.f32 %v2673, 1.442695
    %v2779 = vpow.pop %v2778
    %v2780 = vmul.f32 %v2674, 1.442695
    %v2781 = vpow.pop %v2780
    %v2782 = vmul.f32 %v2675, 1.442695
    %v2783 = vpow.pop %v2782
    %v2784 = vmul.f32 %v2676, 1.442695
    %v2785 = vpow.pop %v2784
    %v2786 = vmul.f32 %v2677, 1.442695
    %v2787 = vpow.pop %v2786
    %v2788 = vmul.f32 %v2678, 1.442695
    %v2789 = vpow.pop %v2788
    %v2790 = vmul.f32 %v2679, 1.442695
    %v2791 = vpow.pop %v2790
    %v2792 = vmul.f32 %v2680, 1.442695
    %v2793 = vpow.pop %v2792
    %v2794 = vmul.f32 %v2681, 1.442695
    %v2795 = vpow.pop %v2794
    %v2796 = vmul.f32 %v2682, 1.442695
    %v2797 = vpow.pop %v2796
    %v2798 = vmul.f32 %v2683, 1.442695
    %v2799 = vpow.pop %v2798
    %v2800 = vmul.f32 %v2684, 1.442695
    %v2801 = vpow.pop %v2800
    %v2802 = vmul.f32 %v2685, 1.442695
    %v2803 = vpow.pop %v2802
    %v2804 = vmul.f32 %v2686, 1.442695
    %v2805 = vpow.pop %v2804
    %v2806 = vmul.f32 %v2687, 1.442695
    %v2807 = vpow.pop %v2806
    %v2808 = vmul.f32 %v2688, 1.442695
    %v2809 = vpow.pop %v2808
    %v2810 = vmul.f32 %v2689, 1.442695
    %v2811 = vpow.pop %v2810
    %v2812 = vmul.f32 %v2690, 1.442695
    %v2813 = vpow.pop %v2812
    %v2814 = vmul.f32 %v2691, 1.442695
    %v2815 = vpow.pop %v2814
    %v2816 = vmul.f32 %v2692, 1.442695
    %v2817 = vpow.pop %v2816
    %v2818 = vmul.f32 %v2693, 1.442695
    %v2819 = vpow.pop %v2818
    %v2820 = vmul.f32 %v2694, 1.442695
    %v2821 = vpow.pop %v2820
    %v2822 = vmul.f32 %v2695, 1.442695
    %v2823 = vpow.pop %v2822
    %2888 = vset.pattern.permute.xlu0 0
    %2889 = vperm.xlu0 %2888, %v2697
    %v2890 = vpop.permute.xlu0 %2889
    %2891 = vset.pattern.permute.xlu0 0
    %2892 = vperm.xlu0 %2891, %v2699
    %v2893 = vpop.permute.xlu0 %2892
    %2894 = vset.pattern.permute.xlu0 0
    %2895 = vperm.xlu0 %2894, %v2701
    %v2896 = vpop.permute.xlu0 %2895
    %2897 = vset.pattern.permute.xlu0 0
    %2898 = vperm.xlu0 %2897, %v2703
    %v2899 = vpop.permute.xlu0 %2898
    %2900 = vset.pattern.permute.xlu0 0
    %2901 = vperm.xlu0 %2900, %v2705
    %v2902 = vpop.permute.xlu0 %2901
    %2903 = vset.pattern.permute.xlu0 0
    %2904 = vperm.xlu0 %2903, %v2707
    %v2905 = vpop.permute.xlu0 %2904
    %2906 = vset.pattern.permute.xlu0 0
    %2907 = vperm.xlu0 %2906, %v2709
    %v2908 = vpop.permute.xlu0 %2907
    %2909 = vset.pattern.permute.xlu0 0
    %2910 = vperm.xlu0 %2909, %v2711
    %v2911 = vpop.permute.xlu0 %2910
    %2912 = vset.pattern.permute.xlu0 0
    %2913 = vperm.xlu0 %2912, %v2713
    %v2914 = vpop.permute.xlu0 %2913
    %2915 = vset.pattern.permute.xlu0 0
    %2916 = vperm.xlu0 %2915, %v2715
    %v2917 = vpop.permute.xlu0 %2916
    %2918 = vset.pattern.permute.xlu0 0
    %2919 = vperm.xlu0 %2918, %v2717
    %v2920 = vpop.permute.xlu0 %2919
    %2921 = vset.pattern.permute.xlu0 0
    %2922 = vperm.xlu0 %2921, %v2719
    %v2923 = vpop.permute.xlu0 %2922
    %2924 = vset.pattern.permute.xlu0 0
    %2925 = vperm.xlu0 %2924, %v2721
    %v2926 = vpop.permute.xlu0 %2925
    %2927 = vset.pattern.permute.xlu0 0
    %2928 = vperm.xlu0 %2927, %v2723
    %v2929 = vpop.permute.xlu0 %2928
    %2930 = vset.pattern.permute.xlu0 0
    %2931 = vperm.xlu0 %2930, %v2725
    %v2932 = vpop.permute.xlu0 %2931
    %2933 = vset.pattern.permute.xlu0 0
    %2934 = vperm.xlu0 %2933, %v2727
    %v2935 = vpop.permute.xlu0 %2934
    %2936 = vset.pattern.permute.xlu0 0
    %2937 = vperm.xlu0 %2936, %v2729
    %v2938 = vpop.permute.xlu0 %2937
    %2939 = vset.pattern.permute.xlu0 0
    %2940 = vperm.xlu0 %2939, %v2731
    %v2941 = vpop.permute.xlu0 %2940
    %2942 = vset.pattern.permute.xlu0 0
    %2943 = vperm.xlu0 %2942, %v2733
    %v2944 = vpop.permute.xlu0 %2943
    %2945 = vset.pattern.permute.xlu0 0
    %2946 = vperm.xlu0 %2945, %v2735
    %v2947 = vpop.permute.xlu0 %2946
    %2948 = vset.pattern.permute.xlu0 0
    %2949 = vperm.xlu0 %2948, %v2737
    %v2950 = vpop.permute.xlu0 %2949
    %2951 = vset.pattern.permute.xlu0 0
    %2952 = vperm.xlu0 %2951, %v2739
    %v2953 = vpop.permute.xlu0 %2952
    %2954 = vset.pattern.permute.xlu0 0
    %2955 = vperm.xlu0 %2954, %v2741
    %v2956 = vpop.permute.xlu0 %2955
    %2957 = vset.pattern.permute.xlu0 0
    %2958 = vperm.xlu0 %2957, %v2743
    %v2959 = vpop.permute.xlu0 %2958
    %2960 = vset.pattern.permute.xlu0 0
    %2961 = vperm.xlu0 %2960, %v2745
    %v2962 = vpop.permute.xlu0 %2961
    %2963 = vset.pattern.permute.xlu0 0
    %2964 = vperm.xlu0 %2963, %v2747
    %v2965 = vpop.permute.xlu0 %2964
    %2966 = vset.pattern.permute.xlu0 0
    %2967 = vperm.xlu0 %2966, %v2749
    %v2968 = vpop.permute.xlu0 %2967
    %2969 = vset.pattern.permute.xlu0 0
    %2970 = vperm.xlu0 %2969, %v2751
    %v2971 = vpop.permute.xlu0 %2970
    %2972 = vset.pattern.permute.xlu0 0
    %2973 = vperm.xlu0 %2972, %v2753
    %v2974 = vpop.permute.xlu0 %2973
    %2975 = vset.pattern.permute.xlu0 0
    %2976 = vperm.xlu0 %2975, %v2755
    %v2977 = vpop.permute.xlu0 %2976
    %2978 = vset.pattern.permute.xlu0 0
    %2979 = vperm.xlu0 %2978, %v2757
    %v2980 = vpop.permute.xlu0 %2979
    %2981 = vset.pattern.permute.xlu0 0
    %2982 = vperm.xlu0 %2981, %v2759
    %v2983 = vpop.permute.xlu0 %2982
    %2984 = vset.pattern.permute.xlu0 0
    %2985 = vperm.xlu0 %2984, %v2761
    %v2986 = vpop.permute.xlu0 %2985
    %2987 = vset.pattern.permute.xlu0 0
    %2988 = vperm.xlu0 %2987, %v2763
    %v2989 = vpop.permute.xlu0 %2988
    %2990 = vset.pattern.permute.xlu0 0
    %2991 = vperm.xlu0 %2990, %v2765
    %v2992 = vpop.permute.xlu0 %2991
    %2993 = vset.pattern.permute.xlu0 0
    %2994 = vperm.xlu0 %2993, %v2767
    %v2995 = vpop.permute.xlu0 %2994
    %2996 = vset.pattern.permute.xlu0 0
    %2997 = vperm.xlu0 %2996, %v2769
    %v2998 = vpop.permute.xlu0 %2997
    %2999 = vset.pattern.permute.xlu0 0
    %3000 = vperm.xlu0 %2999, %v2771
    %v3001 = vpop.permute.xlu0 %3000
    %3002 = vset.pattern.permute.xlu0 0
    %3003 = vperm.xlu0 %3002, %v2773
    %v3004 = vpop.permute.xlu0 %3003
    %3005 = vset.pattern.permute.xlu0 0
    %3006 = vperm.xlu0 %3005, %v2775
    %v3007 = vpop.permute.xlu0 %3006
    %3008 = vset.pattern.permute.xlu0 0
    %3009 = vperm.xlu0 %3008, %v2777
    %v3010 = vpop.permute.xlu0 %3009
    %3011 = vset.pattern.permute.xlu0 0
    %3012 = vperm.xlu0 %3011, %v2779
    %v3013 = vpop.permute.xlu0 %3012
    %3014 = vset.pattern.permute.xlu0 0
    %3015 = vperm.xlu0 %3014, %v2781
    %v3016 = vpop.permute.xlu0 %3015
    %3017 = vset.pattern.permute.xlu0 0
    %3018 = vperm.xlu0 %3017, %v2783
    %v3019 = vpop.permute.xlu0 %3018
    %3020 = vset.pattern.permute.xlu0 0
    %3021 = vperm.xlu0 %3020, %v2785
    %v3022 = vpop.permute.xlu0 %3021
    %3023 = vset.pattern.permute.xlu0 0
    %3024 = vperm.xlu0 %3023, %v2787
    %v3025 = vpop.permute.xlu0 %3024
    %3026 = vset.pattern.permute.xlu0 0
    %3027 = vperm.xlu0 %3026, %v2789
    %v3028 = vpop.permute.xlu0 %3027
    %3029 = vset.pattern.permute.xlu0 0
    %3030 = vperm.xlu0 %3029, %v2791
    %v3031 = vpop.permute.xlu0 %3030
    %3032 = vset.pattern.permute.xlu0 0
    %3033 = vperm.xlu0 %3032, %v2793
    %v3034 = vpop.permute.xlu0 %3033
    %3035 = vset.pattern.permute.xlu0 0
    %3036 = vperm.xlu0 %3035, %v2795
    %v3037 = vpop.permute.xlu0 %3036
    %3038 = vset.pattern.permute.xlu0 0
    %3039 = vperm.xlu0 %3038, %v2797
    %v3040 = vpop.permute.xlu0 %3039
    %3041 = vset.pattern.permute.xlu0 0
    %3042 = vperm.xlu0 %3041, %v2799
    %v3043 = vpop.permute.xlu0 %3042
    %3044 = vset.pattern.permute.xlu0 0
    %3045 = vperm.xlu0 %3044, %v2801
    %v3046 = vpop.permute.xlu0 %3045
    %3047 = vset.pattern.permute.xlu0 0
    %3048 = vperm.xlu0 %3047, %v2803
    %v3049 = vpop.permute.xlu0 %3048
    %3050 = vset.pattern.permute.xlu0 0
    %3051 = vperm.xlu0 %3050, %v2805
    %v3052 = vpop.permute.xlu0 %3051
    %3053 = vset.pattern.permute.xlu0 0
    %3054 = vperm.xlu0 %3053, %v2807
    %v3055 = vpop.permute.xlu0 %3054
    %3056 = vset.pattern.permute.xlu0 0
    %3057 = vperm.xlu0 %3056, %v2809
    %v3058 = vpop.permute.xlu0 %3057
    %3059 = vset.pattern.permute.xlu0 0
    %3060 = vperm.xlu0 %3059, %v2811
    %v3061 = vpop.permute.xlu0 %3060
    %3062 = vset.pattern.permute.xlu0 0
    %3063 = vperm.xlu0 %3062, %v2813
    %v3064 = vpop.permute.xlu0 %3063
    %3065 = vset.pattern.permute.xlu0 0
    %3066 = vperm.xlu0 %3065, %v2815
    %v3067 = vpop.permute.xlu0 %3066
    %3068 = vset.pattern.permute.xlu0 0
    %3069 = vperm.xlu0 %3068, %v2817
    %v3070 = vpop.permute.xlu0 %3069
    %3071 = vset.pattern.permute.xlu0 0
    %3072 = vperm.xlu0 %3071, %v2819
    %v3073 = vpop.permute.xlu0 %3072
    %3074 = vset.pattern.permute.xlu0 0
    %3075 = vperm.xlu0 %3074, %v2821
    %v3076 = vpop.permute.xlu0 %3075
    %3077 = vset.pattern.permute.xlu0 0
    %3078 = vperm.xlu0 %3077, %v2823
    %v3079 = vpop.permute.xlu0 %3078
    %v3080 = vlaneseq
    %v3081 = vshrl.u32 %v3080, 7
    %v3082 = vsub.s32 %v1951, %v3081
    %v3083 = vrot.slane %v2890, %v3082
    %v3084 = vlaneseq
    %v3085 = vshrl.u32 %v3084, 7
    %v3086 = vsub.s32 %v1951, %v3085
    %v3087 = vrot.slane %v2893, %v3086
    %v3088 = vlaneseq
    %v3089 = vshrl.u32 %v3088, 7
    %v3090 = vsub.s32 %v1951, %v3089
    %v3091 = vrot.slane %v2896, %v3090
    %v3092 = vlaneseq
    %v3093 = vshrl.u32 %v3092, 7
    %v3094 = vsub.s32 %v1951, %v3093
    %v3095 = vrot.slane %v2899, %v3094
    %v3096 = vlaneseq
    %v3097 = vshrl.u32 %v3096, 7
    %v3098 = vsub.s32 %v1951, %v3097
    %v3099 = vrot.slane %v2902, %v3098
    %v3100 = vlaneseq
    %v3101 = vshrl.u32 %v3100, 7
    %v3102 = vsub.s32 %v1951, %v3101
    %v3103 = vrot.slane %v2905, %v3102
    %v3104 = vlaneseq
    %v3105 = vshrl.u32 %v3104, 7
    %v3106 = vsub.s32 %v1951, %v3105
    %v3107 = vrot.slane %v2908, %v3106
    %v3108 = vlaneseq
    %v3109 = vshrl.u32 %v3108, 7
    %v3110 = vsub.s32 %v1951, %v3109
    %v3111 = vrot.slane %v2911, %v3110
    %v3112 = vlaneseq
    %v3113 = vshrl.u32 %v3112, 7
    %v3114 = vsub.s32 %v1951, %v3113
    %v3115 = vrot.slane %v2914, %v3114
    %v3116 = vlaneseq
    %v3117 = vshrl.u32 %v3116, 7
    %v3118 = vsub.s32 %v1951, %v3117
    %v3119 = vrot.slane %v2917, %v3118
    %v3120 = vlaneseq
    %v3121 = vshrl.u32 %v3120, 7
    %v3122 = vsub.s32 %v1951, %v3121
    %v3123 = vrot.slane %v2920, %v3122
    %v3124 = vlaneseq
    %v3125 = vshrl.u32 %v3124, 7
    %v3126 = vsub.s32 %v1951, %v3125
    %v3127 = vrot.slane %v2923, %v3126
    %v3128 = vlaneseq
    %v3129 = vshrl.u32 %v3128, 7
    %v3130 = vsub.s32 %v1951, %v3129
    %v3131 = vrot.slane %v2926, %v3130
    %v3132 = vlaneseq
    %v3133 = vshrl.u32 %v3132, 7
    %v3134 = vsub.s32 %v1951, %v3133
    %v3135 = vrot.slane %v2929, %v3134
    %v3136 = vlaneseq
    %v3137 = vshrl.u32 %v3136, 7
    %v3138 = vsub.s32 %v1951, %v3137
    %v3139 = vrot.slane %v2932, %v3138
    %v3140 = vlaneseq
    %v3141 = vshrl.u32 %v3140, 7
    %v3142 = vsub.s32 %v1951, %v3141
    %v3143 = vrot.slane %v2935, %v3142
    %v3144 = vlaneseq
    %v3145 = vshrl.u32 %v3144, 7
    %v3146 = vsub.s32 %v1951, %v3145
    %v3147 = vrot.slane %v2938, %v3146
    %v3148 = vlaneseq
    %v3149 = vshrl.u32 %v3148, 7
    %v3150 = vsub.s32 %v1951, %v3149
    %v3151 = vrot.slane %v2941, %v3150
    %v3152 = vlaneseq
    %v3153 = vshrl.u32 %v3152, 7
    %v3154 = vsub.s32 %v1951, %v3153
    %v3155 = vrot.slane %v2944, %v3154
    %v3156 = vlaneseq
    %v3157 = vshrl.u32 %v3156, 7
    %v3158 = vsub.s32 %v1951, %v3157
    %v3159 = vrot.slane %v2947, %v3158
    %v3160 = vlaneseq
    %v3161 = vshrl.u32 %v3160, 7
    %v3162 = vsub.s32 %v1951, %v3161
    %v3163 = vrot.slane %v2950, %v3162
    %v3164 = vlaneseq
    %v3165 = vshrl.u32 %v3164, 7
    %v3166 = vsub.s32 %v1951, %v3165
    %v3167 = vrot.slane %v2953, %v3166
    %v3168 = vlaneseq
    %v3169 = vshrl.u32 %v3168, 7
    %v3170 = vsub.s32 %v1951, %v3169
    %v3171 = vrot.slane %v2956, %v3170
    %v3172 = vlaneseq
    %v3173 = vshrl.u32 %v3172, 7
    %v3174 = vsub.s32 %v1951, %v3173
    %v3175 = vrot.slane %v2959, %v3174
    %v3176 = vlaneseq
    %v3177 = vshrl.u32 %v3176, 7
    %v3178 = vsub.s32 %v1951, %v3177
    %v3179 = vrot.slane %v2962, %v3178
    %v3180 = vlaneseq
    %v3181 = vshrl.u32 %v3180, 7
    %v3182 = vsub.s32 %v1951, %v3181
    %v3183 = vrot.slane %v2965, %v3182
    %v3184 = vlaneseq
    %v3185 = vshrl.u32 %v3184, 7
    %v3186 = vsub.s32 %v1951, %v3185
    %v3187 = vrot.slane %v2968, %v3186
    %v3188 = vlaneseq
    %v3189 = vshrl.u32 %v3188, 7
    %v3190 = vsub.s32 %v1951, %v3189
    %v3191 = vrot.slane %v2971, %v3190
    %v3192 = vlaneseq
    %v3193 = vshrl.u32 %v3192, 7
    %v3194 = vsub.s32 %v1951, %v3193
    %v3195 = vrot.slane %v2974, %v3194
    %v3196 = vlaneseq
    %v3197 = vshrl.u32 %v3196, 7
    %v3198 = vsub.s32 %v1951, %v3197
    %v3199 = vrot.slane %v2977, %v3198
    %v3200 = vlaneseq
    %v3201 = vshrl.u32 %v3200, 7
    %v3202 = vsub.s32 %v1951, %v3201
    %v3203 = vrot.slane %v2980, %v3202
    %v3204 = vlaneseq
    %v3205 = vshrl.u32 %v3204, 7
    %v3206 = vsub.s32 %v1951, %v3205
    %v3207 = vrot.slane %v2983, %v3206
    %v3208 = vlaneseq
    %v3209 = vshrl.u32 %v3208, 7
    %v3210 = vsub.s32 %v1951, %v3209
    %v3211 = vrot.slane %v2986, %v3210
    %v3212 = vlaneseq
    %v3213 = vshrl.u32 %v3212, 7
    %v3214 = vsub.s32 %v1951, %v3213
    %v3215 = vrot.slane %v2989, %v3214
    %v3216 = vlaneseq
    %v3217 = vshrl.u32 %v3216, 7
    %v3218 = vsub.s32 %v1951, %v3217
    %v3219 = vrot.slane %v2992, %v3218
    %v3220 = vlaneseq
    %v3221 = vshrl.u32 %v3220, 7
    %v3222 = vsub.s32 %v1951, %v3221
    %v3223 = vrot.slane %v2995, %v3222
    %v3224 = vlaneseq
    %v3225 = vshrl.u32 %v3224, 7
    %v3226 = vsub.s32 %v1951, %v3225
    %v3227 = vrot.slane %v2998, %v3226
    %v3228 = vlaneseq
    %v3229 = vshrl.u32 %v3228, 7
    %v3230 = vsub.s32 %v1951, %v3229
    %v3231 = vrot.slane %v3001, %v3230
    %v3232 = vlaneseq
    %v3233 = vshrl.u32 %v3232, 7
    %v3234 = vsub.s32 %v1951, %v3233
    %v3235 = vrot.slane %v3004, %v3234
    %v3236 = vlaneseq
    %v3237 = vshrl.u32 %v3236, 7
    %v3238 = vsub.s32 %v1951, %v3237
    %v3239 = vrot.slane %v3007, %v3238
    %v3240 = vlaneseq
    %v3241 = vshrl.u32 %v3240, 7
    %v3242 = vsub.s32 %v1951, %v3241
    %v3243 = vrot.slane %v3010, %v3242
    %v3244 = vlaneseq
    %v3245 = vshrl.u32 %v3244, 7
    %v3246 = vsub.s32 %v1951, %v3245
    %v3247 = vrot.slane %v3013, %v3246
    %v3248 = vlaneseq
    %v3249 = vshrl.u32 %v3248, 7
    %v3250 = vsub.s32 %v1951, %v3249
    %v3251 = vrot.slane %v3016, %v3250
    %v3252 = vlaneseq
    %v3253 = vshrl.u32 %v3252, 7
    %v3254 = vsub.s32 %v1951, %v3253
    %v3255 = vrot.slane %v3019, %v3254
    %v3256 = vlaneseq
    %v3257 = vshrl.u32 %v3256, 7
    %v3258 = vsub.s32 %v1951, %v3257
    %v3259 = vrot.slane %v3022, %v3258
    %v3260 = vlaneseq
    %v3261 = vshrl.u32 %v3260, 7
    %v3262 = vsub.s32 %v1951, %v3261
    %v3263 = vrot.slane %v3025, %v3262
    %v3264 = vlaneseq
    %v3265 = vshrl.u32 %v3264, 7
    %v3266 = vsub.s32 %v1951, %v3265
    %v3267 = vrot.slane %v3028, %v3266
    %v3268 = vlaneseq
    %v3269 = vshrl.u32 %v3268, 7
    %v3270 = vsub.s32 %v1951, %v3269
    %v3271 = vrot.slane %v3031, %v3270
    %v3272 = vlaneseq
    %v3273 = vshrl.u32 %v3272, 7
    %v3274 = vsub.s32 %v1951, %v3273
    %v3275 = vrot.slane %v3034, %v3274
    %v3276 = vlaneseq
    %v3277 = vshrl.u32 %v3276, 7
    %v3278 = vsub.s32 %v1951, %v3277
    %v3279 = vrot.slane %v3037, %v3278
    %v3280 = vlaneseq
    %v3281 = vshrl.u32 %v3280, 7
    %v3282 = vsub.s32 %v1951, %v3281
    %v3283 = vrot.slane %v3040, %v3282
    %v3284 = vlaneseq
    %v3285 = vshrl.u32 %v3284, 7
    %v3286 = vsub.s32 %v1951, %v3285
    %v3287 = vrot.slane %v3043, %v3286
    %v3288 = vlaneseq
    %v3289 = vshrl.u32 %v3288, 7
    %v3290 = vsub.s32 %v1951, %v3289
    %v3291 = vrot.slane %v3046, %v3290
    %v3292 = vlaneseq
    %v3293 = vshrl.u32 %v3292, 7
    %v3294 = vsub.s32 %v1951, %v3293
    %v3295 = vrot.slane %v3049, %v3294
    %v3296 = vlaneseq
    %v3297 = vshrl.u32 %v3296, 7
    %v3298 = vsub.s32 %v1951, %v3297
    %v3299 = vrot.slane %v3052, %v3298
    %v3300 = vlaneseq
    %v3301 = vshrl.u32 %v3300, 7
    %v3302 = vsub.s32 %v1951, %v3301
    %v3303 = vrot.slane %v3055, %v3302
    %v3304 = vlaneseq
    %v3305 = vshrl.u32 %v3304, 7
    %v3306 = vsub.s32 %v1951, %v3305
    %v3307 = vrot.slane %v3058, %v3306
    %v3308 = vlaneseq
    %v3309 = vshrl.u32 %v3308, 7
    %v3310 = vsub.s32 %v1951, %v3309
    %v3311 = vrot.slane %v3061, %v3310
    %v3312 = vlaneseq
    %v3313 = vshrl.u32 %v3312, 7
    %v3314 = vsub.s32 %v1951, %v3313
    %v3315 = vrot.slane %v3064, %v3314
    %v3316 = vlaneseq
    %v3317 = vshrl.u32 %v3316, 7
    %v3318 = vsub.s32 %v1951, %v3317
    %v3319 = vrot.slane %v3067, %v3318
    %v3320 = vlaneseq
    %v3321 = vshrl.u32 %v3320, 7
    %v3322 = vsub.s32 %v1951, %v3321
    %v3323 = vrot.slane %v3070, %v3322
    %v3324 = vlaneseq
    %v3325 = vshrl.u32 %v3324, 7
    %v3326 = vsub.s32 %v1951, %v3325
    %v3327 = vrot.slane %v3073, %v3326
    %v3328 = vlaneseq
    %v3329 = vshrl.u32 %v3328, 7
    %v3330 = vsub.s32 %v1951, %v3329
    %v3331 = vrot.slane %v3076, %v3330
    %v3332 = vlaneseq
    %v3333 = vshrl.u32 %v3332, 7
    %v3334 = vsub.s32 %v1951, %v3333
    %v3335 = vrot.slane %v3079, %v3334
    %v3336 = vsel %vm2208, %v3087, %v3083
    %v3337 = vsel %vm2210, %v3091, %v3336
    %v3338 = vsel %vm2212, %v3095, %v3337
    %v3339 = vsel %vm2214, %v3099, %v3338
    %v3340 = vsel %vm2216, %v3103, %v3339
    %v3341 = vsel %vm2218, %v3107, %v3340
    %v3342 = vsel %vm2220, %v3111, %v3341
    %v3343 = vsel %vm2208, %v3119, %v3115
    %v3344 = vsel %vm2210, %v3123, %v3343
    %v3345 = vsel %vm2212, %v3127, %v3344
    %v3346 = vsel %vm2214, %v3131, %v3345
    %v3347 = vsel %vm2216, %v3135, %v3346
    %v3348 = vsel %vm2218, %v3139, %v3347
    %v3349 = vsel %vm2220, %v3143, %v3348
    %v3350 = vsel %vm2208, %v3151, %v3147
    %v3351 = vsel %vm2210, %v3155, %v3350
    %v3352 = vsel %vm2212, %v3159, %v3351
    %v3353 = vsel %vm2214, %v3163, %v3352
    %v3354 = vsel %vm2216, %v3167, %v3353
    %v3355 = vsel %vm2218, %v3171, %v3354
    %v3356 = vsel %vm2220, %v3175, %v3355
    %v3357 = vsel %vm2208, %v3183, %v3179
    %v3358 = vsel %vm2210, %v3187, %v3357
    %v3359 = vsel %vm2212, %v3191, %v3358
    %v3360 = vsel %vm2214, %v3195, %v3359
    %v3361 = vsel %vm2216, %v3199, %v3360
    %v3362 = vsel %vm2218, %v3203, %v3361
    %v3363 = vsel %vm2220, %v3207, %v3362
    %v3364 = vsel %vm2208, %v3215, %v3211
    %v3365 = vsel %vm2210, %v3219, %v3364
    %v3366 = vsel %vm2212, %v3223, %v3365
    %v3367 = vsel %vm2214, %v3227, %v3366
    %v3368 = vsel %vm2216, %v3231, %v3367
    %v3369 = vsel %vm2218, %v3235, %v3368
    %v3370 = vsel %vm2220, %v3239, %v3369
    %v3371 = vsel %vm2208, %v3247, %v3243
    %v3372 = vsel %vm2210, %v3251, %v3371
    %v3373 = vsel %vm2212, %v3255, %v3372
    %v3374 = vsel %vm2214, %v3259, %v3373
    %v3375 = vsel %vm2216, %v3263, %v3374
    %v3376 = vsel %vm2218, %v3267, %v3375
    %v3377 = vsel %vm2220, %v3271, %v3376
    %v3378 = vsel %vm2208, %v3279, %v3275
    %v3379 = vsel %vm2210, %v3283, %v3378
    %v3380 = vsel %vm2212, %v3287, %v3379
    %v3381 = vsel %vm2214, %v3291, %v3380
    %v3382 = vsel %vm2216, %v3295, %v3381
    %v3383 = vsel %vm2218, %v3299, %v3382
    %v3384 = vsel %vm2220, %v3303, %v3383
    %v3385 = vsel %vm2208, %v3311, %v3307
    %v3386 = vsel %vm2210, %v3315, %v3385
    %v3387 = vsel %vm2212, %v3319, %v3386
    %v3388 = vsel %vm2214, %v3323, %v3387
    %v3389 = vsel %vm2216, %v3327, %v3388
    %v3390 = vsel %vm2218, %v3331, %v3389
    %v3391 = vsel %vm2220, %v3335, %v3390
    %v3400 = vsel %vm2279, %v3342, 0.0
    %3401 = vadd.xlane.f32.xlu0 %v3400
    %v3402 = vpop.xlane.xlu0 %3401
    %v3403 = vsel %vm2279, %v3349, 0.0
    %3404 = vadd.xlane.f32.xlu0 %v3403
    %v3405 = vpop.xlane.xlu0 %3404
    %v3406 = vsel %vm2279, %v3356, 0.0
    %3407 = vadd.xlane.f32.xlu0 %v3406
    %v3408 = vpop.xlane.xlu0 %3407
    %v3409 = vsel %vm2279, %v3363, 0.0
    %3410 = vadd.xlane.f32.xlu0 %v3409
    %v3411 = vpop.xlane.xlu0 %3410
    %v3412 = vsel %vm2279, %v3370, 0.0
    %3413 = vadd.xlane.f32.xlu0 %v3412
    %v3414 = vpop.xlane.xlu0 %3413
    %v3415 = vsel %vm2279, %v3377, 0.0
    %3416 = vadd.xlane.f32.xlu0 %v3415
    %v3417 = vpop.xlane.xlu0 %3416
    %v3418 = vsel %vm2279, %v3384, 0.0
    %3419 = vadd.xlane.f32.xlu0 %v3418
    %v3420 = vpop.xlane.xlu0 %3419
    %v3421 = vsel %vm2279, %v3391, 0.0
    %3422 = vadd.xlane.f32.xlu0 %v3421
    %v3423 = vpop.xlane.xlu0 %3422
    %v3432 = vlaneseq
    %v3433 = vshrl.u32 %v3432, 7
    %v3434 = vsub.s32 0, %v3433
    %v3435 = vrot.slane %v3402, %v3434
    %v3436 = vlaneseq
    %v3437 = vshrl.u32 %v3436, 7
    %v3438 = vsub.s32 1, %v3437
    %v3439 = vrot.slane %v3402, %v3438
    %v3440 = vlaneseq
    %v3441 = vshrl.u32 %v3440, 7
    %v3442 = vsub.s32 2, %v3441
    %v3443 = vrot.slane %v3402, %v3442
    %v3444 = vlaneseq
    %v3445 = vshrl.u32 %v3444, 7
    %v3446 = vsub.s32 3, %v3445
    %v3447 = vrot.slane %v3402, %v3446
    %v3448 = vlaneseq
    %v3449 = vshrl.u32 %v3448, 7
    %v3450 = vsub.s32 4, %v3449
    %v3451 = vrot.slane %v3402, %v3450
    %v3452 = vlaneseq
    %v3453 = vshrl.u32 %v3452, 7
    %v3454 = vsub.s32 5, %v3453
    %v3455 = vrot.slane %v3402, %v3454
    %v3456 = vlaneseq
    %v3457 = vshrl.u32 %v3456, 7
    %v3458 = vsub.s32 6, %v3457
    %v3459 = vrot.slane %v3402, %v3458
    %v3460 = vlaneseq
    %v3461 = vshrl.u32 %v3460, 7
    %v3462 = vsub.s32 7, %v3461
    %v3463 = vrot.slane %v3402, %v3462
    %v3464 = vlaneseq
    %v3465 = vshrl.u32 %v3464, 7
    %v3466 = vsub.s32 0, %v3465
    %v3467 = vrot.slane %v3405, %v3466
    %v3468 = vlaneseq
    %v3469 = vshrl.u32 %v3468, 7
    %v3470 = vsub.s32 1, %v3469
    %v3471 = vrot.slane %v3405, %v3470
    %v3472 = vlaneseq
    %v3473 = vshrl.u32 %v3472, 7
    %v3474 = vsub.s32 2, %v3473
    %v3475 = vrot.slane %v3405, %v3474
    %v3476 = vlaneseq
    %v3477 = vshrl.u32 %v3476, 7
    %v3478 = vsub.s32 3, %v3477
    %v3479 = vrot.slane %v3405, %v3478
    %v3480 = vlaneseq
    %v3481 = vshrl.u32 %v3480, 7
    %v3482 = vsub.s32 4, %v3481
    %v3483 = vrot.slane %v3405, %v3482
    %v3484 = vlaneseq
    %v3485 = vshrl.u32 %v3484, 7
    %v3486 = vsub.s32 5, %v3485
    %v3487 = vrot.slane %v3405, %v3486
    %v3488 = vlaneseq
    %v3489 = vshrl.u32 %v3488, 7
    %v3490 = vsub.s32 6, %v3489
    %v3491 = vrot.slane %v3405, %v3490
    %v3492 = vlaneseq
    %v3493 = vshrl.u32 %v3492, 7
    %v3494 = vsub.s32 7, %v3493
    %v3495 = vrot.slane %v3405, %v3494
    %v3496 = vlaneseq
    %v3497 = vshrl.u32 %v3496, 7
    %v3498 = vsub.s32 0, %v3497
    %v3499 = vrot.slane %v3408, %v3498
    %v3500 = vlaneseq
    %v3501 = vshrl.u32 %v3500, 7
    %v3502 = vsub.s32 1, %v3501
    %v3503 = vrot.slane %v3408, %v3502
    %v3504 = vlaneseq
    %v3505 = vshrl.u32 %v3504, 7
    %v3506 = vsub.s32 2, %v3505
    %v3507 = vrot.slane %v3408, %v3506
    %v3508 = vlaneseq
    %v3509 = vshrl.u32 %v3508, 7
    %v3510 = vsub.s32 3, %v3509
    %v3511 = vrot.slane %v3408, %v3510
    %v3512 = vlaneseq
    %v3513 = vshrl.u32 %v3512, 7
    %v3514 = vsub.s32 4, %v3513
    %v3515 = vrot.slane %v3408, %v3514
    %v3516 = vlaneseq
    %v3517 = vshrl.u32 %v3516, 7
    %v3518 = vsub.s32 5, %v3517
    %v3519 = vrot.slane %v3408, %v3518
    %v3520 = vlaneseq
    %v3521 = vshrl.u32 %v3520, 7
    %v3522 = vsub.s32 6, %v3521
    %v3523 = vrot.slane %v3408, %v3522
    %v3524 = vlaneseq
    %v3525 = vshrl.u32 %v3524, 7
    %v3526 = vsub.s32 7, %v3525
    %v3527 = vrot.slane %v3408, %v3526
    %v3528 = vlaneseq
    %v3529 = vshrl.u32 %v3528, 7
    %v3530 = vsub.s32 0, %v3529
    %v3531 = vrot.slane %v3411, %v3530
    %v3532 = vlaneseq
    %v3533 = vshrl.u32 %v3532, 7
    %v3534 = vsub.s32 1, %v3533
    %v3535 = vrot.slane %v3411, %v3534
    %v3536 = vlaneseq
    %v3537 = vshrl.u32 %v3536, 7
    %v3538 = vsub.s32 2, %v3537
    %v3539 = vrot.slane %v3411, %v3538
    %v3540 = vlaneseq
    %v3541 = vshrl.u32 %v3540, 7
    %v3542 = vsub.s32 3, %v3541
    %v3543 = vrot.slane %v3411, %v3542
    %v3544 = vlaneseq
    %v3545 = vshrl.u32 %v3544, 7
    %v3546 = vsub.s32 4, %v3545
    %v3547 = vrot.slane %v3411, %v3546
    %v3548 = vlaneseq
    %v3549 = vshrl.u32 %v3548, 7
    %v3550 = vsub.s32 5, %v3549
    %v3551 = vrot.slane %v3411, %v3550
    %v3552 = vlaneseq
    %v3553 = vshrl.u32 %v3552, 7
    %v3554 = vsub.s32 6, %v3553
    %v3555 = vrot.slane %v3411, %v3554
    %v3556 = vlaneseq
    %v3557 = vshrl.u32 %v3556, 7
    %v3558 = vsub.s32 7, %v3557
    %v3559 = vrot.slane %v3411, %v3558
    %v3560 = vlaneseq
    %v3561 = vshrl.u32 %v3560, 7
    %v3562 = vsub.s32 0, %v3561
    %v3563 = vrot.slane %v3414, %v3562
    %v3564 = vlaneseq
    %v3565 = vshrl.u32 %v3564, 7
    %v3566 = vsub.s32 1, %v3565
    %v3567 = vrot.slane %v3414, %v3566
    %v3568 = vlaneseq
    %v3569 = vshrl.u32 %v3568, 7
    %v3570 = vsub.s32 2, %v3569
    %v3571 = vrot.slane %v3414, %v3570
    %v3572 = vlaneseq
    %v3573 = vshrl.u32 %v3572, 7
    %v3574 = vsub.s32 3, %v3573
    %v3575 = vrot.slane %v3414, %v3574
    %v3576 = vlaneseq
    %v3577 = vshrl.u32 %v3576, 7
    %v3578 = vsub.s32 4, %v3577
    %v3579 = vrot.slane %v3414, %v3578
    %v3580 = vlaneseq
    %v3581 = vshrl.u32 %v3580, 7
    %v3582 = vsub.s32 5, %v3581
    %v3583 = vrot.slane %v3414, %v3582
    %v3584 = vlaneseq
    %v3585 = vshrl.u32 %v3584, 7
    %v3586 = vsub.s32 6, %v3585
    %v3587 = vrot.slane %v3414, %v3586
    %v3588 = vlaneseq
    %v3589 = vshrl.u32 %v3588, 7
    %v3590 = vsub.s32 7, %v3589
    %v3591 = vrot.slane %v3414, %v3590
    %v3592 = vlaneseq
    %v3593 = vshrl.u32 %v3592, 7
    %v3594 = vsub.s32 0, %v3593
    %v3595 = vrot.slane %v3417, %v3594
    %v3596 = vlaneseq
    %v3597 = vshrl.u32 %v3596, 7
    %v3598 = vsub.s32 1, %v3597
    %v3599 = vrot.slane %v3417, %v3598
    %v3600 = vlaneseq
    %v3601 = vshrl.u32 %v3600, 7
    %v3602 = vsub.s32 2, %v3601
    %v3603 = vrot.slane %v3417, %v3602
    %v3604 = vlaneseq
    %v3605 = vshrl.u32 %v3604, 7
    %v3606 = vsub.s32 3, %v3605
    %v3607 = vrot.slane %v3417, %v3606
    %v3608 = vlaneseq
    %v3609 = vshrl.u32 %v3608, 7
    %v3610 = vsub.s32 4, %v3609
    %v3611 = vrot.slane %v3417, %v3610
    %v3612 = vlaneseq
    %v3613 = vshrl.u32 %v3612, 7
    %v3614 = vsub.s32 5, %v3613
    %v3615 = vrot.slane %v3417, %v3614
    %v3616 = vlaneseq
    %v3617 = vshrl.u32 %v3616, 7
    %v3618 = vsub.s32 6, %v3617
    %v3619 = vrot.slane %v3417, %v3618
    %v3620 = vlaneseq
    %v3621 = vshrl.u32 %v3620, 7
    %v3622 = vsub.s32 7, %v3621
    %v3623 = vrot.slane %v3417, %v3622
    %v3624 = vlaneseq
    %v3625 = vshrl.u32 %v3624, 7
    %v3626 = vsub.s32 0, %v3625
    %v3627 = vrot.slane %v3420, %v3626
    %v3628 = vlaneseq
    %v3629 = vshrl.u32 %v3628, 7
    %v3630 = vsub.s32 1, %v3629
    %v3631 = vrot.slane %v3420, %v3630
    %v3632 = vlaneseq
    %v3633 = vshrl.u32 %v3632, 7
    %v3634 = vsub.s32 2, %v3633
    %v3635 = vrot.slane %v3420, %v3634
    %v3636 = vlaneseq
    %v3637 = vshrl.u32 %v3636, 7
    %v3638 = vsub.s32 3, %v3637
    %v3639 = vrot.slane %v3420, %v3638
    %v3640 = vlaneseq
    %v3641 = vshrl.u32 %v3640, 7
    %v3642 = vsub.s32 4, %v3641
    %v3643 = vrot.slane %v3420, %v3642
    %v3644 = vlaneseq
    %v3645 = vshrl.u32 %v3644, 7
    %v3646 = vsub.s32 5, %v3645
    %v3647 = vrot.slane %v3420, %v3646
    %v3648 = vlaneseq
    %v3649 = vshrl.u32 %v3648, 7
    %v3650 = vsub.s32 6, %v3649
    %v3651 = vrot.slane %v3420, %v3650
    %v3652 = vlaneseq
    %v3653 = vshrl.u32 %v3652, 7
    %v3654 = vsub.s32 7, %v3653
    %v3655 = vrot.slane %v3420, %v3654
    %v3656 = vlaneseq
    %v3657 = vshrl.u32 %v3656, 7
    %v3658 = vsub.s32 0, %v3657
    %v3659 = vrot.slane %v3423, %v3658
    %v3660 = vlaneseq
    %v3661 = vshrl.u32 %v3660, 7
    %v3662 = vsub.s32 1, %v3661
    %v3663 = vrot.slane %v3423, %v3662
    %v3664 = vlaneseq
    %v3665 = vshrl.u32 %v3664, 7
    %v3666 = vsub.s32 2, %v3665
    %v3667 = vrot.slane %v3423, %v3666
    %v3668 = vlaneseq
    %v3669 = vshrl.u32 %v3668, 7
    %v3670 = vsub.s32 3, %v3669
    %v3671 = vrot.slane %v3423, %v3670
    %v3672 = vlaneseq
    %v3673 = vshrl.u32 %v3672, 7
    %v3674 = vsub.s32 4, %v3673
    %v3675 = vrot.slane %v3423, %v3674
    %v3676 = vlaneseq
    %v3677 = vshrl.u32 %v3676, 7
    %v3678 = vsub.s32 5, %v3677
    %v3679 = vrot.slane %v3423, %v3678
    %v3680 = vlaneseq
    %v3681 = vshrl.u32 %v3680, 7
    %v3682 = vsub.s32 6, %v3681
    %v3683 = vrot.slane %v3423, %v3682
    %v3684 = vlaneseq
    %v3685 = vshrl.u32 %v3684, 7
    %v3686 = vsub.s32 7, %v3685
    %v3687 = vrot.slane %v3423, %v3686
    %v3752 = vrcp.pop %v3435
    %v3753 = vmul.f32 %v2697, %v3752
    %v3754 = vrcp.pop %v3439
    %v3755 = vmul.f32 %v2699, %v3754
    %v3756 = vrcp.pop %v3443
    %v3757 = vmul.f32 %v2701, %v3756
    %v3758 = vrcp.pop %v3447
    %v3759 = vmul.f32 %v2703, %v3758
    %v3760 = vrcp.pop %v3451
    %v3761 = vmul.f32 %v2705, %v3760
    %v3762 = vrcp.pop %v3455
    %v3763 = vmul.f32 %v2707, %v3762
    %v3764 = vrcp.pop %v3459
    %v3765 = vmul.f32 %v2709, %v3764
    %v3766 = vrcp.pop %v3463
    %v3767 = vmul.f32 %v2711, %v3766
    %v3768 = vrcp.pop %v3467
    %v3769 = vmul.f32 %v2713, %v3768
    %v3770 = vrcp.pop %v3471
    %v3771 = vmul.f32 %v2715, %v3770
    %v3772 = vrcp.pop %v3475
    %v3773 = vmul.f32 %v2717, %v3772
    %v3774 = vrcp.pop %v3479
    %v3775 = vmul.f32 %v2719, %v3774
    %v3776 = vrcp.pop %v3483
    %v3777 = vmul.f32 %v2721, %v3776
    %v3778 = vrcp.pop %v3487
    %v3779 = vmul.f32 %v2723, %v3778
    %v3780 = vrcp.pop %v3491
    %v3781 = vmul.f32 %v2725, %v3780
    %v3782 = vrcp.pop %v3495
    %v3783 = vmul.f32 %v2727, %v3782
    %v3784 = vrcp.pop %v3499
    %v3785 = vmul.f32 %v2729, %v3784
    %v3786 = vrcp.pop %v3503
    %v3787 = vmul.f32 %v2731, %v3786
    %v3788 = vrcp.pop %v3507
    %v3789 = vmul.f32 %v2733, %v3788
    %v3790 = vrcp.pop %v3511
    %v3791 = vmul.f32 %v2735, %v3790
    %v3792 = vrcp.pop %v3515
    %v3793 = vmul.f32 %v2737, %v3792
    %v3794 = vrcp.pop %v3519
    %v3795 = vmul.f32 %v2739, %v3794
    %v3796 = vrcp.pop %v3523
    %v3797 = vmul.f32 %v2741, %v3796
    %v3798 = vrcp.pop %v3527
    %v3799 = vmul.f32 %v2743, %v3798
    %v3800 = vrcp.pop %v3531
    %v3801 = vmul.f32 %v2745, %v3800
    %v3802 = vrcp.pop %v3535
    %v3803 = vmul.f32 %v2747, %v3802
    %v3804 = vrcp.pop %v3539
    %v3805 = vmul.f32 %v2749, %v3804
    %v3806 = vrcp.pop %v3543
    %v3807 = vmul.f32 %v2751, %v3806
    %v3808 = vrcp.pop %v3547
    %v3809 = vmul.f32 %v2753, %v3808
    %v3810 = vrcp.pop %v3551
    %v3811 = vmul.f32 %v2755, %v3810
    %v3812 = vrcp.pop %v3555
    %v3813 = vmul.f32 %v2757, %v3812
    %v3814 = vrcp.pop %v3559
    %v3815 = vmul.f32 %v2759, %v3814
    %v3816 = vrcp.pop %v3563
    %v3817 = vmul.f32 %v2761, %v3816
    %v3818 = vrcp.pop %v3567
    %v3819 = vmul.f32 %v2763, %v3818
    %v3820 = vrcp.pop %v3571
    %v3821 = vmul.f32 %v2765, %v3820
    %v3822 = vrcp.pop %v3575
    %v3823 = vmul.f32 %v2767, %v3822
    %v3824 = vrcp.pop %v3579
    %v3825 = vmul.f32 %v2769, %v3824
    %v3826 = vrcp.pop %v3583
    %v3827 = vmul.f32 %v2771, %v3826
    %v3828 = vrcp.pop %v3587
    %v3829 = vmul.f32 %v2773, %v3828
    %v3830 = vrcp.pop %v3591
    %v3831 = vmul.f32 %v2775, %v3830
    %v3832 = vrcp.pop %v3595
    %v3833 = vmul.f32 %v2777, %v3832
    %v3834 = vrcp.pop %v3599
    %v3835 = vmul.f32 %v2779, %v3834
    %v3836 = vrcp.pop %v3603
    %v3837 = vmul.f32 %v2781, %v3836
    %v3838 = vrcp.pop %v3607
    %v3839 = vmul.f32 %v2783, %v3838
    %v3840 = vrcp.pop %v3611
    %v3841 = vmul.f32 %v2785, %v3840
    %v3842 = vrcp.pop %v3615
    %v3843 = vmul.f32 %v2787, %v3842
    %v3844 = vrcp.pop %v3619
    %v3845 = vmul.f32 %v2789, %v3844
    %v3846 = vrcp.pop %v3623
    %v3847 = vmul.f32 %v2791, %v3846
    %v3848 = vrcp.pop %v3627
    %v3849 = vmul.f32 %v2793, %v3848
    %v3850 = vrcp.pop %v3631
    %v3851 = vmul.f32 %v2795, %v3850
    %v3852 = vrcp.pop %v3635
    %v3853 = vmul.f32 %v2797, %v3852
    %v3854 = vrcp.pop %v3639
    %v3855 = vmul.f32 %v2799, %v3854
    %v3856 = vrcp.pop %v3643
    %v3857 = vmul.f32 %v2801, %v3856
    %v3858 = vrcp.pop %v3647
    %v3859 = vmul.f32 %v2803, %v3858
    %v3860 = vrcp.pop %v3651
    %v3861 = vmul.f32 %v2805, %v3860
    %v3862 = vrcp.pop %v3655
    %v3863 = vmul.f32 %v2807, %v3862
    %v3864 = vrcp.pop %v3659
    %v3865 = vmul.f32 %v2809, %v3864
    %v3866 = vrcp.pop %v3663
    %v3867 = vmul.f32 %v2811, %v3866
    %v3868 = vrcp.pop %v3667
    %v3869 = vmul.f32 %v2813, %v3868
    %v3870 = vrcp.pop %v3671
    %v3871 = vmul.f32 %v2815, %v3870
    %v3872 = vrcp.pop %v3675
    %v3873 = vmul.f32 %v2817, %v3872
    %v3874 = vrcp.pop %v3679
    %v3875 = vmul.f32 %v2819, %v3874
    %v3876 = vrcp.pop %v3683
    %v3877 = vmul.f32 %v2821, %v3876
    %v3878 = vrcp.pop %v3687
    %v3879 = vmul.f32 %v2823, %v3878
    %3881 = vset.pattern.permute.xlu0 0
    %3882 = vperm.xlu0 %3881, %v3753
    %v3883 = vpop.permute.xlu0 %3882
    %3886 = vset.pattern.permute.xlu0 0
    %3887 = vperm.xlu0 %3886, %v3755
    %v3888 = vpop.permute.xlu0 %3887
    %3891 = vset.pattern.permute.xlu0 0
    %3892 = vperm.xlu0 %3891, %v3757
    %v3893 = vpop.permute.xlu0 %3892
    %3896 = vset.pattern.permute.xlu0 0
    %3897 = vperm.xlu0 %3896, %v3759
    %v3898 = vpop.permute.xlu0 %3897
    %3901 = vset.pattern.permute.xlu0 0
    %3902 = vperm.xlu0 %3901, %v3761
    %v3903 = vpop.permute.xlu0 %3902
    %3906 = vset.pattern.permute.xlu0 0
    %3907 = vperm.xlu0 %3906, %v3763
    %v3908 = vpop.permute.xlu0 %3907
    %3911 = vset.pattern.permute.xlu0 0
    %3912 = vperm.xlu0 %3911, %v3765
    %v3913 = vpop.permute.xlu0 %3912
    %3916 = vset.pattern.permute.xlu0 0
    %3917 = vperm.xlu0 %3916, %v3767
    %v3918 = vpop.permute.xlu0 %3917
    %3921 = vset.pattern.permute.xlu0 0
    %3922 = vperm.xlu0 %3921, %v3769
    %v3923 = vpop.permute.xlu0 %3922
    %3926 = vset.pattern.permute.xlu0 0
    %3927 = vperm.xlu0 %3926, %v3771
    %v3928 = vpop.permute.xlu0 %3927
    %3931 = vset.pattern.permute.xlu0 0
    %3932 = vperm.xlu0 %3931, %v3773
    %v3933 = vpop.permute.xlu0 %3932
    %3936 = vset.pattern.permute.xlu0 0
    %3937 = vperm.xlu0 %3936, %v3775
    %v3938 = vpop.permute.xlu0 %3937
    %3941 = vset.pattern.permute.xlu0 0
    %3942 = vperm.xlu0 %3941, %v3777
    %v3943 = vpop.permute.xlu0 %3942
    %3946 = vset.pattern.permute.xlu0 0
    %3947 = vperm.xlu0 %3946, %v3779
    %v3948 = vpop.permute.xlu0 %3947
    %3951 = vset.pattern.permute.xlu0 0
    %3952 = vperm.xlu0 %3951, %v3781
    %v3953 = vpop.permute.xlu0 %3952
    %3956 = vset.pattern.permute.xlu0 0
    %3957 = vperm.xlu0 %3956, %v3783
    %v3958 = vpop.permute.xlu0 %3957
    %3961 = vset.pattern.permute.xlu0 0
    %3962 = vperm.xlu0 %3961, %v3785
    %v3963 = vpop.permute.xlu0 %3962
    %3966 = vset.pattern.permute.xlu0 0
    %3967 = vperm.xlu0 %3966, %v3787
    %v3968 = vpop.permute.xlu0 %3967
    %3971 = vset.pattern.permute.xlu0 0
    %3972 = vperm.xlu0 %3971, %v3789
    %v3973 = vpop.permute.xlu0 %3972
    %3976 = vset.pattern.permute.xlu0 0
    %3977 = vperm.xlu0 %3976, %v3791
    %v3978 = vpop.permute.xlu0 %3977
    %3981 = vset.pattern.permute.xlu0 0
    %3982 = vperm.xlu0 %3981, %v3793
    %v3983 = vpop.permute.xlu0 %3982
    %3986 = vset.pattern.permute.xlu0 0
    %3987 = vperm.xlu0 %3986, %v3795
    %v3988 = vpop.permute.xlu0 %3987
    %3991 = vset.pattern.permute.xlu0 0
    %3992 = vperm.xlu0 %3991, %v3797
    %v3993 = vpop.permute.xlu0 %3992
    %3996 = vset.pattern.permute.xlu0 0
    %3997 = vperm.xlu0 %3996, %v3799
    %v3998 = vpop.permute.xlu0 %3997
    %4001 = vset.pattern.permute.xlu0 0
    %4002 = vperm.xlu0 %4001, %v3801
    %v4003 = vpop.permute.xlu0 %4002
    %4006 = vset.pattern.permute.xlu0 0
    %4007 = vperm.xlu0 %4006, %v3803
    %v4008 = vpop.permute.xlu0 %4007
    %4011 = vset.pattern.permute.xlu0 0
    %4012 = vperm.xlu0 %4011, %v3805
    %v4013 = vpop.permute.xlu0 %4012
    %4016 = vset.pattern.permute.xlu0 0
    %4017 = vperm.xlu0 %4016, %v3807
    %v4018 = vpop.permute.xlu0 %4017
    %4021 = vset.pattern.permute.xlu0 0
    %4022 = vperm.xlu0 %4021, %v3809
    %v4023 = vpop.permute.xlu0 %4022
    %4026 = vset.pattern.permute.xlu0 0
    %4027 = vperm.xlu0 %4026, %v3811
    %v4028 = vpop.permute.xlu0 %4027
    %4031 = vset.pattern.permute.xlu0 0
    %4032 = vperm.xlu0 %4031, %v3813
    %v4033 = vpop.permute.xlu0 %4032
    %4036 = vset.pattern.permute.xlu0 0
    %4037 = vperm.xlu0 %4036, %v3815
    %v4038 = vpop.permute.xlu0 %4037
    %4041 = vset.pattern.permute.xlu0 0
    %4042 = vperm.xlu0 %4041, %v3817
    %v4043 = vpop.permute.xlu0 %4042
    %4046 = vset.pattern.permute.xlu0 0
    %4047 = vperm.xlu0 %4046, %v3819
    %v4048 = vpop.permute.xlu0 %4047
    %4051 = vset.pattern.permute.xlu0 0
    %4052 = vperm.xlu0 %4051, %v3821
    %v4053 = vpop.permute.xlu0 %4052
    %4056 = vset.pattern.permute.xlu0 0
    %4057 = vperm.xlu0 %4056, %v3823
    %v4058 = vpop.permute.xlu0 %4057
    %4061 = vset.pattern.permute.xlu0 0
    %4062 = vperm.xlu0 %4061, %v3825
    %v4063 = vpop.permute.xlu0 %4062
    %4066 = vset.pattern.permute.xlu0 0
    %4067 = vperm.xlu0 %4066, %v3827
    %v4068 = vpop.permute.xlu0 %4067
    %4071 = vset.pattern.permute.xlu0 0
    %4072 = vperm.xlu0 %4071, %v3829
    %v4073 = vpop.permute.xlu0 %4072
    %4076 = vset.pattern.permute.xlu0 0
    %4077 = vperm.xlu0 %4076, %v3831
    %v4078 = vpop.permute.xlu0 %4077
    %4081 = vset.pattern.permute.xlu0 0
    %4082 = vperm.xlu0 %4081, %v3833
    %v4083 = vpop.permute.xlu0 %4082
    %4086 = vset.pattern.permute.xlu0 0
    %4087 = vperm.xlu0 %4086, %v3835
    %v4088 = vpop.permute.xlu0 %4087
    %4091 = vset.pattern.permute.xlu0 0
    %4092 = vperm.xlu0 %4091, %v3837
    %v4093 = vpop.permute.xlu0 %4092
    %4096 = vset.pattern.permute.xlu0 0
    %4097 = vperm.xlu0 %4096, %v3839
    %v4098 = vpop.permute.xlu0 %4097
    %4101 = vset.pattern.permute.xlu0 0
    %4102 = vperm.xlu0 %4101, %v3841
    %v4103 = vpop.permute.xlu0 %4102
    %4106 = vset.pattern.permute.xlu0 0
    %4107 = vperm.xlu0 %4106, %v3843
    %v4108 = vpop.permute.xlu0 %4107
    %4111 = vset.pattern.permute.xlu0 0
    %4112 = vperm.xlu0 %4111, %v3845
    %v4113 = vpop.permute.xlu0 %4112
    %4116 = vset.pattern.permute.xlu0 0
    %4117 = vperm.xlu0 %4116, %v3847
    %v4118 = vpop.permute.xlu0 %4117
    %4121 = vset.pattern.permute.xlu0 0
    %4122 = vperm.xlu0 %4121, %v3849
    %v4123 = vpop.permute.xlu0 %4122
    %4126 = vset.pattern.permute.xlu0 0
    %4127 = vperm.xlu0 %4126, %v3851
    %v4128 = vpop.permute.xlu0 %4127
    %4131 = vset.pattern.permute.xlu0 0
    %4132 = vperm.xlu0 %4131, %v3853
    %v4133 = vpop.permute.xlu0 %4132
    %4136 = vset.pattern.permute.xlu0 0
    %4137 = vperm.xlu0 %4136, %v3855
    %v4138 = vpop.permute.xlu0 %4137
    %4141 = vset.pattern.permute.xlu0 0
    %4142 = vperm.xlu0 %4141, %v3857
    %v4143 = vpop.permute.xlu0 %4142
    %4146 = vset.pattern.permute.xlu0 0
    %4147 = vperm.xlu0 %4146, %v3859
    %v4148 = vpop.permute.xlu0 %4147
    %4151 = vset.pattern.permute.xlu0 0
    %4152 = vperm.xlu0 %4151, %v3861
    %v4153 = vpop.permute.xlu0 %4152
    %4156 = vset.pattern.permute.xlu0 0
    %4157 = vperm.xlu0 %4156, %v3863
    %v4158 = vpop.permute.xlu0 %4157
    %4161 = vset.pattern.permute.xlu0 0
    %4162 = vperm.xlu0 %4161, %v3865
    %v4163 = vpop.permute.xlu0 %4162
    %4166 = vset.pattern.permute.xlu0 0
    %4167 = vperm.xlu0 %4166, %v3867
    %v4168 = vpop.permute.xlu0 %4167
    %4171 = vset.pattern.permute.xlu0 0
    %4172 = vperm.xlu0 %4171, %v3869
    %v4173 = vpop.permute.xlu0 %4172
    %4176 = vset.pattern.permute.xlu0 0
    %4177 = vperm.xlu0 %4176, %v3871
    %v4178 = vpop.permute.xlu0 %4177
    %4181 = vset.pattern.permute.xlu0 0
    %4182 = vperm.xlu0 %4181, %v3873
    %v4183 = vpop.permute.xlu0 %4182
    %4186 = vset.pattern.permute.xlu0 0
    %4187 = vperm.xlu0 %4186, %v3875
    %v4188 = vpop.permute.xlu0 %4187
    %4191 = vset.pattern.permute.xlu0 0
    %4192 = vperm.xlu0 %4191, %v3877
    %v4193 = vpop.permute.xlu0 %4192
    %4196 = vset.pattern.permute.xlu0 0
    %4197 = vperm.xlu0 %4196, %v3879
    %v4198 = vpop.permute.xlu0 %4197
    %v4200 = vmul.f32 %v40, %v3883
    %v4201 = vmul.f32 %v41, %v3888
    %v4202 = vmul.f32 %v42, %v3893
    %v4203 = vmul.f32 %v43, %v3898
    %v4204 = vmul.f32 %v44, %v3903
    %v4205 = vmul.f32 %v45, %v3908
    %v4206 = vmul.f32 %v46, %v3913
    %v4207 = vmul.f32 %v47, %v3918
    %v4208 = vmul.f32 %v48, %v3923
    %v4209 = vmul.f32 %v49, %v3928
    %v4210 = vmul.f32 %v50, %v3933
    %v4211 = vmul.f32 %v51, %v3938
    %v4212 = vmul.f32 %v52, %v3943
    %v4213 = vmul.f32 %v53, %v3948
    %v4214 = vmul.f32 %v54, %v3953
    %v4215 = vmul.f32 %v55, %v3958
    %v4216 = vmul.f32 %v56, %v3963
    %v4217 = vmul.f32 %v57, %v3968
    %v4218 = vmul.f32 %v58, %v3973
    %v4219 = vmul.f32 %v59, %v3978
    %v4220 = vmul.f32 %v60, %v3983
    %v4221 = vmul.f32 %v61, %v3988
    %v4222 = vmul.f32 %v62, %v3993
    %v4223 = vmul.f32 %v63, %v3998
    %v4224 = vmul.f32 %v64, %v4003
    %v4225 = vmul.f32 %v65, %v4008
    %v4226 = vmul.f32 %v66, %v4013
    %v4227 = vmul.f32 %v67, %v4018
    %v4228 = vmul.f32 %v68, %v4023
    %v4229 = vmul.f32 %v69, %v4028
    %v4230 = vmul.f32 %v70, %v4033
    %v4231 = vmul.f32 %v71, %v4038
    %v4232 = vmul.f32 %v72, %v4043
    %v4233 = vmul.f32 %v73, %v4048
    %v4234 = vmul.f32 %v74, %v4053
    %v4235 = vmul.f32 %v75, %v4058
    %v4236 = vmul.f32 %v76, %v4063
    %v4237 = vmul.f32 %v77, %v4068
    %v4238 = vmul.f32 %v78, %v4073
    %v4239 = vmul.f32 %v79, %v4078
    %v4240 = vmul.f32 %v80, %v4083
    %v4241 = vmul.f32 %v81, %v4088
    %v4242 = vmul.f32 %v82, %v4093
    %v4243 = vmul.f32 %v83, %v4098
    %v4244 = vmul.f32 %v84, %v4103
    %v4245 = vmul.f32 %v85, %v4108
    %v4246 = vmul.f32 %v86, %v4113
    %v4247 = vmul.f32 %v87, %v4118
    %v4248 = vmul.f32 %v88, %v4123
    %v4249 = vmul.f32 %v89, %v4128
    %v4250 = vmul.f32 %v90, %v4133
    %v4251 = vmul.f32 %v91, %v4138
    %v4252 = vmul.f32 %v92, %v4143
    %v4253 = vmul.f32 %v93, %v4148
    %v4254 = vmul.f32 %v94, %v4153
    %v4255 = vmul.f32 %v95, %v4158
    %v4256 = vmul.f32 %v96, %v4163
    %v4257 = vmul.f32 %v97, %v4168
    %v4258 = vmul.f32 %v98, %v4173
    %v4259 = vmul.f32 %v99, %v4178
    %v4260 = vmul.f32 %v100, %v4183
    %v4261 = vmul.f32 %v101, %v4188
    %v4262 = vmul.f32 %v102, %v4193
    %v4263 = vmul.f32 %v103, %v4198
    %v4264 = vsel %vm981, %v4200, 0.0
    %v4265 = vrot.slane %v4264, 4
    %v4266 = vadd.f32 %v4264, %v4265
    %v4267 = vrot.slane %v4266, 2
    %v4268 = vadd.f32 %v4266, %v4267
    %v4269 = vrot.slane %v4268, 1
    %v4270 = vadd.f32 %v4268, %v4269
    %v4271 = vsel %vm981, %v4201, 0.0
    %v4272 = vrot.slane %v4271, 4
    %v4273 = vadd.f32 %v4271, %v4272
    %v4274 = vrot.slane %v4273, 2
    %v4275 = vadd.f32 %v4273, %v4274
    %v4276 = vrot.slane %v4275, 1
    %v4277 = vadd.f32 %v4275, %v4276
    %v4278 = vsel %vm981, %v4202, 0.0
    %v4279 = vrot.slane %v4278, 4
    %v4280 = vadd.f32 %v4278, %v4279
    %v4281 = vrot.slane %v4280, 2
    %v4282 = vadd.f32 %v4280, %v4281
    %v4283 = vrot.slane %v4282, 1
    %v4284 = vadd.f32 %v4282, %v4283
    %v4285 = vsel %vm981, %v4203, 0.0
    %v4286 = vrot.slane %v4285, 4
    %v4287 = vadd.f32 %v4285, %v4286
    %v4288 = vrot.slane %v4287, 2
    %v4289 = vadd.f32 %v4287, %v4288
    %v4290 = vrot.slane %v4289, 1
    %v4291 = vadd.f32 %v4289, %v4290
    %v4292 = vsel %vm981, %v4204, 0.0
    %v4293 = vrot.slane %v4292, 4
    %v4294 = vadd.f32 %v4292, %v4293
    %v4295 = vrot.slane %v4294, 2
    %v4296 = vadd.f32 %v4294, %v4295
    %v4297 = vrot.slane %v4296, 1
    %v4298 = vadd.f32 %v4296, %v4297
    %v4299 = vsel %vm981, %v4205, 0.0
    %v4300 = vrot.slane %v4299, 4
    %v4301 = vadd.f32 %v4299, %v4300
    %v4302 = vrot.slane %v4301, 2
    %v4303 = vadd.f32 %v4301, %v4302
    %v4304 = vrot.slane %v4303, 1
    %v4305 = vadd.f32 %v4303, %v4304
    %v4306 = vsel %vm981, %v4206, 0.0
    %v4307 = vrot.slane %v4306, 4
    %v4308 = vadd.f32 %v4306, %v4307
    %v4309 = vrot.slane %v4308, 2
    %v4310 = vadd.f32 %v4308, %v4309
    %v4311 = vrot.slane %v4310, 1
    %v4312 = vadd.f32 %v4310, %v4311
    %v4313 = vsel %vm981, %v4207, 0.0
    %v4314 = vrot.slane %v4313, 4
    %v4315 = vadd.f32 %v4313, %v4314
    %v4316 = vrot.slane %v4315, 2
    %v4317 = vadd.f32 %v4315, %v4316
    %v4318 = vrot.slane %v4317, 1
    %v4319 = vadd.f32 %v4317, %v4318
    %v4320 = vsel %vm981, %v4208, 0.0
    %v4321 = vrot.slane %v4320, 4
    %v4322 = vadd.f32 %v4320, %v4321
    %v4323 = vrot.slane %v4322, 2
    %v4324 = vadd.f32 %v4322, %v4323
    %v4325 = vrot.slane %v4324, 1
    %v4326 = vadd.f32 %v4324, %v4325
    %v4327 = vsel %vm981, %v4209, 0.0
    %v4328 = vrot.slane %v4327, 4
    %v4329 = vadd.f32 %v4327, %v4328
    %v4330 = vrot.slane %v4329, 2
    %v4331 = vadd.f32 %v4329, %v4330
    %v4332 = vrot.slane %v4331, 1
    %v4333 = vadd.f32 %v4331, %v4332
    %v4334 = vsel %vm981, %v4210, 0.0
    %v4335 = vrot.slane %v4334, 4
    %v4336 = vadd.f32 %v4334, %v4335
    %v4337 = vrot.slane %v4336, 2
    %v4338 = vadd.f32 %v4336, %v4337
    %v4339 = vrot.slane %v4338, 1
    %v4340 = vadd.f32 %v4338, %v4339
    %v4341 = vsel %vm981, %v4211, 0.0
    %v4342 = vrot.slane %v4341, 4
    %v4343 = vadd.f32 %v4341, %v4342
    %v4344 = vrot.slane %v4343, 2
    %v4345 = vadd.f32 %v4343, %v4344
    %v4346 = vrot.slane %v4345, 1
    %v4347 = vadd.f32 %v4345, %v4346
    %v4348 = vsel %vm981, %v4212, 0.0
    %v4349 = vrot.slane %v4348, 4
    %v4350 = vadd.f32 %v4348, %v4349
    %v4351 = vrot.slane %v4350, 2
    %v4352 = vadd.f32 %v4350, %v4351
    %v4353 = vrot.slane %v4352, 1
    %v4354 = vadd.f32 %v4352, %v4353
    %v4355 = vsel %vm981, %v4213, 0.0
    %v4356 = vrot.slane %v4355, 4
    %v4357 = vadd.f32 %v4355, %v4356
    %v4358 = vrot.slane %v4357, 2
    %v4359 = vadd.f32 %v4357, %v4358
    %v4360 = vrot.slane %v4359, 1
    %v4361 = vadd.f32 %v4359, %v4360
    %v4362 = vsel %vm981, %v4214, 0.0
    %v4363 = vrot.slane %v4362, 4
    %v4364 = vadd.f32 %v4362, %v4363
    %v4365 = vrot.slane %v4364, 2
    %v4366 = vadd.f32 %v4364, %v4365
    %v4367 = vrot.slane %v4366, 1
    %v4368 = vadd.f32 %v4366, %v4367
    %v4369 = vsel %vm981, %v4215, 0.0
    %v4370 = vrot.slane %v4369, 4
    %v4371 = vadd.f32 %v4369, %v4370
    %v4372 = vrot.slane %v4371, 2
    %v4373 = vadd.f32 %v4371, %v4372
    %v4374 = vrot.slane %v4373, 1
    %v4375 = vadd.f32 %v4373, %v4374
    %v4376 = vsel %vm981, %v4216, 0.0
    %v4377 = vrot.slane %v4376, 4
    %v4378 = vadd.f32 %v4376, %v4377
    %v4379 = vrot.slane %v4378, 2
    %v4380 = vadd.f32 %v4378, %v4379
    %v4381 = vrot.slane %v4380, 1
    %v4382 = vadd.f32 %v4380, %v4381
    %v4383 = vsel %vm981, %v4217, 0.0
    %v4384 = vrot.slane %v4383, 4
    %v4385 = vadd.f32 %v4383, %v4384
    %v4386 = vrot.slane %v4385, 2
    %v4387 = vadd.f32 %v4385, %v4386
    %v4388 = vrot.slane %v4387, 1
    %v4389 = vadd.f32 %v4387, %v4388
    %v4390 = vsel %vm981, %v4218, 0.0
    %v4391 = vrot.slane %v4390, 4
    %v4392 = vadd.f32 %v4390, %v4391
    %v4393 = vrot.slane %v4392, 2
    %v4394 = vadd.f32 %v4392, %v4393
    %v4395 = vrot.slane %v4394, 1
    %v4396 = vadd.f32 %v4394, %v4395
    %v4397 = vsel %vm981, %v4219, 0.0
    %v4398 = vrot.slane %v4397, 4
    %v4399 = vadd.f32 %v4397, %v4398
    %v4400 = vrot.slane %v4399, 2
    %v4401 = vadd.f32 %v4399, %v4400
    %v4402 = vrot.slane %v4401, 1
    %v4403 = vadd.f32 %v4401, %v4402
    %v4404 = vsel %vm981, %v4220, 0.0
    %v4405 = vrot.slane %v4404, 4
    %v4406 = vadd.f32 %v4404, %v4405
    %v4407 = vrot.slane %v4406, 2
    %v4408 = vadd.f32 %v4406, %v4407
    %v4409 = vrot.slane %v4408, 1
    %v4410 = vadd.f32 %v4408, %v4409
    %v4411 = vsel %vm981, %v4221, 0.0
    %v4412 = vrot.slane %v4411, 4
    %v4413 = vadd.f32 %v4411, %v4412
    %v4414 = vrot.slane %v4413, 2
    %v4415 = vadd.f32 %v4413, %v4414
    %v4416 = vrot.slane %v4415, 1
    %v4417 = vadd.f32 %v4415, %v4416
    %v4418 = vsel %vm981, %v4222, 0.0
    %v4419 = vrot.slane %v4418, 4
    %v4420 = vadd.f32 %v4418, %v4419
    %v4421 = vrot.slane %v4420, 2
    %v4422 = vadd.f32 %v4420, %v4421
    %v4423 = vrot.slane %v4422, 1
    %v4424 = vadd.f32 %v4422, %v4423
    %v4425 = vsel %vm981, %v4223, 0.0
    %v4426 = vrot.slane %v4425, 4
    %v4427 = vadd.f32 %v4425, %v4426
    %v4428 = vrot.slane %v4427, 2
    %v4429 = vadd.f32 %v4427, %v4428
    %v4430 = vrot.slane %v4429, 1
    %v4431 = vadd.f32 %v4429, %v4430
    %v4432 = vsel %vm981, %v4224, 0.0
    %v4433 = vrot.slane %v4432, 4
    %v4434 = vadd.f32 %v4432, %v4433
    %v4435 = vrot.slane %v4434, 2
    %v4436 = vadd.f32 %v4434, %v4435
    %v4437 = vrot.slane %v4436, 1
    %v4438 = vadd.f32 %v4436, %v4437
    %v4439 = vsel %vm981, %v4225, 0.0
    %v4440 = vrot.slane %v4439, 4
    %v4441 = vadd.f32 %v4439, %v4440
    %v4442 = vrot.slane %v4441, 2
    %v4443 = vadd.f32 %v4441, %v4442
    %v4444 = vrot.slane %v4443, 1
    %v4445 = vadd.f32 %v4443, %v4444
    %v4446 = vsel %vm981, %v4226, 0.0
    %v4447 = vrot.slane %v4446, 4
    %v4448 = vadd.f32 %v4446, %v4447
    %v4449 = vrot.slane %v4448, 2
    %v4450 = vadd.f32 %v4448, %v4449
    %v4451 = vrot.slane %v4450, 1
    %v4452 = vadd.f32 %v4450, %v4451
    %v4453 = vsel %vm981, %v4227, 0.0
    %v4454 = vrot.slane %v4453, 4
    %v4455 = vadd.f32 %v4453, %v4454
    %v4456 = vrot.slane %v4455, 2
    %v4457 = vadd.f32 %v4455, %v4456
    %v4458 = vrot.slane %v4457, 1
    %v4459 = vadd.f32 %v4457, %v4458
    %v4460 = vsel %vm981, %v4228, 0.0
    %v4461 = vrot.slane %v4460, 4
    %v4462 = vadd.f32 %v4460, %v4461
    %v4463 = vrot.slane %v4462, 2
    %v4464 = vadd.f32 %v4462, %v4463
    %v4465 = vrot.slane %v4464, 1
    %v4466 = vadd.f32 %v4464, %v4465
    %v4467 = vsel %vm981, %v4229, 0.0
    %v4468 = vrot.slane %v4467, 4
    %v4469 = vadd.f32 %v4467, %v4468
    %v4470 = vrot.slane %v4469, 2
    %v4471 = vadd.f32 %v4469, %v4470
    %v4472 = vrot.slane %v4471, 1
    %v4473 = vadd.f32 %v4471, %v4472
    %v4474 = vsel %vm981, %v4230, 0.0
    %v4475 = vrot.slane %v4474, 4
    %v4476 = vadd.f32 %v4474, %v4475
    %v4477 = vrot.slane %v4476, 2
    %v4478 = vadd.f32 %v4476, %v4477
    %v4479 = vrot.slane %v4478, 1
    %v4480 = vadd.f32 %v4478, %v4479
    %v4481 = vsel %vm981, %v4231, 0.0
    %v4482 = vrot.slane %v4481, 4
    %v4483 = vadd.f32 %v4481, %v4482
    %v4484 = vrot.slane %v4483, 2
    %v4485 = vadd.f32 %v4483, %v4484
    %v4486 = vrot.slane %v4485, 1
    %v4487 = vadd.f32 %v4485, %v4486
    %v4488 = vsel %vm981, %v4232, 0.0
    %v4489 = vrot.slane %v4488, 4
    %v4490 = vadd.f32 %v4488, %v4489
    %v4491 = vrot.slane %v4490, 2
    %v4492 = vadd.f32 %v4490, %v4491
    %v4493 = vrot.slane %v4492, 1
    %v4494 = vadd.f32 %v4492, %v4493
    %v4495 = vsel %vm981, %v4233, 0.0
    %v4496 = vrot.slane %v4495, 4
    %v4497 = vadd.f32 %v4495, %v4496
    %v4498 = vrot.slane %v4497, 2
    %v4499 = vadd.f32 %v4497, %v4498
    %v4500 = vrot.slane %v4499, 1
    %v4501 = vadd.f32 %v4499, %v4500
    %v4502 = vsel %vm981, %v4234, 0.0
    %v4503 = vrot.slane %v4502, 4
    %v4504 = vadd.f32 %v4502, %v4503
    %v4505 = vrot.slane %v4504, 2
    %v4506 = vadd.f32 %v4504, %v4505
    %v4507 = vrot.slane %v4506, 1
    %v4508 = vadd.f32 %v4506, %v4507
    %v4509 = vsel %vm981, %v4235, 0.0
    %v4510 = vrot.slane %v4509, 4
    %v4511 = vadd.f32 %v4509, %v4510
    %v4512 = vrot.slane %v4511, 2
    %v4513 = vadd.f32 %v4511, %v4512
    %v4514 = vrot.slane %v4513, 1
    %v4515 = vadd.f32 %v4513, %v4514
    %v4516 = vsel %vm981, %v4236, 0.0
    %v4517 = vrot.slane %v4516, 4
    %v4518 = vadd.f32 %v4516, %v4517
    %v4519 = vrot.slane %v4518, 2
    %v4520 = vadd.f32 %v4518, %v4519
    %v4521 = vrot.slane %v4520, 1
    %v4522 = vadd.f32 %v4520, %v4521
    %v4523 = vsel %vm981, %v4237, 0.0
    %v4524 = vrot.slane %v4523, 4
    %v4525 = vadd.f32 %v4523, %v4524
    %v4526 = vrot.slane %v4525, 2
    %v4527 = vadd.f32 %v4525, %v4526
    %v4528 = vrot.slane %v4527, 1
    %v4529 = vadd.f32 %v4527, %v4528
    %v4530 = vsel %vm981, %v4238, 0.0
    %v4531 = vrot.slane %v4530, 4
    %v4532 = vadd.f32 %v4530, %v4531
    %v4533 = vrot.slane %v4532, 2
    %v4534 = vadd.f32 %v4532, %v4533
    %v4535 = vrot.slane %v4534, 1
    %v4536 = vadd.f32 %v4534, %v4535
    %v4537 = vsel %vm981, %v4239, 0.0
    %v4538 = vrot.slane %v4537, 4
    %v4539 = vadd.f32 %v4537, %v4538
    %v4540 = vrot.slane %v4539, 2
    %v4541 = vadd.f32 %v4539, %v4540
    %v4542 = vrot.slane %v4541, 1
    %v4543 = vadd.f32 %v4541, %v4542
    %v4544 = vsel %vm981, %v4240, 0.0
    %v4545 = vrot.slane %v4544, 4
    %v4546 = vadd.f32 %v4544, %v4545
    %v4547 = vrot.slane %v4546, 2
    %v4548 = vadd.f32 %v4546, %v4547
    %v4549 = vrot.slane %v4548, 1
    %v4550 = vadd.f32 %v4548, %v4549
    %v4551 = vsel %vm981, %v4241, 0.0
    %v4552 = vrot.slane %v4551, 4
    %v4553 = vadd.f32 %v4551, %v4552
    %v4554 = vrot.slane %v4553, 2
    %v4555 = vadd.f32 %v4553, %v4554
    %v4556 = vrot.slane %v4555, 1
    %v4557 = vadd.f32 %v4555, %v4556
    %v4558 = vsel %vm981, %v4242, 0.0
    %v4559 = vrot.slane %v4558, 4
    %v4560 = vadd.f32 %v4558, %v4559
    %v4561 = vrot.slane %v4560, 2
    %v4562 = vadd.f32 %v4560, %v4561
    %v4563 = vrot.slane %v4562, 1
    %v4564 = vadd.f32 %v4562, %v4563
    %v4565 = vsel %vm981, %v4243, 0.0
    %v4566 = vrot.slane %v4565, 4
    %v4567 = vadd.f32 %v4565, %v4566
    %v4568 = vrot.slane %v4567, 2
    %v4569 = vadd.f32 %v4567, %v4568
    %v4570 = vrot.slane %v4569, 1
    %v4571 = vadd.f32 %v4569, %v4570
    %v4572 = vsel %vm981, %v4244, 0.0
    %v4573 = vrot.slane %v4572, 4
    %v4574 = vadd.f32 %v4572, %v4573
    %v4575 = vrot.slane %v4574, 2
    %v4576 = vadd.f32 %v4574, %v4575
    %v4577 = vrot.slane %v4576, 1
    %v4578 = vadd.f32 %v4576, %v4577
    %v4579 = vsel %vm981, %v4245, 0.0
    %v4580 = vrot.slane %v4579, 4
    %v4581 = vadd.f32 %v4579, %v4580
    %v4582 = vrot.slane %v4581, 2
    %v4583 = vadd.f32 %v4581, %v4582
    %v4584 = vrot.slane %v4583, 1
    %v4585 = vadd.f32 %v4583, %v4584
    %v4586 = vsel %vm981, %v4246, 0.0
    %v4587 = vrot.slane %v4586, 4
    %v4588 = vadd.f32 %v4586, %v4587
    %v4589 = vrot.slane %v4588, 2
    %v4590 = vadd.f32 %v4588, %v4589
    %v4591 = vrot.slane %v4590, 1
    %v4592 = vadd.f32 %v4590, %v4591
    %v4593 = vsel %vm981, %v4247, 0.0
    %v4594 = vrot.slane %v4593, 4
    %v4595 = vadd.f32 %v4593, %v4594
    %v4596 = vrot.slane %v4595, 2
    %v4597 = vadd.f32 %v4595, %v4596
    %v4598 = vrot.slane %v4597, 1
    %v4599 = vadd.f32 %v4597, %v4598
    %v4600 = vsel %vm981, %v4248, 0.0
    %v4601 = vrot.slane %v4600, 4
    %v4602 = vadd.f32 %v4600, %v4601
    %v4603 = vrot.slane %v4602, 2
    %v4604 = vadd.f32 %v4602, %v4603
    %v4605 = vrot.slane %v4604, 1
    %v4606 = vadd.f32 %v4604, %v4605
    %v4607 = vsel %vm981, %v4249, 0.0
    %v4608 = vrot.slane %v4607, 4
    %v4609 = vadd.f32 %v4607, %v4608
    %v4610 = vrot.slane %v4609, 2
    %v4611 = vadd.f32 %v4609, %v4610
    %v4612 = vrot.slane %v4611, 1
    %v4613 = vadd.f32 %v4611, %v4612
    %v4614 = vsel %vm981, %v4250, 0.0
    %v4615 = vrot.slane %v4614, 4
    %v4616 = vadd.f32 %v4614, %v4615
    %v4617 = vrot.slane %v4616, 2
    %v4618 = vadd.f32 %v4616, %v4617
    %v4619 = vrot.slane %v4618, 1
    %v4620 = vadd.f32 %v4618, %v4619
    %v4621 = vsel %vm981, %v4251, 0.0
    %v4622 = vrot.slane %v4621, 4
    %v4623 = vadd.f32 %v4621, %v4622
    %v4624 = vrot.slane %v4623, 2
    %v4625 = vadd.f32 %v4623, %v4624
    %v4626 = vrot.slane %v4625, 1
    %v4627 = vadd.f32 %v4625, %v4626
    %v4628 = vsel %vm981, %v4252, 0.0
    %v4629 = vrot.slane %v4628, 4
    %v4630 = vadd.f32 %v4628, %v4629
    %v4631 = vrot.slane %v4630, 2
    %v4632 = vadd.f32 %v4630, %v4631
    %v4633 = vrot.slane %v4632, 1
    %v4634 = vadd.f32 %v4632, %v4633
    %v4635 = vsel %vm981, %v4253, 0.0
    %v4636 = vrot.slane %v4635, 4
    %v4637 = vadd.f32 %v4635, %v4636
    %v4638 = vrot.slane %v4637, 2
    %v4639 = vadd.f32 %v4637, %v4638
    %v4640 = vrot.slane %v4639, 1
    %v4641 = vadd.f32 %v4639, %v4640
    %v4642 = vsel %vm981, %v4254, 0.0
    %v4643 = vrot.slane %v4642, 4
    %v4644 = vadd.f32 %v4642, %v4643
    %v4645 = vrot.slane %v4644, 2
    %v4646 = vadd.f32 %v4644, %v4645
    %v4647 = vrot.slane %v4646, 1
    %v4648 = vadd.f32 %v4646, %v4647
    %v4649 = vsel %vm981, %v4255, 0.0
    %v4650 = vrot.slane %v4649, 4
    %v4651 = vadd.f32 %v4649, %v4650
    %v4652 = vrot.slane %v4651, 2
    %v4653 = vadd.f32 %v4651, %v4652
    %v4654 = vrot.slane %v4653, 1
    %v4655 = vadd.f32 %v4653, %v4654
    %v4656 = vsel %vm981, %v4256, 0.0
    %v4657 = vrot.slane %v4656, 4
    %v4658 = vadd.f32 %v4656, %v4657
    %v4659 = vrot.slane %v4658, 2
    %v4660 = vadd.f32 %v4658, %v4659
    %v4661 = vrot.slane %v4660, 1
    %v4662 = vadd.f32 %v4660, %v4661
    %v4663 = vsel %vm981, %v4257, 0.0
    %v4664 = vrot.slane %v4663, 4
    %v4665 = vadd.f32 %v4663, %v4664
    %v4666 = vrot.slane %v4665, 2
    %v4667 = vadd.f32 %v4665, %v4666
    %v4668 = vrot.slane %v4667, 1
    %v4669 = vadd.f32 %v4667, %v4668
    %v4670 = vsel %vm981, %v4258, 0.0
    %v4671 = vrot.slane %v4670, 4
    %v4672 = vadd.f32 %v4670, %v4671
    %v4673 = vrot.slane %v4672, 2
    %v4674 = vadd.f32 %v4672, %v4673
    %v4675 = vrot.slane %v4674, 1
    %v4676 = vadd.f32 %v4674, %v4675
    %v4677 = vsel %vm981, %v4259, 0.0
    %v4678 = vrot.slane %v4677, 4
    %v4679 = vadd.f32 %v4677, %v4678
    %v4680 = vrot.slane %v4679, 2
    %v4681 = vadd.f32 %v4679, %v4680
    %v4682 = vrot.slane %v4681, 1
    %v4683 = vadd.f32 %v4681, %v4682
    %v4684 = vsel %vm981, %v4260, 0.0
    %v4685 = vrot.slane %v4684, 4
    %v4686 = vadd.f32 %v4684, %v4685
    %v4687 = vrot.slane %v4686, 2
    %v4688 = vadd.f32 %v4686, %v4687
    %v4689 = vrot.slane %v4688, 1
    %v4690 = vadd.f32 %v4688, %v4689
    %v4691 = vsel %vm981, %v4261, 0.0
    %v4692 = vrot.slane %v4691, 4
    %v4693 = vadd.f32 %v4691, %v4692
    %v4694 = vrot.slane %v4693, 2
    %v4695 = vadd.f32 %v4693, %v4694
    %v4696 = vrot.slane %v4695, 1
    %v4697 = vadd.f32 %v4695, %v4696
    %v4698 = vsel %vm981, %v4262, 0.0
    %v4699 = vrot.slane %v4698, 4
    %v4700 = vadd.f32 %v4698, %v4699
    %v4701 = vrot.slane %v4700, 2
    %v4702 = vadd.f32 %v4700, %v4701
    %v4703 = vrot.slane %v4702, 1
    %v4704 = vadd.f32 %v4702, %v4703
    %v4705 = vsel %vm981, %v4263, 0.0
    %v4706 = vrot.slane %v4705, 4
    %v4707 = vadd.f32 %v4705, %v4706
    %v4708 = vrot.slane %v4707, 2
    %v4709 = vadd.f32 %v4707, %v4708
    %v4710 = vrot.slane %v4709, 1
    %v4711 = vadd.f32 %v4709, %v4710
    %v4776 = vsel %vm2208, %v4277, %v4270
    %v4777 = vsel %vm2210, %v4284, %v4776
    %v4778 = vsel %vm2212, %v4291, %v4777
    %v4779 = vsel %vm2214, %v4298, %v4778
    %v4780 = vsel %vm2216, %v4305, %v4779
    %v4781 = vsel %vm2218, %v4312, %v4780
    %v4782 = vsel %vm2220, %v4319, %v4781
    %v4783 = vsel %vm2208, %v4333, %v4326
    %v4784 = vsel %vm2210, %v4340, %v4783
    %v4785 = vsel %vm2212, %v4347, %v4784
    %v4786 = vsel %vm2214, %v4354, %v4785
    %v4787 = vsel %vm2216, %v4361, %v4786
    %v4788 = vsel %vm2218, %v4368, %v4787
    %v4789 = vsel %vm2220, %v4375, %v4788
    %v4790 = vsel %vm2208, %v4389, %v4382
    %v4791 = vsel %vm2210, %v4396, %v4790
    %v4792 = vsel %vm2212, %v4403, %v4791
    %v4793 = vsel %vm2214, %v4410, %v4792
    %v4794 = vsel %vm2216, %v4417, %v4793
    %v4795 = vsel %vm2218, %v4424, %v4794
    %v4796 = vsel %vm2220, %v4431, %v4795
    %v4797 = vsel %vm2208, %v4445, %v4438
    %v4798 = vsel %vm2210, %v4452, %v4797
    %v4799 = vsel %vm2212, %v4459, %v4798
    %v4800 = vsel %vm2214, %v4466, %v4799
    %v4801 = vsel %vm2216, %v4473, %v4800
    %v4802 = vsel %vm2218, %v4480, %v4801
    %v4803 = vsel %vm2220, %v4487, %v4802
    %v4804 = vsel %vm2208, %v4501, %v4494
    %v4805 = vsel %vm2210, %v4508, %v4804
    %v4806 = vsel %vm2212, %v4515, %v4805
    %v4807 = vsel %vm2214, %v4522, %v4806
    %v4808 = vsel %vm2216, %v4529, %v4807
    %v4809 = vsel %vm2218, %v4536, %v4808
    %v4810 = vsel %vm2220, %v4543, %v4809
    %v4811 = vsel %vm2208, %v4557, %v4550
    %v4812 = vsel %vm2210, %v4564, %v4811
    %v4813 = vsel %vm2212, %v4571, %v4812
    %v4814 = vsel %vm2214, %v4578, %v4813
    %v4815 = vsel %vm2216, %v4585, %v4814
    %v4816 = vsel %vm2218, %v4592, %v4815
    %v4817 = vsel %vm2220, %v4599, %v4816
    %v4818 = vsel %vm2208, %v4613, %v4606
    %v4819 = vsel %vm2210, %v4620, %v4818
    %v4820 = vsel %vm2212, %v4627, %v4819
    %v4821 = vsel %vm2214, %v4634, %v4820
    %v4822 = vsel %vm2216, %v4641, %v4821
    %v4823 = vsel %vm2218, %v4648, %v4822
    %v4824 = vsel %vm2220, %v4655, %v4823
    %v4825 = vsel %vm2208, %v4669, %v4662
    %v4826 = vsel %vm2210, %v4676, %v4825
    %v4827 = vsel %vm2212, %v4683, %v4826
    %v4828 = vsel %vm2214, %v4690, %v4827
    %v4829 = vsel %vm2216, %v4697, %v4828
    %v4830 = vsel %vm2218, %v4704, %v4829
    %v4831 = vsel %vm2220, %v4711, %v4830
    %4840 = vst.msk [vmem:[#allocation5] sm:$0xff] %vm981, %v4782
    %4841 = vst.msk [vmem:[#allocation5 + $0x8] sm:$0xff] %vm981, %v4789
    %4842 = vst.msk [vmem:[#allocation5 + $0x10] sm:$0xff] %vm981, %v4796
    %4843 = vst.msk [vmem:[#allocation5 + $0x18] sm:$0xff] %vm981, %v4803
    %4844 = vst.msk [vmem:[#allocation5 + $0x20] sm:$0xff] %vm981, %v4810
    %4845 = vst.msk [vmem:[#allocation5 + $0x28] sm:$0xff] %vm981, %v4817
    %4846 = vst.msk [vmem:[#allocation5 + $0x30] sm:$0xff] %vm981, %v4824
    %4847 = vst.msk [vmem:[#allocation5 + $0x38] sm:$0xff] %vm981, %v4831
    %v4848 = vlaneseq
    %v4849 = vshrl.u32 %v4848, 7
    %v4850 = vsub.s32 %v1951, %v4849
    %v4851 = vrot.slane %v3883, %v4850
    %v4852 = vlaneseq
    %v4853 = vshrl.u32 %v4852, 7
    %v4854 = vsub.s32 %v1951, %v4853
    %v4855 = vrot.slane %v3888, %v4854
    %v4856 = vlaneseq
    %v4857 = vshrl.u32 %v4856, 7
    %v4858 = vsub.s32 %v1951, %v4857
    %v4859 = vrot.slane %v3893, %v4858
    %v4860 = vlaneseq
    %v4861 = vshrl.u32 %v4860, 7
    %v4862 = vsub.s32 %v1951, %v4861
    %v4863 = vrot.slane %v3898, %v4862
    %v4864 = vlaneseq
    %v4865 = vshrl.u32 %v4864, 7
    %v4866 = vsub.s32 %v1951, %v4865
    %v4867 = vrot.slane %v3903, %v4866
    %v4868 = vlaneseq
    %v4869 = vshrl.u32 %v4868, 7
    %v4870 = vsub.s32 %v1951, %v4869
    %v4871 = vrot.slane %v3908, %v4870
    %v4872 = vlaneseq
    %v4873 = vshrl.u32 %v4872, 7
    %v4874 = vsub.s32 %v1951, %v4873
    %v4875 = vrot.slane %v3913, %v4874
    %v4876 = vlaneseq
    %v4877 = vshrl.u32 %v4876, 7
    %v4878 = vsub.s32 %v1951, %v4877
    %v4879 = vrot.slane %v3918, %v4878
    %v4880 = vlaneseq
    %v4881 = vshrl.u32 %v4880, 7
    %v4882 = vsub.s32 %v1951, %v4881
    %v4883 = vrot.slane %v3923, %v4882
    %v4884 = vlaneseq
    %v4885 = vshrl.u32 %v4884, 7
    %v4886 = vsub.s32 %v1951, %v4885
    %v4887 = vrot.slane %v3928, %v4886
    %v4888 = vlaneseq
    %v4889 = vshrl.u32 %v4888, 7
    %v4890 = vsub.s32 %v1951, %v4889
    %v4891 = vrot.slane %v3933, %v4890
    %v4892 = vlaneseq
    %v4893 = vshrl.u32 %v4892, 7
    %v4894 = vsub.s32 %v1951, %v4893
    %v4895 = vrot.slane %v3938, %v4894
    %v4896 = vlaneseq
    %v4897 = vshrl.u32 %v4896, 7
    %v4898 = vsub.s32 %v1951, %v4897
    %v4899 = vrot.slane %v3943, %v4898
    %v4900 = vlaneseq
    %v4901 = vshrl.u32 %v4900, 7
    %v4902 = vsub.s32 %v1951, %v4901
    %v4903 = vrot.slane %v3948, %v4902
    %v4904 = vlaneseq
    %v4905 = vshrl.u32 %v4904, 7
    %v4906 = vsub.s32 %v1951, %v4905
    %v4907 = vrot.slane %v3953, %v4906
    %v4908 = vlaneseq
    %v4909 = vshrl.u32 %v4908, 7
    %v4910 = vsub.s32 %v1951, %v4909
    %v4911 = vrot.slane %v3958, %v4910
    %v4912 = vlaneseq
    %v4913 = vshrl.u32 %v4912, 7
    %v4914 = vsub.s32 %v1951, %v4913
    %v4915 = vrot.slane %v3963, %v4914
    %v4916 = vlaneseq
    %v4917 = vshrl.u32 %v4916, 7
    %v4918 = vsub.s32 %v1951, %v4917
    %v4919 = vrot.slane %v3968, %v4918
    %v4920 = vlaneseq
    %v4921 = vshrl.u32 %v4920, 7
    %v4922 = vsub.s32 %v1951, %v4921
    %v4923 = vrot.slane %v3973, %v4922
    %v4924 = vlaneseq
    %v4925 = vshrl.u32 %v4924, 7
    %v4926 = vsub.s32 %v1951, %v4925
    %v4927 = vrot.slane %v3978, %v4926
    %v4928 = vlaneseq
    %v4929 = vshrl.u32 %v4928, 7
    %v4930 = vsub.s32 %v1951, %v4929
    %v4931 = vrot.slane %v3983, %v4930
    %v4932 = vlaneseq
    %v4933 = vshrl.u32 %v4932, 7
    %v4934 = vsub.s32 %v1951, %v4933
    %v4935 = vrot.slane %v3988, %v4934
    %v4936 = vlaneseq
    %v4937 = vshrl.u32 %v4936, 7
    %v4938 = vsub.s32 %v1951, %v4937
    %v4939 = vrot.slane %v3993, %v4938
    %v4940 = vlaneseq
    %v4941 = vshrl.u32 %v4940, 7
    %v4942 = vsub.s32 %v1951, %v4941
    %v4943 = vrot.slane %v3998, %v4942
    %v4944 = vlaneseq
    %v4945 = vshrl.u32 %v4944, 7
    %v4946 = vsub.s32 %v1951, %v4945
    %v4947 = vrot.slane %v4003, %v4946
    %v4948 = vlaneseq
    %v4949 = vshrl.u32 %v4948, 7
    %v4950 = vsub.s32 %v1951, %v4949
    %v4951 = vrot.slane %v4008, %v4950
    %v4952 = vlaneseq
    %v4953 = vshrl.u32 %v4952, 7
    %v4954 = vsub.s32 %v1951, %v4953
    %v4955 = vrot.slane %v4013, %v4954
    %v4956 = vlaneseq
    %v4957 = vshrl.u32 %v4956, 7
    %v4958 = vsub.s32 %v1951, %v4957
    %v4959 = vrot.slane %v4018, %v4958
    %v4960 = vlaneseq
    %v4961 = vshrl.u32 %v4960, 7
    %v4962 = vsub.s32 %v1951, %v4961
    %v4963 = vrot.slane %v4023, %v4962
    %v4964 = vlaneseq
    %v4965 = vshrl.u32 %v4964, 7
    %v4966 = vsub.s32 %v1951, %v4965
    %v4967 = vrot.slane %v4028, %v4966
    %v4968 = vlaneseq
    %v4969 = vshrl.u32 %v4968, 7
    %v4970 = vsub.s32 %v1951, %v4969
    %v4971 = vrot.slane %v4033, %v4970
    %v4972 = vlaneseq
    %v4973 = vshrl.u32 %v4972, 7
    %v4974 = vsub.s32 %v1951, %v4973
    %v4975 = vrot.slane %v4038, %v4974
    %v4976 = vlaneseq
    %v4977 = vshrl.u32 %v4976, 7
    %v4978 = vsub.s32 %v1951, %v4977
    %v4979 = vrot.slane %v4043, %v4978
    %v4980 = vlaneseq
    %v4981 = vshrl.u32 %v4980, 7
    %v4982 = vsub.s32 %v1951, %v4981
    %v4983 = vrot.slane %v4048, %v4982
    %v4984 = vlaneseq
    %v4985 = vshrl.u32 %v4984, 7
    %v4986 = vsub.s32 %v1951, %v4985
    %v4987 = vrot.slane %v4053, %v4986
    %v4988 = vlaneseq
    %v4989 = vshrl.u32 %v4988, 7
    %v4990 = vsub.s32 %v1951, %v4989
    %v4991 = vrot.slane %v4058, %v4990
    %v4992 = vlaneseq
    %v4993 = vshrl.u32 %v4992, 7
    %v4994 = vsub.s32 %v1951, %v4993
    %v4995 = vrot.slane %v4063, %v4994
    %v4996 = vlaneseq
    %v4997 = vshrl.u32 %v4996, 7
    %v4998 = vsub.s32 %v1951, %v4997
    %v4999 = vrot.slane %v4068, %v4998
    %v5000 = vlaneseq
    %v5001 = vshrl.u32 %v5000, 7
    %v5002 = vsub.s32 %v1951, %v5001
    %v5003 = vrot.slane %v4073, %v5002
    %v5004 = vlaneseq
    %v5005 = vshrl.u32 %v5004, 7
    %v5006 = vsub.s32 %v1951, %v5005
    %v5007 = vrot.slane %v4078, %v5006
    %v5008 = vlaneseq
    %v5009 = vshrl.u32 %v5008, 7
    %v5010 = vsub.s32 %v1951, %v5009
    %v5011 = vrot.slane %v4083, %v5010
    %v5012 = vlaneseq
    %v5013 = vshrl.u32 %v5012, 7
    %v5014 = vsub.s32 %v1951, %v5013
    %v5015 = vrot.slane %v4088, %v5014
    %v5016 = vlaneseq
    %v5017 = vshrl.u32 %v5016, 7
    %v5018 = vsub.s32 %v1951, %v5017
    %v5019 = vrot.slane %v4093, %v5018
    %v5020 = vlaneseq
    %v5021 = vshrl.u32 %v5020, 7
    %v5022 = vsub.s32 %v1951, %v5021
    %v5023 = vrot.slane %v4098, %v5022
    %v5024 = vlaneseq
    %v5025 = vshrl.u32 %v5024, 7
    %v5026 = vsub.s32 %v1951, %v5025
    %v5027 = vrot.slane %v4103, %v5026
    %v5028 = vlaneseq
    %v5029 = vshrl.u32 %v5028, 7
    %v5030 = vsub.s32 %v1951, %v5029
    %v5031 = vrot.slane %v4108, %v5030
    %v5032 = vlaneseq
    %v5033 = vshrl.u32 %v5032, 7
    %v5034 = vsub.s32 %v1951, %v5033
    %v5035 = vrot.slane %v4113, %v5034
    %v5036 = vlaneseq
    %v5037 = vshrl.u32 %v5036, 7
    %v5038 = vsub.s32 %v1951, %v5037
    %v5039 = vrot.slane %v4118, %v5038
    %v5040 = vlaneseq
    %v5041 = vshrl.u32 %v5040, 7
    %v5042 = vsub.s32 %v1951, %v5041
    %v5043 = vrot.slane %v4123, %v5042
    %v5044 = vlaneseq
    %v5045 = vshrl.u32 %v5044, 7
    %v5046 = vsub.s32 %v1951, %v5045
    %v5047 = vrot.slane %v4128, %v5046
    %v5048 = vlaneseq
    %v5049 = vshrl.u32 %v5048, 7
    %v5050 = vsub.s32 %v1951, %v5049
    %v5051 = vrot.slane %v4133, %v5050
    %v5052 = vlaneseq
    %v5053 = vshrl.u32 %v5052, 7
    %v5054 = vsub.s32 %v1951, %v5053
    %v5055 = vrot.slane %v4138, %v5054
    %v5056 = vlaneseq
    %v5057 = vshrl.u32 %v5056, 7
    %v5058 = vsub.s32 %v1951, %v5057
    %v5059 = vrot.slane %v4143, %v5058
    %v5060 = vlaneseq
    %v5061 = vshrl.u32 %v5060, 7
    %v5062 = vsub.s32 %v1951, %v5061
    %v5063 = vrot.slane %v4148, %v5062
    %v5064 = vlaneseq
    %v5065 = vshrl.u32 %v5064, 7
    %v5066 = vsub.s32 %v1951, %v5065
    %v5067 = vrot.slane %v4153, %v5066
    %v5068 = vlaneseq
    %v5069 = vshrl.u32 %v5068, 7
    %v5070 = vsub.s32 %v1951, %v5069
    %v5071 = vrot.slane %v4158, %v5070
    %v5072 = vlaneseq
    %v5073 = vshrl.u32 %v5072, 7
    %v5074 = vsub.s32 %v1951, %v5073
    %v5075 = vrot.slane %v4163, %v5074
    %v5076 = vlaneseq
    %v5077 = vshrl.u32 %v5076, 7
    %v5078 = vsub.s32 %v1951, %v5077
    %v5079 = vrot.slane %v4168, %v5078
    %v5080 = vlaneseq
    %v5081 = vshrl.u32 %v5080, 7
    %v5082 = vsub.s32 %v1951, %v5081
    %v5083 = vrot.slane %v4173, %v5082
    %v5084 = vlaneseq
    %v5085 = vshrl.u32 %v5084, 7
    %v5086 = vsub.s32 %v1951, %v5085
    %v5087 = vrot.slane %v4178, %v5086
    %v5088 = vlaneseq
    %v5089 = vshrl.u32 %v5088, 7
    %v5090 = vsub.s32 %v1951, %v5089
    %v5091 = vrot.slane %v4183, %v5090
    %v5092 = vlaneseq
    %v5093 = vshrl.u32 %v5092, 7
    %v5094 = vsub.s32 %v1951, %v5093
    %v5095 = vrot.slane %v4188, %v5094
    %v5096 = vlaneseq
    %v5097 = vshrl.u32 %v5096, 7
    %v5098 = vsub.s32 %v1951, %v5097
    %v5099 = vrot.slane %v4193, %v5098
    %v5100 = vlaneseq
    %v5101 = vshrl.u32 %v5100, 7
    %v5102 = vsub.s32 %v1951, %v5101
    %v5103 = vrot.slane %v4198, %v5102
    %v5104 = vsel %vm2208, %v4855, %v4851
    %v5105 = vsel %vm2210, %v4859, %v5104
    %v5106 = vsel %vm2212, %v4863, %v5105
    %v5107 = vsel %vm2214, %v4867, %v5106
    %v5108 = vsel %vm2216, %v4871, %v5107
    %v5109 = vsel %vm2218, %v4875, %v5108
    %v5110 = vsel %vm2220, %v4879, %v5109
    %v5111 = vsel %vm2208, %v4887, %v4883
    %v5112 = vsel %vm2210, %v4891, %v5111
    %v5113 = vsel %vm2212, %v4895, %v5112
    %v5114 = vsel %vm2214, %v4899, %v5113
    %v5115 = vsel %vm2216, %v4903, %v5114
    %v5116 = vsel %vm2218, %v4907, %v5115
    %v5117 = vsel %vm2220, %v4911, %v5116
    %v5118 = vsel %vm2208, %v4919, %v4915
    %v5119 = vsel %vm2210, %v4923, %v5118
    %v5120 = vsel %vm2212, %v4927, %v5119
    %v5121 = vsel %vm2214, %v4931, %v5120
    %v5122 = vsel %vm2216, %v4935, %v5121
    %v5123 = vsel %vm2218, %v4939, %v5122
    %v5124 = vsel %vm2220, %v4943, %v5123
    %v5125 = vsel %vm2208, %v4951, %v4947
    %v5126 = vsel %vm2210, %v4955, %v5125
    %v5127 = vsel %vm2212, %v4959, %v5126
    %v5128 = vsel %vm2214, %v4963, %v5127
    %v5129 = vsel %vm2216, %v4967, %v5128
    %v5130 = vsel %vm2218, %v4971, %v5129
    %v5131 = vsel %vm2220, %v4975, %v5130
    %v5132 = vsel %vm2208, %v4983, %v4979
    %v5133 = vsel %vm2210, %v4987, %v5132
    %v5134 = vsel %vm2212, %v4991, %v5133
    %v5135 = vsel %vm2214, %v4995, %v5134
    %v5136 = vsel %vm2216, %v4999, %v5135
    %v5137 = vsel %vm2218, %v5003, %v5136
    %v5138 = vsel %vm2220, %v5007, %v5137
    %v5139 = vsel %vm2208, %v5015, %v5011
    %v5140 = vsel %vm2210, %v5019, %v5139
    %v5141 = vsel %vm2212, %v5023, %v5140
    %v5142 = vsel %vm2214, %v5027, %v5141
    %v5143 = vsel %vm2216, %v5031, %v5142
    %v5144 = vsel %vm2218, %v5035, %v5143
    %v5145 = vsel %vm2220, %v5039, %v5144
    %v5146 = vsel %vm2208, %v5047, %v5043
    %v5147 = vsel %vm2210, %v5051, %v5146
    %v5148 = vsel %vm2212, %v5055, %v5147
    %v5149 = vsel %vm2214, %v5059, %v5148
    %v5150 = vsel %vm2216, %v5063, %v5149
    %v5151 = vsel %vm2218, %v5067, %v5150
    %v5152 = vsel %vm2220, %v5071, %v5151
    %v5153 = vsel %vm2208, %v5079, %v5075
    %v5154 = vsel %vm2210, %v5083, %v5153
    %v5155 = vsel %vm2212, %v5087, %v5154
    %v5156 = vsel %vm2214, %v5091, %v5155
    %v5157 = vsel %vm2216, %v5095, %v5156
    %v5158 = vsel %vm2218, %v5099, %v5157
    %v5159 = vsel %vm2220, %v5103, %v5158
    %5168 = vst.msk [vmem:[%s7] sm:$0xff] %vm2279, %v5110
    %5169 = vst.msk [vmem:[%s7 + $0x8] sm:$0xff] %vm2279, %v5117
    %5170 = vst.msk [vmem:[%s7 + $0x10] sm:$0xff] %vm2279, %v5124
    %5171 = vst.msk [vmem:[%s7 + $0x18] sm:$0xff] %vm2279, %v5131
    %5172 = vst.msk [vmem:[%s7 + $0x20] sm:$0xff] %vm2279, %v5138
    %5173 = vst.msk [vmem:[%s7 + $0x28] sm:$0xff] %vm2279, %v5145
    %5174 = vst.msk [vmem:[%s7 + $0x30] sm:$0xff] %vm2279, %v5152
    %5175 = vst.msk [vmem:[%s7 + $0x38] sm:$0xff] %vm2279, %v5159
    // Predicated region
    $region30: #{tpu_custom_call.1} parent=1 // pred_check
      _
    $region31: #{tpu_custom_call.1} parent=1 // pred_check_branch
      %5177 = sbr.rel (0) target = $region33
    $region32: #{tpu_custom_call.1} parent=1 // pred_region
      %s5179 = ssub.s32 1024, 1024
      %5180 = vsyncadd [#allocation4], %s5179
      %s5181 = sshll.u32 [#allocation5], 4
      %s5182 = int_to_ptr.vmem [resolvable:$true] %s5181
      %5187 = dma.vmem_to_hbm [thread:$0]  %s5182, 1024, %s6, [#allocation4], 128, 128, 8
    $region33: #{tpu_custom_call.1} parent=1 // pred_fallthru
      _
    // Predicated region
    $region34: #{tpu_custom_call.1} parent=1 // pred_check
      _
    $region35: #{tpu_custom_call.1} parent=1 // pred_check_branch
      %5189 = sbr.rel (0) target = $region37
    $region36: #{tpu_custom_call.1} parent=1 // pred_region
      _
    $region37: #{tpu_custom_call.1} parent=1 // pred_fallthru
      _
    // Predicated region
    $region38: #{tpu_custom_call.1} parent=1 // pred_check
      _
    $region39: #{tpu_custom_call.1} parent=1 // pred_check_branch
      %5191 = sbr.rel (0) target = $region41
    $region40: #{tpu_custom_call.1} parent=1 // pred_region
      %5192 = dma.done [#allocation4], 1024
    $region41: #{tpu_custom_call.1} parent=1 // pred_fallthru
      _
    // Predicated region
    $region42: #{tpu_custom_call.1} parent=1 // pred_check
      _
    $region43: #{tpu_custom_call.1} parent=1 // pred_check_branch
      %5194 = sbr.rel (0) target = $region45
    $region44: #{tpu_custom_call.1} parent=1 // pred_region
      _
    $region45: #{tpu_custom_call.1} parent=1 // pred_fallthru
      _
    %5195 = vsyncpa [#allocation3], 1
    %5196 = vsyncpa [#allocation4], 1

</llo_original>
